<compile_context>
chip_gen: v6e
topology: v6e:2x2x1
jax: 0.10.0
libtpu: 0.0.40
codegen_flags: <defaults>
</compile_context>

<pallas_src>
import jax
import jax.numpy as jnp
from jax.experimental import pallas as pl
from jax.experimental.pallas import tpu as pltpu


def _round_up(x, m):
    return ((x + m - 1) // m) * m


def _cdiv(a, b):
    return (a + b - 1) // b


def _mlp_kernel(x_ref, w0_ref, w_slab_ref, b_slab_ref, o_ref):
    """Whole 8-layer MLP fused in one kernel invocation (per batch tile).

    x_ref      : (bt, n_feature)  f32
    w0_ref     : (n_feature, H)   bf16  layer-0 weight (standardization folded)
    w_slab_ref : (7, H, H)        bf16  layers 1..7, zero-padded to (H, H)
    b_slab_ref : (8, H)           f32   all biases, zero-padded to H
    o_ref      : (bt, H)          bf16  lane-dense padded output
    """
    # Layer 0 (hidden): raw x in, f32 accumulate, f32 bias add, ReLU, bf16 out.
    y = jnp.dot(x_ref[...].astype(jnp.bfloat16), w0_ref[...],
                preferred_element_type=jnp.float32) + b_slab_ref[0:1, :]
    h = jnp.maximum(y, 0.0).astype(jnp.bfloat16)

    # Layers 1..6 (Linear + ReLU) and layer 7 (Linear, no ReLU).
    for li in range(7):
        y = jnp.dot(h, w_slab_ref[li],
                    preferred_element_type=jnp.float32) + b_slab_ref[li + 1:li + 2, :]
        if li < 6:
            h = jnp.maximum(y, 0.0).astype(jnp.bfloat16)

    # Padded columns of the last layer have zero weights/bias -> stay zero;
    # they are sliced off in the wrapper.
    o_ref[...] = y.astype(o_ref.dtype)


def fold_standardization(params, x_mean, x_std):
    """Fold ((x - mean)/std) @ W0 + b0 into W0' = W0/std, b0' = b0 - (mean/std)@W0.

    The kernel then consumes raw x: the standardization pass (a full HBM
    read+write of the input) is absorbed into the first matmul for free.
    """
    w0, b0 = params[0]
    w0 = jnp.asarray(w0, jnp.float32)
    b0 = jnp.asarray(b0, jnp.float32).reshape(1, -1)
    x_mean = jnp.asarray(x_mean, jnp.float32)
    x_std = jnp.asarray(x_std, jnp.float32)
    w0_f = w0 / x_std[:, None]
    b0_f = b0 - (x_mean / x_std)[None, :] @ w0
    return [(w0_f, b0_f)] + list(params[1:])


def multiple_layer_regressor(x, params, *, max_batch_tile=4096, target_steps=2):
    """Runs the fused MLP kernel.

    x      : (B, n_feature) float32 (raw; fold any standardization into layer 0
             via fold_standardization before calling).
    params : list of 8 (W, b) pairs, W: (in, out), b: (1, out) or (out,).
    """
    B, n_feature = x.shape
    n_output = int(params[-1][0].shape[1])

    # Common lane-dense width for all hidden/output activations.
    H = _round_up(max(int(w.shape[1]) for (w, _) in params), 128)

    # ---- pack all 8 layers into 3 resident VMEM slabs (3 DMAs, not 16) ----
    # Zero padding keeps semantics exact: padded input rows are zero and padded
    # output cols have zero weight + zero bias, so padded activation lanes stay
    # exactly 0 through every ReLU (and exact 0 survives the bf16 cast).
    w_padded, b_padded = [], []
    for li, (w, b) in enumerate(params):
        w = jnp.asarray(w, jnp.float32)
        b = jnp.asarray(b, jnp.float32).reshape(1, -1)
        d_in, d_out = int(w.shape[0]), int(w.shape[1])
        in_target = n_feature if li == 0 else H
        w_padded.append(jnp.pad(w, ((0, in_target - d_in), (0, H - d_out))))
        b_padded.append(jnp.pad(b, ((0, 0), (0, H - d_out))))
    w0 = w_padded[0].astype(jnp.bfloat16)                  # (n_feature, H)
    w_slab = jnp.stack(w_padded[1:]).astype(jnp.bfloat16)  # (7, H, H)
    b_slab = jnp.concatenate(b_padded, axis=0)             # (8, H) f32

    # ---- batch tiling: ~target_steps big tiles, 16-row sublane alignment ----
    # (16 is safe for both the f32 x tile and the bf16 output tile.)
    ALIGN = 16
    B_pad_a = _round_up(max(B, 1), ALIGN)
    bt = ALIGN if B_pad_a <= ALIGN else _round_up(_cdiv(B_pad_a, target_steps), ALIGN)
    bt = max(ALIGN, min(bt, max_batch_tile))
    B_pad = _round_up(B, bt)
    if B_pad != B:
        x = jnp.pad(x, ((0, B_pad - B), (0, 0)))
    grid = (B_pad // bt,)

    in_specs = [
        pl.BlockSpec((bt, n_feature), lambda i: (i, 0)),   # x tile (pipelined)
        pl.BlockSpec(w0.shape, lambda i: (0, 0)),          # resident params
        pl.BlockSpec(w_slab.shape, lambda i: (0, 0, 0)),   # (constant index ->
        pl.BlockSpec(b_slab.shape, lambda i: (0, 0)),      #  no re-DMA per step)
    ]
    out_spec = pl.BlockSpec((bt, H), lambda i: (i, 0))

    param_bytes = sum(int(p.size) * p.dtype.itemsize for p in (w0, w_slab, b_slab))
    flops = 2 * B_pad * (n_feature * H + 7 * H * H)
    bytes_accessed = (B_pad * n_feature * 4     # x in (f32)
                      + B_pad * H * 2           # out (bf16)
                      + param_bytes)

    out_padded = pl.pallas_call(
        _mlp_kernel,
        out_shape=jax.ShapeDtypeStruct((B_pad, H), jnp.bfloat16),
        grid_spec=pltpu.PrefetchScalarGridSpec(
            num_scalar_prefetch=0,
            grid=grid,
            in_specs=in_specs,
            out_specs=out_spec,
        ),
        compiler_params=pltpu.CompilerParams(
            dimension_semantics=("parallel",),      # shard batch tiles on v7x's 2 TCs
            vmem_limit_bytes=32 * 1024 * 1024,      # portable default (v5e/v6e/v7x)
        ),
        cost_estimate=pl.CostEstimate(
            flops=flops, transcendentals=0, bytes_accessed=bytes_accessed),
    )(x, w0, w_slab, b_slab)

    return out_padded[:B, :n_output].astype(jnp.float32)


def init_params(key, n_feature, n_hid1, n_hid2, n_output):
    """Deterministic init matching the layer shapes of MultipleLayerRegressor."""
    dims = [
        (n_feature, n_hid1),  # hidden
        (n_hid1, n_hid1),     # inner1
        (n_hid1, n_hid1),     # inner2
        (n_hid1, n_hid2),     # inner3
        (n_hid2, n_hid2),     # inner4
        (n_hid2, n_hid2),     # inner5
        (n_hid2, n_hid2),     # inner6
        (n_hid2, n_output),   # out
    ]
    params = []
    for (d_in, d_out) in dims:
        key, kw, kb = jax.random.split(key, 3)
        bound = 1.0 / float(jnp.sqrt(d_in))  # nn.Linear fan-in uniform range
        w = jax.random.uniform(kw, (d_in, d_out), jnp.float32, -bound, bound)
        b = jax.random.uniform(kb, (1, d_out), jnp.float32, -bound, bound)
        params.append((w, b))
    return params


def reference_forward(x, params):
    """Pure-JAX reference with the same numerics policy as the kernel
    (bf16 weights / bf16 LHS, f32 accumulate, bf16 output) so the comparison
    isolates kernel correctness rather than dtype choices.
    Note: this is ~bf16-level accuracy vs a pure-f32 PyTorch forward."""
    h = jnp.asarray(x, jnp.float32)
    n = len(params)
    for i, (w, b) in enumerate(params):
        y = jnp.dot(h.astype(jnp.bfloat16),
                    jnp.asarray(w, jnp.float32).astype(jnp.bfloat16),
                    preferred_element_type=jnp.float32)
        y = y + jnp.asarray(b, jnp.float32).reshape(1, -1)
        h = jnp.maximum(y, 0.0) if i < n - 1 else y
    return h.astype(jnp.bfloat16).astype(jnp.float32)


if __name__ == "__main__":
    key = jax.random.PRNGKey(0)
    key, kx = jax.random.split(key)

    # Shapes consistent with the module's forward.  B chosen so the default
    # target_steps=2 tiling gives a 2-step grid (pipelining + dual-TC on v7x).
    B, n_feature, n_hid1, n_hid2, n_output = 1024, 32, 128, 64, 8

    x_raw = jax.random.normal(kx, (B, n_feature), jnp.float32) * 3.0 + 1.0
    x_mean = x_raw.mean(axis=0)
    x_std = x_raw.std(axis=0)

    params = init_params(key, n_feature, n_hid1, n_hid2, n_output)
    # Fold the (x - mean)/std preprocessing of the original script into layer 0:
    # the kernel consumes raw x directly.
    folded = fold_standardization(params, x_mean, x_std)

    out = multiple_layer_regressor(x_raw, folded)          # grid = (2,)
    out = jax.block_until_ready(out)
    ref = reference_forward(x_raw, folded)
    assert out.shape == (B, n_output)
    assert jnp.allclose(out, ref, atol=1e-2, rtol=1e-2), \
        float(jnp.max(jnp.abs(out - ref)))

    # Small / ragged batch: exercises tile capping + batch padding path.
    out_small = jax.block_until_ready(multiple_layer_regressor(x_raw[:13], folded))
    ref_small = reference_forward(x_raw[:13], folded)
    assert out_small.shape == (13, n_output)
    assert jnp.allclose(out_small, ref_small, atol=1e-2, rtol=1e-2)

    print("KERNEL_OK")
</pallas_src>

<mosaic_0001>
module attributes {stable_mosaic.version = 11 : i64} {
  func.func @_mlp_kernel(%arg0: i32, %arg1: memref<512x32xf32, #tpu.memory_space<vmem>>, %arg2: memref<32x128xbf16, #tpu.memory_space<vmem>>, %arg3: memref<7x128x128xbf16, #tpu.memory_space<vmem>>, %arg4: memref<8x128xf32, #tpu.memory_space<vmem>>, %arg5: memref<512x128xbf16, #tpu.memory_space<vmem>>) attributes {dimension_semantics = [#tpu.dimension_semantics<parallel>], iteration_bounds = array<i64: 2>, scalar_prefetch = 0 : i64, scratch_operands = 0 : i64, tpu.core_type = #tpu.core_type<tc>, window_params = [{transform_indices = @transform_0, window_bounds = array<i64: 512, 32>}, {pipeline_mode = #tpu.pipeline_mode<synchronous>, transform_indices = @transform_1, window_bounds = array<i64: 32, 128>}, {pipeline_mode = #tpu.pipeline_mode<synchronous>, transform_indices = @transform_2, window_bounds = array<i64: 7, 128, 128>}, {pipeline_mode = #tpu.pipeline_mode<synchronous>, transform_indices = @transform_3, window_bounds = array<i64: 8, 128>}, {transform_indices = @transform_4, window_bounds = array<i64: 512, 128>}]} {
    %c0 = arith.constant 0 : index
    %c0_0 = arith.constant 0 : index
    %0 = vector.load %arg1[%c0, %c0_0] : memref<512x32xf32, #tpu.memory_space<vmem>>, vector<512x32xf32>
    %1 = arith.truncf %0 : vector<512x32xf32> to vector<512x32xbf16>
    %c0_1 = arith.constant 0 : index
    %c0_2 = arith.constant 0 : index
    %2 = vector.load %arg2[%c0_1, %c0_2] : memref<32x128xbf16, #tpu.memory_space<vmem>>, vector<32x128xbf16>
    %cst = arith.constant dense<0.000000e+00> : vector<512x128xf32>
    %3 = tpu.matmul %1, %2, %cst {dimension_numbers = #tpu.dot_dimension_numbers<[1], [0], [0], [1], [0, 0, 1, 1], [], []>} : vector<512x32xbf16>, vector<32x128xbf16>, vector<512x128xf32> -> vector<512x128xf32>
    %c0_3 = arith.constant 0 : index
    %c0_4 = arith.constant 0 : index
    %4 = vector.load %arg4[%c0_3, %c0_4] : memref<8x128xf32, #tpu.memory_space<vmem>>, vector<1x128xf32>
    %5 = vector.broadcast %4 : vector<1x128xf32> to vector<512x128xf32>
    %6 = arith.addf %3, %5 : vector<512x128xf32>
    %cst_5 = arith.constant 0.000000e+00 : f32
    %7 = vector.broadcast %cst_5 : f32 to vector<512x128xf32>
    %8 = arith.maximumf %6, %7 : vector<512x128xf32>
    %9 = arith.truncf %8 : vector<512x128xf32> to vector<512x128xbf16>
    %c0_6 = arith.constant 0 : index
    %c0_7 = arith.constant 0 : index
    %c0_8 = arith.constant 0 : index
    %10 = vector.load %arg3[%c0_6, %c0_7, %c0_8] : memref<7x128x128xbf16, #tpu.memory_space<vmem>>, vector<1x128x128xbf16>
    %11 = vector.shape_cast %10 : vector<1x128x128xbf16> to vector<128x128xbf16>
    %cst_9 = arith.constant dense<0.000000e+00> : vector<512x128xf32>
    %12 = tpu.matmul %9, %11, %cst_9 {dimension_numbers = #tpu.dot_dimension_numbers<[1], [0], [0], [1], [0, 0, 1, 1], [], []>} : vector<512x128xbf16>, vector<128x128xbf16>, vector<512x128xf32> -> vector<512x128xf32>
    %c1 = arith.constant 1 : index
    %c0_10 = arith.constant 0 : index
    %13 = vector.load %arg4[%c1, %c0_10] : memref<8x128xf32, #tpu.memory_space<vmem>>, vector<1x128xf32>
    %14 = vector.broadcast %13 : vector<1x128xf32> to vector<512x128xf32>
    %15 = arith.addf %12, %14 : vector<512x128xf32>
    %cst_11 = arith.constant 0.000000e+00 : f32
    %16 = vector.broadcast %cst_11 : f32 to vector<512x128xf32>
    %17 = arith.maximumf %15, %16 : vector<512x128xf32>
    %18 = arith.truncf %17 : vector<512x128xf32> to vector<512x128xbf16>
    %c1_12 = arith.constant 1 : index
    %c0_13 = arith.constant 0 : index
    %c0_14 = arith.constant 0 : index
    %19 = vector.load %arg3[%c1_12, %c0_13, %c0_14] : memref<7x128x128xbf16, #tpu.memory_space<vmem>>, vector<1x128x128xbf16>
    %20 = vector.shape_cast %19 : vector<1x128x128xbf16> to vector<128x128xbf16>
    %cst_15 = arith.constant dense<0.000000e+00> : vector<512x128xf32>
    %21 = tpu.matmul %18, %20, %cst_15 {dimension_numbers = #tpu.dot_dimension_numbers<[1], [0], [0], [1], [0, 0, 1, 1], [], []>} : vector<512x128xbf16>, vector<128x128xbf16>, vector<512x128xf32> -> vector<512x128xf32>
    %c2 = arith.constant 2 : index
    %c0_16 = arith.constant 0 : index
    %22 = vector.load %arg4[%c2, %c0_16] : memref<8x128xf32, #tpu.memory_space<vmem>>, vector<1x128xf32>
    %23 = vector.broadcast %22 : vector<1x128xf32> to vector<512x128xf32>
    %24 = arith.addf %21, %23 : vector<512x128xf32>
    %cst_17 = arith.constant 0.000000e+00 : f32
    %25 = vector.broadcast %cst_17 : f32 to vector<512x128xf32>
    %26 = arith.maximumf %24, %25 : vector<512x128xf32>
    %27 = arith.truncf %26 : vector<512x128xf32> to vector<512x128xbf16>
    %c2_18 = arith.constant 2 : index
    %c0_19 = arith.constant 0 : index
    %c0_20 = arith.constant 0 : index
    %28 = vector.load %arg3[%c2_18, %c0_19, %c0_20] : memref<7x128x128xbf16, #tpu.memory_space<vmem>>, vector<1x128x128xbf16>
    %29 = vector.shape_cast %28 : vector<1x128x128xbf16> to vector<128x128xbf16>
    %cst_21 = arith.constant dense<0.000000e+00> : vector<512x128xf32>
    %30 = tpu.matmul %27, %29, %cst_21 {dimension_numbers = #tpu.dot_dimension_numbers<[1], [0], [0], [1], [0, 0, 1, 1], [], []>} : vector<512x128xbf16>, vector<128x128xbf16>, vector<512x128xf32> -> vector<512x128xf32>
    %c3 = arith.constant 3 : index
    %c0_22 = arith.constant 0 : index
    %31 = vector.load %arg4[%c3, %c0_22] : memref<8x128xf32, #tpu.memory_space<vmem>>, vector<1x128xf32>
    %32 = vector.broadcast %31 : vector<1x128xf32> to vector<512x128xf32>
    %33 = arith.addf %30, %32 : vector<512x128xf32>
    %cst_23 = arith.constant 0.000000e+00 : f32
    %34 = vector.broadcast %cst_23 : f32 to vector<512x128xf32>
    %35 = arith.maximumf %33, %34 : vector<512x128xf32>
    %36 = arith.truncf %35 : vector<512x128xf32> to vector<512x128xbf16>
    %c3_24 = arith.constant 3 : index
    %c0_25 = arith.constant 0 : index
    %c0_26 = arith.constant 0 : index
    %37 = vector.load %arg3[%c3_24, %c0_25, %c0_26] : memref<7x128x128xbf16, #tpu.memory_space<vmem>>, vector<1x128x128xbf16>
    %38 = vector.shape_cast %37 : vector<1x128x128xbf16> to vector<128x128xbf16>
    %cst_27 = arith.constant dense<0.000000e+00> : vector<512x128xf32>
    %39 = tpu.matmul %36, %38, %cst_27 {dimension_numbers = #tpu.dot_dimension_numbers<[1], [0], [0], [1], [0, 0, 1, 1], [], []>} : vector<512x128xbf16>, vector<128x128xbf16>, vector<512x128xf32> -> vector<512x128xf32>
    %c4 = arith.constant 4 : index
    %c0_28 = arith.constant 0 : index
    %40 = vector.load %arg4[%c4, %c0_28] : memref<8x128xf32, #tpu.memory_space<vmem>>, vector<1x128xf32>
    %41 = vector.broadcast %40 : vector<1x128xf32> to vector<512x128xf32>
    %42 = arith.addf %39, %41 : vector<512x128xf32>
    %cst_29 = arith.constant 0.000000e+00 : f32
    %43 = vector.broadcast %cst_29 : f32 to vector<512x128xf32>
    %44 = arith.maximumf %42, %43 : vector<512x128xf32>
    %45 = arith.truncf %44 : vector<512x128xf32> to vector<512x128xbf16>
    %c4_30 = arith.constant 4 : index
    %c0_31 = arith.constant 0 : index
    %c0_32 = arith.constant 0 : index
    %46 = vector.load %arg3[%c4_30, %c0_31, %c0_32] : memref<7x128x128xbf16, #tpu.memory_space<vmem>>, vector<1x128x128xbf16>
    %47 = vector.shape_cast %46 : vector<1x128x128xbf16> to vector<128x128xbf16>
    %cst_33 = arith.constant dense<0.000000e+00> : vector<512x128xf32>
    %48 = tpu.matmul %45, %47, %cst_33 {dimension_numbers = #tpu.dot_dimension_numbers<[1], [0], [0], [1], [0, 0, 1, 1], [], []>} : vector<512x128xbf16>, vector<128x128xbf16>, vector<512x128xf32> -> vector<512x128xf32>
    %c5 = arith.constant 5 : index
    %c0_34 = arith.constant 0 : index
    %49 = vector.load %arg4[%c5, %c0_34] : memref<8x128xf32, #tpu.memory_space<vmem>>, vector<1x128xf32>
    %50 = vector.broadcast %49 : vector<1x128xf32> to vector<512x128xf32>
    %51 = arith.addf %48, %50 : vector<512x128xf32>
    %cst_35 = arith.constant 0.000000e+00 : f32
    %52 = vector.broadcast %cst_35 : f32 to vector<512x128xf32>
    %53 = arith.maximumf %51, %52 : vector<512x128xf32>
    %54 = arith.truncf %53 : vector<512x128xf32> to vector<512x128xbf16>
    %c5_36 = arith.constant 5 : index
    %c0_37 = arith.constant 0 : index
    %c0_38 = arith.constant 0 : index
    %55 = vector.load %arg3[%c5_36, %c0_37, %c0_38] : memref<7x128x128xbf16, #tpu.memory_space<vmem>>, vector<1x128x128xbf16>
    %56 = vector.shape_cast %55 : vector<1x128x128xbf16> to vector<128x128xbf16>
    %cst_39 = arith.constant dense<0.000000e+00> : vector<512x128xf32>
    %57 = tpu.matmul %54, %56, %cst_39 {dimension_numbers = #tpu.dot_dimension_numbers<[1], [0], [0], [1], [0, 0, 1, 1], [], []>} : vector<512x128xbf16>, vector<128x128xbf16>, vector<512x128xf32> -> vector<512x128xf32>
    %c6 = arith.constant 6 : index
    %c0_40 = arith.constant 0 : index
    %58 = vector.load %arg4[%c6, %c0_40] : memref<8x128xf32, #tpu.memory_space<vmem>>, vector<1x128xf32>
    %59 = vector.broadcast %58 : vector<1x128xf32> to vector<512x128xf32>
    %60 = arith.addf %57, %59 : vector<512x128xf32>
    %cst_41 = arith.constant 0.000000e+00 : f32
    %61 = vector.broadcast %cst_41 : f32 to vector<512x128xf32>
    %62 = arith.maximumf %60, %61 : vector<512x128xf32>
    %63 = arith.truncf %62 : vector<512x128xf32> to vector<512x128xbf16>
    %c6_42 = arith.constant 6 : index
    %c0_43 = arith.constant 0 : index
    %c0_44 = arith.constant 0 : index
    %64 = vector.load %arg3[%c6_42, %c0_43, %c0_44] : memref<7x128x128xbf16, #tpu.memory_space<vmem>>, vector<1x128x128xbf16>
    %65 = vector.shape_cast %64 : vector<1x128x128xbf16> to vector<128x128xbf16>
    %cst_45 = arith.constant dense<0.000000e+00> : vector<512x128xf32>
    %66 = tpu.matmul %63, %65, %cst_45 {dimension_numbers = #tpu.dot_dimension_numbers<[1], [0], [0], [1], [0, 0, 1, 1], [], []>} : vector<512x128xbf16>, vector<128x128xbf16>, vector<512x128xf32> -> vector<512x128xf32>
    %c7 = arith.constant 7 : index
    %c0_46 = arith.constant 0 : index
    %67 = vector.load %arg4[%c7, %c0_46] : memref<8x128xf32, #tpu.memory_space<vmem>>, vector<1x128xf32>
    %68 = vector.broadcast %67 : vector<1x128xf32> to vector<512x128xf32>
    %69 = arith.addf %66, %68 : vector<512x128xf32>
    %70 = arith.truncf %69 : vector<512x128xf32> to vector<512x128xbf16>
    %c0_47 = arith.constant 0 : index
    %c0_48 = arith.constant 0 : index
    %71 = vector.load %arg5[%c0_47, %c0_48] : memref<512x128xbf16, #tpu.memory_space<vmem>>, vector<512x128xbf16>
    tpu.vector_store %arg5[%c0_47, %c0_48], %70 {strides = array<i32>} : memref<512x128xbf16, #tpu.memory_space<vmem>>, vector<512x128xbf16>,
    return
  }
  func.func @transform_0(%arg0: i32) -> (i32, i32) {
    %c0_i32 = arith.constant 0 : i32
    %c0_i32_0 = arith.constant 0 : i32
    return %arg0, %c0_i32 : i32, i32
  }
  func.func @transform_1(%arg0: i32) -> (i32, i32) {
    %c0_i32 = arith.constant 0 : i32
    %c0_i32_0 = arith.constant 0 : i32
    %c0_i32_1 = arith.constant 0 : i32
    return %c0_i32, %c0_i32_0 : i32, i32
  }
  func.func @transform_2(%arg0: i32) -> (i32, i32, i32) {
    %c0_i32 = arith.constant 0 : i32
    %c0_i32_0 = arith.constant 0 : i32
    %c0_i32_1 = arith.constant 0 : i32
    %c0_i32_2 = arith.constant 0 : i32
    return %c0_i32, %c0_i32_0, %c0_i32_1 : i32, i32, i32
  }
  func.func @transform_3(%arg0: i32) -> (i32, i32) {
    %c0_i32 = arith.constant 0 : i32
    %c0_i32_0 = arith.constant 0 : i32
    %c0_i32_1 = arith.constant 0 : i32
    return %c0_i32, %c0_i32_0 : i32, i32
  }
  func.func @transform_4(%arg0: i32) -> (i32, i32) {
    %c0_i32 = arith.constant 0 : i32
    %c0_i32_0 = arith.constant 0 : i32
    return %arg0, %c0_i32 : i32, i32
  }
}

</mosaic_0001>

<llo_original>
// kernel: tpu_custom_call.1
$region0: #{tpu_custom_call.1}
  #allocation0 [shape = 'u32[]', space=smem, size = 0x4, offset = 0x4, fixed_abs, tag = 'smem constant byte address 0x4 - core index']
  #allocation1 [shape = 'u32[144,128]{1,0:T(1,128)}', space=vmem, size = 0x12000, scoped, tag = 'internal scratch']
  %s0 = inlined_call_operand.vmem [shape: f32[1024,32], index: 0, kind: input, shape index: {}]
  %s1 = inlined_call_operand.vmem [shape: bf16[32,128], index: 1, kind: input, shape index: {}]
  %s2 = inlined_call_operand.vmem [shape: bf16[7,128,128], index: 2, kind: input, shape index: {}]
  %s3 = inlined_call_operand.vmem [shape: f32[8,128], index: 3, kind: input, shape index: {}]
  %s4 = inlined_call_operand.hbm [shape: bf16[1024,128], index: 4, kind: output, shape index: {}]
  %s5 = sld [smem:[#allocation0]]
  $region49: #{tpu_custom_call.1} parent=0
    _
  %s7 = ssub.s32 1, %s5
  %s8 = scalar_select 0, %s7, %s5
  $region1: #{tpu_custom_call.1} parent=0
    #allocation2 [shape = 'u8[262144]{0}', space=vmem, size = 0x40000, scoped, tag = 'output window, operand 0']
    #allocation3 [shape = 's32[2]{0}', space=sflag, size = 0x8, scoped, tag = 'scoped memory for tpu_custom_call.1']
    %9 = vsyncpa [#allocation3], 0
    %s10 = scalar_lea.sflag [#allocation3], 1
    %11 = vsyncpa %s10, 0
    loop: start=0, step=1, limit=4
    $region2: #{tpu_custom_call.1} parent=1 // loop_pre_header
      _
    $region3: #{tpu_custom_call.1} parent=1 // loop_header
      %s13 = sphi 0, %s17
      %p14 = scmp.ge.s32.totalorder %s13, 4
      %s23 = sphi 0, %s25
      %s26 = sphi 0, %s23
      %s27 = sphi 0, %s26
      %s43 = sphi 0, %s27
      %s47 = sphi 0, %s47
      %s49 = sphi 0, %s47
      %s50 = sphi 0, %s49
      %s64 = sphi 0, %s50
      %s68 = sphi 0, %s68
      %s70 = sphi 0, %s68
      %s71 = sphi 0, %s70
      %s85 = sphi 0, %s71
      %s89 = sphi 0, %s89
      %s91 = sphi 0, %s89
      %s92 = sphi 0, %s91
      %s106 = sphi 0, %s92
      %s112 = sphi 0, %s114
      %s115 = sphi 0, %s112
      %s116 = sphi 0, %s115
      %s132 = sphi 0, %s116
    $region4: #{tpu_custom_call.1} parent=1 // loop_header_branch
      %16 = sbr.rel (%p14) target = $region8
    $region5: #{tpu_custom_call.1} parent=1 // loop_body
      %s18 = ssub.s32 %s13, 1
      %s19 = ssub.s32 %s13, 2
      %s20 = sadd.s32 %s13, 1
      %s21 = ssub.s32 %s13, %s20
      %p22 = scmp.eq.s32.totalorder %s21, 0
      %s24 = sadd.s32 %s23, 1
      %s25 = scalar_select %p22, %s23, %s24
      %p28 = pneg %p22
      %p29 = scmp.eq.s32.totalorder %s13, 1
      %p30 = por %p28, %p29
      %p31 = scmp.ne.s32.totalorder %s23, %s26
      %p32 = scmp.eq.s32.totalorder %s13, 0
      %p33 = por %p31, %p32
      %p34 = scmp.ne.s32.totalorder %s23, %s26
      %p35 = scmp.eq.s32.totalorder %s18, 1
      %p36 = por %p34, %p35
      %p37 = scmp.ne.s32.totalorder %s26, %s27
      %p38 = scmp.eq.s32.totalorder %s18, 0
      %p39 = por %p37, %p38
      %p40 = scmp.ne.s32.totalorder %s26, %s27
      %p41 = scmp.eq.s32.totalorder %s19, 1
      %p42 = por %p40, %p41
      %p44 = scmp.ne.s32.totalorder %s27, %s43
      %p45 = scmp.eq.s32.totalorder %s19, 0
      %p46 = por %p44, %p45
      %s48 = sadd.s32 %s47, 1
      %p51 = scmp.eq.s32.totalorder %s13, 1
      %p52 = scmp.ne.s32.totalorder %s47, %s49
      %p53 = scmp.eq.s32.totalorder %s13, 0
      %p54 = por %p52, %p53
      %p55 = scmp.ne.s32.totalorder %s47, %s49
      %p56 = scmp.eq.s32.totalorder %s18, 1
      %p57 = por %p55, %p56
      %p58 = scmp.ne.s32.totalorder %s49, %s50
      %p59 = scmp.eq.s32.totalorder %s18, 0
      %p60 = por %p58, %p59
      %p61 = scmp.ne.s32.totalorder %s49, %s50
      %p62 = scmp.eq.s32.totalorder %s19, 1
      %p63 = por %p61, %p62
      %p65 = scmp.ne.s32.totalorder %s50, %s64
      %p66 = scmp.eq.s32.totalorder %s19, 0
      %p67 = por %p65, %p66
      %s69 = sadd.s32 %s68, 1
      %p72 = scmp.eq.s32.totalorder %s13, 1
      %p73 = scmp.ne.s32.totalorder %s68, %s70
      %p74 = scmp.eq.s32.totalorder %s13, 0
      %p75 = por %p73, %p74
      %p76 = scmp.ne.s32.totalorder %s68, %s70
      %p77 = scmp.eq.s32.totalorder %s18, 1
      %p78 = por %p76, %p77
      %p79 = scmp.ne.s32.totalorder %s70, %s71
      %p80 = scmp.eq.s32.totalorder %s18, 0
      %p81 = por %p79, %p80
      %p82 = scmp.ne.s32.totalorder %s70, %s71
      %p83 = scmp.eq.s32.totalorder %s19, 1
      %p84 = por %p82, %p83
      %p86 = scmp.ne.s32.totalorder %s71, %s85
      %p87 = scmp.eq.s32.totalorder %s19, 0
      %p88 = por %p86, %p87
      %s90 = sadd.s32 %s89, 1
      %p93 = scmp.eq.s32.totalorder %s13, 1
      %p94 = scmp.ne.s32.totalorder %s89, %s91
      %p95 = scmp.eq.s32.totalorder %s13, 0
      %p96 = por %p94, %p95
      %p97 = scmp.ne.s32.totalorder %s89, %s91
      %p98 = scmp.eq.s32.totalorder %s18, 1
      %p99 = por %p97, %p98
      %p100 = scmp.ne.s32.totalorder %s91, %s92
      %p101 = scmp.eq.s32.totalorder %s18, 0
      %p102 = por %p100, %p101
      %p103 = scmp.ne.s32.totalorder %s91, %s92
      %p104 = scmp.eq.s32.totalorder %s19, 1
      %p105 = por %p103, %p104
      %p107 = scmp.ne.s32.totalorder %s92, %s106
      %p108 = scmp.eq.s32.totalorder %s19, 0
      %p109 = por %p107, %p108
      %s110 = ssub.s32 %s13, %s20
      %p111 = scmp.eq.s32.totalorder %s110, 0
      %s113 = sadd.s32 %s112, 1
      %s114 = scalar_select %p111, %s112, %s113
      %p117 = pneg %p111
      %p118 = scmp.eq.s32.totalorder %s13, 1
      %p119 = por %p117, %p118
      %p120 = scmp.ne.s32.totalorder %s112, %s115
      %p121 = scmp.eq.s32.totalorder %s13, 0
      %p122 = por %p120, %p121
      %p123 = scmp.ne.s32.totalorder %s112, %s115
      %p124 = scmp.eq.s32.totalorder %s18, 1
      %p125 = por %p123, %p124
      %p126 = scmp.ne.s32.totalorder %s115, %s116
      %p127 = scmp.eq.s32.totalorder %s18, 0
      %p128 = por %p126, %p127
      %p129 = scmp.ne.s32.totalorder %s115, %s116
      %p130 = scmp.eq.s32.totalorder %s19, 1
      %p131 = por %p129, %p130
      %p133 = scmp.ne.s32.totalorder %s116, %s132
      %p134 = scmp.eq.s32.totalorder %s19, 0
      %p135 = por %p133, %p134
      %p136 = scmp.le.s32.totalorder 1, %s13
      %p137 = scmp.lt.s32.totalorder %s13, 3
      %p138 = pnand %p136, %p137
      %p139 = pneg %p138
      // Predicated region
      $region9: #{tpu_custom_call.1} parent=5 // pred_check
        _
      $region10: #{tpu_custom_call.1} parent=5 // pred_check_branch
        %141 = sbr.rel (%p138) target = $region12
      $region11: #{tpu_custom_call.1} parent=5 // pred_region
        %s142 = ssub.s32 %s13, 1
        // Predicated region
        $region13: #{tpu_custom_call.1} parent=11 // pred_check
          %p143 = pneg %p60
        $region14: #{tpu_custom_call.1} parent=11 // pred_check_branch
          %145 = sbr.rel (%p143) target = $region16
        $region15: #{tpu_custom_call.1} parent=11 // pred_region
          _
        $region16: #{tpu_custom_call.1} parent=11 // pred_fallthru
          _
        // Predicated region
        $region17: #{tpu_custom_call.1} parent=11 // pred_check
          %p146 = pneg %p81
        $region18: #{tpu_custom_call.1} parent=11 // pred_check_branch
          %148 = sbr.rel (%p146) target = $region20
        $region19: #{tpu_custom_call.1} parent=11 // pred_region
          _
        $region20: #{tpu_custom_call.1} parent=11 // pred_fallthru
          _
        // Predicated region
        $region21: #{tpu_custom_call.1} parent=11 // pred_check
          %p149 = pneg %p102
        $region22: #{tpu_custom_call.1} parent=11 // pred_check_branch
          %151 = sbr.rel (%p149) target = $region24
        $region23: #{tpu_custom_call.1} parent=11 // pred_region
          _
        $region24: #{tpu_custom_call.1} parent=11 // pred_fallthru
          _
      $region12: #{tpu_custom_call.1} parent=5 // pred_fallthru
        _
      %p152 = scmp.lt.s32.totalorder %s13, 2
      // Predicated region
      $region25: #{tpu_custom_call.1} parent=5 // pred_check
        %p153 = pneg %p152
      $region26: #{tpu_custom_call.1} parent=5 // pred_check_branch
        %155 = sbr.rel (%p153) target = $region28
      $region27: #{tpu_custom_call.1} parent=5 // pred_region
        // Predicated region
        $region29: #{tpu_custom_call.1} parent=27 // pred_check
          %p156 = pneg %p33
        $region30: #{tpu_custom_call.1} parent=27 // pred_check_branch
          %158 = sbr.rel (%p156) target = $region32
        $region31: #{tpu_custom_call.1} parent=27 // pred_region
          %s159 = smul.u32 64, %s13
          %p160 = scmp.lt.s32.totalorder %s159, 127
          %s161 = scalar_select %p160, %s159, 127
          %s162 = smul.addr %s161, 8
          %s163 = scalar_lea.vmem %s0, %s162
          %s164 = smul.u32 64, %s13
        $region32: #{tpu_custom_call.1} parent=27 // pred_fallthru
          _
      $region28: #{tpu_custom_call.1} parent=5 // pred_fallthru
        _
      %p165 = scmp.le.s32.totalorder 1, %s13
      %p166 = scmp.lt.s32.totalorder %s13, 3
      %p167 = pnand %p165, %p166
      %p168 = pneg %p167
      // Predicated region
      $region33: #{tpu_custom_call.1} parent=5 // pred_check
        _
      $region34: #{tpu_custom_call.1} parent=5 // pred_check_branch
        %170 = sbr.rel (%p167) target = $region36
      $region35: #{tpu_custom_call.1} parent=5 // pred_region
        %s171 = ssub.s32 %s13, 1
        %s172 = smul.u32 64, %s18
        %p173 = scmp.lt.s32.totalorder %s172, 127
        %s174 = scalar_select %p173, %s172, 127
        %s175 = smul.addr %s174, 8
        %s176 = scalar_lea.vmem %s0, %s175
        %p177 = pneg %p39
        %p178 = pneg %p36
        %p179 = pneg %p60
        %p180 = pneg %p57
        %p181 = pneg %p81
        %p182 = pneg %p78
        %p183 = pneg %p102
        %p184 = pneg %p99
        %p185 = pneg %p128
        %p186 = pneg %p125
        %s187 = sand.u32 %s115, 1
        %s188 = scalar_lea.sflag [#allocation3], %s187
        %s189 = sand.u32 %s115, 1
        %s190 = smul.addr %s189, 256
        %s191 = scalar_lea.vmem [#allocation2], %s190
        %s192 = smul.u32 64, %s18
        %p193 = scmp.lt.s32.totalorder %s192, 127
        %s194 = scalar_select %p193, %s192, 127
        %s195 = smul.addr %s194, 8
        %s196 = scalar_lea.vmem %s0, %s195
        %s197 = smul.u32 64, %s18
        %s198 = smul.u32 64, %s18
        %v200 = vld [vmem:[%s196] sm:$0xff]
        %v201 = vld [vmem:[%s196 + $0x8] sm:$0xff]
        %v202 = vld [vmem:[%s196 + $0x10] sm:$0xff]
        %v203 = vld [vmem:[%s196 + $0x18] sm:$0xff]
        %v204 = vld [vmem:[%s196 + $0x20] sm:$0xff]
        %v205 = vld [vmem:[%s196 + $0x28] sm:$0xff]
        %v206 = vld [vmem:[%s196 + $0x30] sm:$0xff]
        %v207 = vld [vmem:[%s196 + $0x38] sm:$0xff]
        %v208 = vld [vmem:[%s196 + $0x40] sm:$0xff]
        %v209 = vld [vmem:[%s196 + $0x48] sm:$0xff]
        %v210 = vld [vmem:[%s196 + $0x50] sm:$0xff]
        %v211 = vld [vmem:[%s196 + $0x58] sm:$0xff]
        %v212 = vld [vmem:[%s196 + $0x60] sm:$0xff]
        %v213 = vld [vmem:[%s196 + $0x68] sm:$0xff]
        %v214 = vld [vmem:[%s196 + $0x70] sm:$0xff]
        %v215 = vld [vmem:[%s196 + $0x78] sm:$0xff]
        %v216 = vld [vmem:[%s196 + $0x80] sm:$0xff]
        %v217 = vld [vmem:[%s196 + $0x88] sm:$0xff]
        %v218 = vld [vmem:[%s196 + $0x90] sm:$0xff]
        %v219 = vld [vmem:[%s196 + $0x98] sm:$0xff]
        %v220 = vld [vmem:[%s196 + $0xa0] sm:$0xff]
        %v221 = vld [vmem:[%s196 + $0xa8] sm:$0xff]
        %v222 = vld [vmem:[%s196 + $0xb0] sm:$0xff]
        %v223 = vld [vmem:[%s196 + $0xb8] sm:$0xff]
        %v224 = vld [vmem:[%s196 + $0xc0] sm:$0xff]
        %v225 = vld [vmem:[%s196 + $0xc8] sm:$0xff]
        %v226 = vld [vmem:[%s196 + $0xd0] sm:$0xff]
        %v227 = vld [vmem:[%s196 + $0xd8] sm:$0xff]
        %v228 = vld [vmem:[%s196 + $0xe0] sm:$0xff]
        %v229 = vld [vmem:[%s196 + $0xe8] sm:$0xff]
        %v230 = vld [vmem:[%s196 + $0xf0] sm:$0xff]
        %v231 = vld [vmem:[%s196 + $0xf8] sm:$0xff]
        %v232 = vld [vmem:[%s196 + $0x100] sm:$0xff]
        %v233 = vld [vmem:[%s196 + $0x108] sm:$0xff]
        %v234 = vld [vmem:[%s196 + $0x110] sm:$0xff]
        %v235 = vld [vmem:[%s196 + $0x118] sm:$0xff]
        %v236 = vld [vmem:[%s196 + $0x120] sm:$0xff]
        %v237 = vld [vmem:[%s196 + $0x128] sm:$0xff]
        %v238 = vld [vmem:[%s196 + $0x130] sm:$0xff]
        %v239 = vld [vmem:[%s196 + $0x138] sm:$0xff]
        %v240 = vld [vmem:[%s196 + $0x140] sm:$0xff]
        %v241 = vld [vmem:[%s196 + $0x148] sm:$0xff]
        %v242 = vld [vmem:[%s196 + $0x150] sm:$0xff]
        %v243 = vld [vmem:[%s196 + $0x158] sm:$0xff]
        %v244 = vld [vmem:[%s196 + $0x160] sm:$0xff]
        %v245 = vld [vmem:[%s196 + $0x168] sm:$0xff]
        %v246 = vld [vmem:[%s196 + $0x170] sm:$0xff]
        %v247 = vld [vmem:[%s196 + $0x178] sm:$0xff]
        %v248 = vld [vmem:[%s196 + $0x180] sm:$0xff]
        %v249 = vld [vmem:[%s196 + $0x188] sm:$0xff]
        %v250 = vld [vmem:[%s196 + $0x190] sm:$0xff]
        %v251 = vld [vmem:[%s196 + $0x198] sm:$0xff]
        %v252 = vld [vmem:[%s196 + $0x1a0] sm:$0xff]
        %v253 = vld [vmem:[%s196 + $0x1a8] sm:$0xff]
        %v254 = vld [vmem:[%s196 + $0x1b0] sm:$0xff]
        %v255 = vld [vmem:[%s196 + $0x1b8] sm:$0xff]
        %v256 = vld [vmem:[%s196 + $0x1c0] sm:$0xff]
        %v257 = vld [vmem:[%s196 + $0x1c8] sm:$0xff]
        %v258 = vld [vmem:[%s196 + $0x1d0] sm:$0xff]
        %v259 = vld [vmem:[%s196 + $0x1d8] sm:$0xff]
        %v260 = vld [vmem:[%s196 + $0x1e0] sm:$0xff]
        %v261 = vld [vmem:[%s196 + $0x1e8] sm:$0xff]
        %v262 = vld [vmem:[%s196 + $0x1f0] sm:$0xff]
        %v263 = vld [vmem:[%s196 + $0x1f8] sm:$0xff]
        %v264 = vpack.c.bf16 %v201, %v200
        %v265 = vpack.c.bf16 %v203, %v202
        %v266 = vpack.c.bf16 %v205, %v204
        %v267 = vpack.c.bf16 %v207, %v206
        %v268 = vpack.c.bf16 %v209, %v208
        %v269 = vpack.c.bf16 %v211, %v210
        %v270 = vpack.c.bf16 %v213, %v212
        %v271 = vpack.c.bf16 %v215, %v214
        %v272 = vpack.c.bf16 %v217, %v216
        %v273 = vpack.c.bf16 %v219, %v218
        %v274 = vpack.c.bf16 %v221, %v220
        %v275 = vpack.c.bf16 %v223, %v222
        %v276 = vpack.c.bf16 %v225, %v224
        %v277 = vpack.c.bf16 %v227, %v226
        %v278 = vpack.c.bf16 %v229, %v228
        %v279 = vpack.c.bf16 %v231, %v230
        %v280 = vpack.c.bf16 %v233, %v232
        %v281 = vpack.c.bf16 %v235, %v234
        %v282 = vpack.c.bf16 %v237, %v236
        %v283 = vpack.c.bf16 %v239, %v238
        %v284 = vpack.c.bf16 %v241, %v240
        %v285 = vpack.c.bf16 %v243, %v242
        %v286 = vpack.c.bf16 %v245, %v244
        %v287 = vpack.c.bf16 %v247, %v246
        %v288 = vpack.c.bf16 %v249, %v248
        %v289 = vpack.c.bf16 %v251, %v250
        %v290 = vpack.c.bf16 %v253, %v252
        %v291 = vpack.c.bf16 %v255, %v254
        %v292 = vpack.c.bf16 %v257, %v256
        %v293 = vpack.c.bf16 %v259, %v258
        %v294 = vpack.c.bf16 %v261, %v260
        %v295 = vpack.c.bf16 %v263, %v262
        %v296 = vld [vmem:[%s1] sm:$0xf]
        %v297 = vld [vmem:[%s1 + $0x4] sm:$0xf]
        %v298 = vld [vmem:[%s1 + $0x8] sm:$0xf]
        %v299 = vld [vmem:[%s1 + $0xc] sm:$0xf]
        %v300 = vld [vmem:[%s3] sm:$0x1]
        %v301 = vlaneseq
        %v302 = vshrl.u32 %v301, 7
        %v303 = vsub.s32 0, %v302
        %v304 = vrot.slane %v300, %v303
        %v309 = vunpack.c.l.b16 %v296
        %v310 = vunpack.c.l.b16 %v297
        %v311 = vunpack.c.l.b16 %v298
        %v312 = vunpack.c.l.b16 %v299
        %v313 = vpack.c.b16 %v310, %v309
        %v314 = vpack.c.b16 %v312, %v311
        %vm317 = vcmask 261120
        %v319 = vsel %vm317, %v264, 0
        %v322 = vsel %vm317, %v265, 0
        %v325 = vsel %vm317, %v266, 0
        %v328 = vsel %vm317, %v267, 0
        %v331 = vsel %vm317, %v268, 0
        %v334 = vsel %vm317, %v269, 0
        %v337 = vsel %vm317, %v270, 0
        %v340 = vsel %vm317, %v271, 0
        %v343 = vsel %vm317, %v272, 0
        %v346 = vsel %vm317, %v273, 0
        %v349 = vsel %vm317, %v274, 0
        %v352 = vsel %vm317, %v275, 0
        %v355 = vsel %vm317, %v276, 0
        %v358 = vsel %vm317, %v277, 0
        %v361 = vsel %vm317, %v278, 0
        %v364 = vsel %vm317, %v279, 0
        %v367 = vsel %vm317, %v280, 0
        %v370 = vsel %vm317, %v281, 0
        %v373 = vsel %vm317, %v282, 0
        %v376 = vsel %vm317, %v283, 0
        %v379 = vsel %vm317, %v284, 0
        %v382 = vsel %vm317, %v285, 0
        %v385 = vsel %vm317, %v286, 0
        %v388 = vsel %vm317, %v287, 0
        %v391 = vsel %vm317, %v288, 0
        %v394 = vsel %vm317, %v289, 0
        %v397 = vsel %vm317, %v290, 0
        %v400 = vsel %vm317, %v291, 0
        %v403 = vsel %vm317, %v292, 0
        %v406 = vsel %vm317, %v293, 0
        %v409 = vsel %vm317, %v294, 0
        %v412 = vsel %vm317, %v295, 0
        %414 = vmatprep.subr.bf16.mxu0 0
        %415 = vmatpush1.bf16.msra.mxu0 0
        %416 = vmatprep.subr.bf16.mxu0 0
        %417 = vmatpush1.bf16.msra.mxu0 0
        %418 = vmatprep.subr.bf16.mxu0 0
        %419 = vmatpush1.bf16.msra.mxu0 0
        %420 = vmatprep.subr.bf16.mxu0 0
        %421 = vmatpush1.bf16.msra.mxu0 0
        %422 = vmatprep.subr.bf16.mxu0 0
        %423 = vmatpush1.bf16.msra.mxu0 0
        %424 = vmatprep.subr.bf16.mxu0 0
        %425 = vmatpush1.bf16.msra.mxu0 0
        %426 = vmatprep.subr.bf16.mxu0 0
        %427 = vmatpush1.bf16.msra.mxu0 %v314
        %428 = vmatprep.subr.bf16.mxu0 0
        %429 = vmatpush1.bf16.msra.mxu0 %v313
        %430 = vmatprep.subr.bf16.mxu0 0
        %431 = vmatpush2.bf16.msra.mxu0 0
        %432 = vmatprep.subr.bf16.mxu0 0
        %433 = vmatpush2.bf16.msra.mxu0 0
        %434 = vmatprep.subr.bf16.mxu0 0
        %435 = vmatpush2.bf16.msra.mxu0 0
        %436 = vmatprep.subr.bf16.mxu0 0
        %437 = vmatpush2.bf16.msra.mxu0 0
        %438 = vmatprep.subr.bf16.mxu0 0
        %439 = vmatpush2.bf16.msra.mxu0 0
        %440 = vmatprep.subr.bf16.mxu0 0
        %441 = vmatpush2.bf16.msra.mxu0 0
        %442 = vmatprep.subr.bf16.mxu0 0
        %443 = vmatpush2.bf16.msra.mxu0 0
        %444 = vmatprep.subr.bf16.mxu0 0
        %445 = vmatpush2.bf16.msra.mxu0 0
        %446 = vmatprep.mubr.bf16.mxu0 0
        %447 = vmatmul.mubr.bf16.gmra.mxu0 %v319
        %v448 = vpop.f32.mrf.mxu0
        %v449 = vadd.f32 %v304, %v448
        %v450 = vpop.f32.mrf.mxu0
        %v451 = vpop.f32.mrf.mxu0
        %v452 = vadd.f32 %v304, %v451
        %v453 = vpop.f32.mrf.mxu0
        %454 = vmatprep.mubr.bf16.mxu0 0
        %455 = vmatmul.mubr.bf16.gmra.mxu0 %v322
        %v456 = vpop.f32.mrf.mxu0
        %v457 = vadd.f32 %v304, %v456
        %v458 = vpop.f32.mrf.mxu0
        %v459 = vpop.f32.mrf.mxu0
        %v460 = vadd.f32 %v304, %v459
        %v461 = vpop.f32.mrf.mxu0
        %462 = vmatprep.mubr.bf16.mxu0 0
        %463 = vmatmul.mubr.bf16.gmra.mxu0 %v325
        %v464 = vpop.f32.mrf.mxu0
        %v465 = vadd.f32 %v304, %v464
        %v466 = vpop.f32.mrf.mxu0
        %v467 = vpop.f32.mrf.mxu0
        %v468 = vadd.f32 %v304, %v467
        %v469 = vpop.f32.mrf.mxu0
        %470 = vmatprep.mubr.bf16.mxu0 0
        %471 = vmatmul.mubr.bf16.gmra.mxu0 %v328
        %v472 = vpop.f32.mrf.mxu0
        %v473 = vadd.f32 %v304, %v472
        %v474 = vpop.f32.mrf.mxu0
        %v475 = vpop.f32.mrf.mxu0
        %v476 = vadd.f32 %v304, %v475
        %v477 = vpop.f32.mrf.mxu0
        %478 = vmatprep.mubr.bf16.mxu0 0
        %479 = vmatmul.mubr.bf16.gmra.mxu0 %v331
        %v480 = vpop.f32.mrf.mxu0
        %v481 = vadd.f32 %v304, %v480
        %v482 = vpop.f32.mrf.mxu0
        %v483 = vpop.f32.mrf.mxu0
        %v484 = vadd.f32 %v304, %v483
        %v485 = vpop.f32.mrf.mxu0
        %486 = vmatprep.mubr.bf16.mxu0 0
        %487 = vmatmul.mubr.bf16.gmra.mxu0 %v334
        %v488 = vpop.f32.mrf.mxu0
        %v489 = vadd.f32 %v304, %v488
        %v490 = vpop.f32.mrf.mxu0
        %v491 = vpop.f32.mrf.mxu0
        %v492 = vadd.f32 %v304, %v491
        %v493 = vpop.f32.mrf.mxu0
        %494 = vmatprep.mubr.bf16.mxu0 0
        %495 = vmatmul.mubr.bf16.gmra.mxu0 %v337
        %v496 = vpop.f32.mrf.mxu0
        %v497 = vadd.f32 %v304, %v496
        %v498 = vpop.f32.mrf.mxu0
        %v499 = vpop.f32.mrf.mxu0
        %v500 = vadd.f32 %v304, %v499
        %v501 = vpop.f32.mrf.mxu0
        %502 = vmatprep.mubr.bf16.mxu0 0
        %503 = vmatmul.mubr.bf16.gmra.mxu0 %v340
        %v504 = vpop.f32.mrf.mxu0
        %v505 = vadd.f32 %v304, %v504
        %v506 = vpop.f32.mrf.mxu0
        %v507 = vpop.f32.mrf.mxu0
        %v508 = vadd.f32 %v304, %v507
        %v509 = vpop.f32.mrf.mxu0
        %510 = vmatprep.mubr.bf16.mxu0 0
        %511 = vmatmul.mubr.bf16.gmra.mxu0 %v343
        %v512 = vpop.f32.mrf.mxu0
        %v513 = vadd.f32 %v304, %v512
        %v514 = vpop.f32.mrf.mxu0
        %v515 = vpop.f32.mrf.mxu0
        %v516 = vadd.f32 %v304, %v515
        %v517 = vpop.f32.mrf.mxu0
        %518 = vmatprep.mubr.bf16.mxu0 0
        %519 = vmatmul.mubr.bf16.gmra.mxu0 %v346
        %v520 = vpop.f32.mrf.mxu0
        %v521 = vadd.f32 %v304, %v520
        %v522 = vpop.f32.mrf.mxu0
        %v523 = vpop.f32.mrf.mxu0
        %v524 = vadd.f32 %v304, %v523
        %v525 = vpop.f32.mrf.mxu0
        %526 = vmatprep.mubr.bf16.mxu0 0
        %527 = vmatmul.mubr.bf16.gmra.mxu0 %v349
        %v528 = vpop.f32.mrf.mxu0
        %v529 = vadd.f32 %v304, %v528
        %v530 = vpop.f32.mrf.mxu0
        %v531 = vpop.f32.mrf.mxu0
        %v532 = vadd.f32 %v304, %v531
        %v533 = vpop.f32.mrf.mxu0
        %534 = vmatprep.mubr.bf16.mxu0 0
        %535 = vmatmul.mubr.bf16.gmra.mxu0 %v352
        %v536 = vpop.f32.mrf.mxu0
        %v537 = vadd.f32 %v304, %v536
        %v538 = vpop.f32.mrf.mxu0
        %v539 = vpop.f32.mrf.mxu0
        %v540 = vadd.f32 %v304, %v539
        %v541 = vpop.f32.mrf.mxu0
        %542 = vmatprep.mubr.bf16.mxu0 0
        %543 = vmatmul.mubr.bf16.gmra.mxu0 %v355
        %v544 = vpop.f32.mrf.mxu0
        %v545 = vadd.f32 %v304, %v544
        %v546 = vpop.f32.mrf.mxu0
        %v547 = vpop.f32.mrf.mxu0
        %v548 = vadd.f32 %v304, %v547
        %v549 = vpop.f32.mrf.mxu0
        %550 = vmatprep.mubr.bf16.mxu0 0
        %551 = vmatmul.mubr.bf16.gmra.mxu0 %v358
        %v552 = vpop.f32.mrf.mxu0
        %v553 = vadd.f32 %v304, %v552
        %v554 = vpop.f32.mrf.mxu0
        %v555 = vpop.f32.mrf.mxu0
        %v556 = vadd.f32 %v304, %v555
        %v557 = vpop.f32.mrf.mxu0
        %558 = vmatprep.mubr.bf16.mxu0 0
        %559 = vmatmul.mubr.bf16.gmra.mxu0 %v361
        %v560 = vpop.f32.mrf.mxu0
        %v561 = vadd.f32 %v304, %v560
        %v562 = vpop.f32.mrf.mxu0
        %v563 = vpop.f32.mrf.mxu0
        %v564 = vadd.f32 %v304, %v563
        %v565 = vpop.f32.mrf.mxu0
        %566 = vmatprep.mubr.bf16.mxu0 0
        %567 = vmatmul.mubr.bf16.gmra.mxu0 %v364
        %v568 = vpop.f32.mrf.mxu0
        %v569 = vadd.f32 %v304, %v568
        %v570 = vpop.f32.mrf.mxu0
        %v571 = vpop.f32.mrf.mxu0
        %v572 = vadd.f32 %v304, %v571
        %v573 = vpop.f32.mrf.mxu0
        %574 = vmatprep.mubr.bf16.mxu0 0
        %575 = vmatmul.mubr.bf16.gmra.mxu0 %v367
        %v576 = vpop.f32.mrf.mxu0
        %v577 = vadd.f32 %v304, %v576
        %v578 = vpop.f32.mrf.mxu0
        %v579 = vpop.f32.mrf.mxu0
        %v580 = vadd.f32 %v304, %v579
        %v581 = vpop.f32.mrf.mxu0
        %582 = vmatprep.mubr.bf16.mxu0 0
        %583 = vmatmul.mubr.bf16.gmra.mxu0 %v370
        %v584 = vpop.f32.mrf.mxu0
        %v585 = vadd.f32 %v304, %v584
        %v586 = vpop.f32.mrf.mxu0
        %v587 = vpop.f32.mrf.mxu0
        %v588 = vadd.f32 %v304, %v587
        %v589 = vpop.f32.mrf.mxu0
        %590 = vmatprep.mubr.bf16.mxu0 0
        %591 = vmatmul.mubr.bf16.gmra.mxu0 %v373
        %v592 = vpop.f32.mrf.mxu0
        %v593 = vadd.f32 %v304, %v592
        %v594 = vpop.f32.mrf.mxu0
        %v595 = vpop.f32.mrf.mxu0
        %v596 = vadd.f32 %v304, %v595
        %v597 = vpop.f32.mrf.mxu0
        %598 = vmatprep.mubr.bf16.mxu0 0
        %599 = vmatmul.mubr.bf16.gmra.mxu0 %v376
        %v600 = vpop.f32.mrf.mxu0
        %v601 = vadd.f32 %v304, %v600
        %v602 = vpop.f32.mrf.mxu0
        %v603 = vpop.f32.mrf.mxu0
        %v604 = vadd.f32 %v304, %v603
        %v605 = vpop.f32.mrf.mxu0
        %606 = vmatprep.mubr.bf16.mxu0 0
        %607 = vmatmul.mubr.bf16.gmra.mxu0 %v379
        %v608 = vpop.f32.mrf.mxu0
        %v609 = vadd.f32 %v304, %v608
        %v610 = vpop.f32.mrf.mxu0
        %v611 = vpop.f32.mrf.mxu0
        %v612 = vadd.f32 %v304, %v611
        %v613 = vpop.f32.mrf.mxu0
        %614 = vmatprep.mubr.bf16.mxu0 0
        %615 = vmatmul.mubr.bf16.gmra.mxu0 %v382
        %v616 = vpop.f32.mrf.mxu0
        %v617 = vadd.f32 %v304, %v616
        %v618 = vpop.f32.mrf.mxu0
        %v619 = vpop.f32.mrf.mxu0
        %v620 = vadd.f32 %v304, %v619
        %v621 = vpop.f32.mrf.mxu0
        %622 = vmatprep.mubr.bf16.mxu0 0
        %623 = vmatmul.mubr.bf16.gmra.mxu0 %v385
        %v624 = vpop.f32.mrf.mxu0
        %v625 = vadd.f32 %v304, %v624
        %v626 = vpop.f32.mrf.mxu0
        %v627 = vpop.f32.mrf.mxu0
        %v628 = vadd.f32 %v304, %v627
        %v629 = vpop.f32.mrf.mxu0
        %630 = vmatprep.mubr.bf16.mxu0 0
        %631 = vmatmul.mubr.bf16.gmra.mxu0 %v388
        %v632 = vpop.f32.mrf.mxu0
        %v633 = vadd.f32 %v304, %v632
        %v634 = vpop.f32.mrf.mxu0
        %v635 = vpop.f32.mrf.mxu0
        %v636 = vadd.f32 %v304, %v635
        %v637 = vpop.f32.mrf.mxu0
        %638 = vmatprep.mubr.bf16.mxu0 0
        %639 = vmatmul.mubr.bf16.gmra.mxu0 %v391
        %v640 = vpop.f32.mrf.mxu0
        %v641 = vadd.f32 %v304, %v640
        %v642 = vpop.f32.mrf.mxu0
        %v643 = vpop.f32.mrf.mxu0
        %v644 = vadd.f32 %v304, %v643
        %v645 = vpop.f32.mrf.mxu0
        %646 = vmatprep.mubr.bf16.mxu0 0
        %647 = vmatmul.mubr.bf16.gmra.mxu0 %v394
        %v648 = vpop.f32.mrf.mxu0
        %v649 = vadd.f32 %v304, %v648
        %v650 = vpop.f32.mrf.mxu0
        %v651 = vpop.f32.mrf.mxu0
        %v652 = vadd.f32 %v304, %v651
        %v653 = vpop.f32.mrf.mxu0
        %654 = vmatprep.mubr.bf16.mxu0 0
        %655 = vmatmul.mubr.bf16.gmra.mxu0 %v397
        %v656 = vpop.f32.mrf.mxu0
        %v657 = vadd.f32 %v304, %v656
        %v658 = vpop.f32.mrf.mxu0
        %v659 = vpop.f32.mrf.mxu0
        %v660 = vadd.f32 %v304, %v659
        %v661 = vpop.f32.mrf.mxu0
        %662 = vmatprep.mubr.bf16.mxu0 0
        %663 = vmatmul.mubr.bf16.gmra.mxu0 %v400
        %v664 = vpop.f32.mrf.mxu0
        %v665 = vadd.f32 %v304, %v664
        %v666 = vpop.f32.mrf.mxu0
        %v667 = vpop.f32.mrf.mxu0
        %v668 = vadd.f32 %v304, %v667
        %v669 = vpop.f32.mrf.mxu0
        %670 = vmatprep.mubr.bf16.mxu0 0
        %671 = vmatmul.mubr.bf16.gmra.mxu0 %v403
        %v672 = vpop.f32.mrf.mxu0
        %v673 = vadd.f32 %v304, %v672
        %v674 = vpop.f32.mrf.mxu0
        %v675 = vpop.f32.mrf.mxu0
        %v676 = vadd.f32 %v304, %v675
        %v677 = vpop.f32.mrf.mxu0
        %678 = vmatprep.mubr.bf16.mxu0 0
        %679 = vmatmul.mubr.bf16.gmra.mxu0 %v406
        %v680 = vpop.f32.mrf.mxu0
        %v681 = vadd.f32 %v304, %v680
        %v682 = vpop.f32.mrf.mxu0
        %v683 = vpop.f32.mrf.mxu0
        %v684 = vadd.f32 %v304, %v683
        %v685 = vpop.f32.mrf.mxu0
        %686 = vmatprep.mubr.bf16.mxu0 0
        %687 = vmatmul.mubr.bf16.gmra.mxu0 %v409
        %v688 = vpop.f32.mrf.mxu0
        %v689 = vadd.f32 %v304, %v688
        %v690 = vpop.f32.mrf.mxu0
        %v691 = vpop.f32.mrf.mxu0
        %v692 = vadd.f32 %v304, %v691
        %v693 = vpop.f32.mrf.mxu0
        %694 = vmatprep.mubr.bf16.mxu0 0
        %695 = vmatmul.mubr.bf16.gmra.mxu0 %v412
        %v696 = vpop.f32.mrf.mxu0
        %v697 = vadd.f32 %v304, %v696
        %v698 = vpop.f32.mrf.mxu0
        %v699 = vpop.f32.mrf.mxu0
        %v700 = vadd.f32 %v304, %v699
        %v701 = vpop.f32.mrf.mxu0
        %702 = vdwg.mxu0
        %v703 = vmax.f32 %v449, 0.0
        %v704 = vmax.f32 %v452, 0.0
        %v705 = vmax.f32 %v457, 0.0
        %v706 = vmax.f32 %v460, 0.0
        %v707 = vmax.f32 %v465, 0.0
        %v708 = vmax.f32 %v468, 0.0
        %v709 = vmax.f32 %v473, 0.0
        %v710 = vmax.f32 %v476, 0.0
        %v711 = vmax.f32 %v481, 0.0
        %v712 = vmax.f32 %v484, 0.0
        %v713 = vmax.f32 %v489, 0.0
        %v714 = vmax.f32 %v492, 0.0
        %v715 = vmax.f32 %v497, 0.0
        %v716 = vmax.f32 %v500, 0.0
        %v717 = vmax.f32 %v505, 0.0
        %v718 = vmax.f32 %v508, 0.0
        %v719 = vmax.f32 %v513, 0.0
        %v720 = vmax.f32 %v516, 0.0
        %v721 = vmax.f32 %v521, 0.0
        %v722 = vmax.f32 %v524, 0.0
        %v723 = vmax.f32 %v529, 0.0
        %v724 = vmax.f32 %v532, 0.0
        %v725 = vmax.f32 %v537, 0.0
        %v726 = vmax.f32 %v540, 0.0
        %v727 = vmax.f32 %v545, 0.0
        %v728 = vmax.f32 %v548, 0.0
        %v729 = vmax.f32 %v553, 0.0
        %v730 = vmax.f32 %v556, 0.0
        %v731 = vmax.f32 %v561, 0.0
        %v732 = vmax.f32 %v564, 0.0
        %v733 = vmax.f32 %v569, 0.0
        %v734 = vmax.f32 %v572, 0.0
        %v735 = vmax.f32 %v577, 0.0
        %v736 = vmax.f32 %v580, 0.0
        %v737 = vmax.f32 %v585, 0.0
        %v738 = vmax.f32 %v588, 0.0
        %v739 = vmax.f32 %v593, 0.0
        %v740 = vmax.f32 %v596, 0.0
        %v741 = vmax.f32 %v601, 0.0
        %v742 = vmax.f32 %v604, 0.0
        %v743 = vmax.f32 %v609, 0.0
        %v744 = vmax.f32 %v612, 0.0
        %v745 = vmax.f32 %v617, 0.0
        %v746 = vmax.f32 %v620, 0.0
        %v747 = vmax.f32 %v625, 0.0
        %v748 = vmax.f32 %v628, 0.0
        %v749 = vmax.f32 %v633, 0.0
        %v750 = vmax.f32 %v636, 0.0
        %v751 = vmax.f32 %v641, 0.0
        %v752 = vmax.f32 %v644, 0.0
        %v753 = vmax.f32 %v649, 0.0
        %v754 = vmax.f32 %v652, 0.0
        %v755 = vmax.f32 %v657, 0.0
        %v756 = vmax.f32 %v660, 0.0
        %v757 = vmax.f32 %v665, 0.0
        %v758 = vmax.f32 %v668, 0.0
        %v759 = vmax.f32 %v673, 0.0
        %v760 = vmax.f32 %v676, 0.0
        %v761 = vmax.f32 %v681, 0.0
        %v762 = vmax.f32 %v684, 0.0
        %v763 = vmax.f32 %v689, 0.0
        %v764 = vmax.f32 %v692, 0.0
        %v765 = vmax.f32 %v697, 0.0
        %v766 = vmax.f32 %v700, 0.0
        %v767 = vpack.c.bf16 %v704, %v703
        %v768 = vpack.c.bf16 %v706, %v705
        %v769 = vpack.c.bf16 %v708, %v707
        %v770 = vpack.c.bf16 %v710, %v709
        %v771 = vpack.c.bf16 %v712, %v711
        %v772 = vpack.c.bf16 %v714, %v713
        %v773 = vpack.c.bf16 %v716, %v715
        %v774 = vpack.c.bf16 %v718, %v717
        %v775 = vpack.c.bf16 %v720, %v719
        %v776 = vpack.c.bf16 %v722, %v721
        %v777 = vpack.c.bf16 %v724, %v723
        %v778 = vpack.c.bf16 %v726, %v725
        %v779 = vpack.c.bf16 %v728, %v727
        %v780 = vpack.c.bf16 %v730, %v729
        %v781 = vpack.c.bf16 %v732, %v731
        %v782 = vpack.c.bf16 %v734, %v733
        %v783 = vpack.c.bf16 %v736, %v735
        %v784 = vpack.c.bf16 %v738, %v737
        %v785 = vpack.c.bf16 %v740, %v739
        %v786 = vpack.c.bf16 %v742, %v741
        %v787 = vpack.c.bf16 %v744, %v743
        %v788 = vpack.c.bf16 %v746, %v745
        %v789 = vpack.c.bf16 %v748, %v747
        %v790 = vpack.c.bf16 %v750, %v749
        %v791 = vpack.c.bf16 %v752, %v751
        %v792 = vpack.c.bf16 %v754, %v753
        %v793 = vpack.c.bf16 %v756, %v755
        %v794 = vpack.c.bf16 %v758, %v757
        %v795 = vpack.c.bf16 %v760, %v759
        %v796 = vpack.c.bf16 %v762, %v761
        %v797 = vpack.c.bf16 %v764, %v763
        %v798 = vpack.c.bf16 %v766, %v765
        %v799 = vld [vmem:[%s2] sm:$0xf]
        %v800 = vld [vmem:[%s2 + $0x4] sm:$0xf]
        %v801 = vld [vmem:[%s2 + $0x8] sm:$0xf]
        %v802 = vld [vmem:[%s2 + $0xc] sm:$0xf]
        %v803 = vld [vmem:[%s2 + $0x10] sm:$0xf]
        %v804 = vld [vmem:[%s2 + $0x14] sm:$0xf]
        %v805 = vld [vmem:[%s2 + $0x18] sm:$0xf]
        %v806 = vld [vmem:[%s2 + $0x1c] sm:$0xf]
        %v807 = vld [vmem:[%s2 + $0x20] sm:$0xf]
        %v808 = vld [vmem:[%s2 + $0x24] sm:$0xf]
        %v809 = vld [vmem:[%s2 + $0x28] sm:$0xf]
        %v810 = vld [vmem:[%s2 + $0x2c] sm:$0xf]
        %v811 = vld [vmem:[%s2 + $0x30] sm:$0xf]
        %v812 = vld [vmem:[%s2 + $0x34] sm:$0xf]
        %v813 = vld [vmem:[%s2 + $0x38] sm:$0xf]
        %v814 = vld [vmem:[%s2 + $0x3c] sm:$0xf]
        %v815 = vld [vmem:[%s3 + $0x1] sm:$0x1]
        %v816 = vlaneseq
        %v817 = vshrl.u32 %v816, 7
        %v818 = vsub.s32 0, %v817
        %v819 = vrot.slane %v815, %v818
        %v836 = vunpack.c.l.b16 %v799
        %v837 = vunpack.c.l.b16 %v800
        %v838 = vunpack.c.l.b16 %v801
        %v839 = vunpack.c.l.b16 %v802
        %v840 = vunpack.c.l.b16 %v803
        %v841 = vunpack.c.l.b16 %v804
        %v842 = vunpack.c.l.b16 %v805
        %v843 = vunpack.c.l.b16 %v806
        %v844 = vunpack.c.l.b16 %v807
        %v845 = vunpack.c.l.b16 %v808
        %v846 = vunpack.c.l.b16 %v809
        %v847 = vunpack.c.l.b16 %v810
        %v848 = vunpack.c.l.b16 %v811
        %v849 = vunpack.c.l.b16 %v812
        %v850 = vunpack.c.l.b16 %v813
        %v851 = vunpack.c.l.b16 %v814
        %v852 = vpack.c.b16 %v837, %v836
        %v853 = vpack.c.b16 %v839, %v838
        %v854 = vpack.c.b16 %v841, %v840
        %v855 = vpack.c.b16 %v843, %v842
        %v856 = vpack.c.b16 %v845, %v844
        %v857 = vpack.c.b16 %v847, %v846
        %v858 = vpack.c.b16 %v849, %v848
        %v859 = vpack.c.b16 %v851, %v850
        %868 = vmatprep.subr.bf16.mxu0 0
        %869 = vmatpush1.bf16.msra.mxu0 %v859
        %870 = vmatprep.subr.bf16.mxu0 0
        %871 = vmatpush1.bf16.msra.mxu0 %v858
        %872 = vmatprep.subr.bf16.mxu0 0
        %873 = vmatpush1.bf16.msra.mxu0 %v857
        %874 = vmatprep.subr.bf16.mxu0 0
        %875 = vmatpush1.bf16.msra.mxu0 %v856
        %876 = vmatprep.subr.bf16.mxu0 0
        %877 = vmatpush1.bf16.msra.mxu0 %v855
        %878 = vmatprep.subr.bf16.mxu0 0
        %879 = vmatpush1.bf16.msra.mxu0 %v854
        %880 = vmatprep.subr.bf16.mxu0 0
        %881 = vmatpush1.bf16.msra.mxu0 %v853
        %882 = vmatprep.subr.bf16.mxu0 0
        %883 = vmatpush1.bf16.msra.mxu0 %v852
        %884 = vmatprep.subr.bf16.mxu0 0
        %885 = vmatpush2.bf16.msra.mxu0 0
        %886 = vmatprep.subr.bf16.mxu0 0
        %887 = vmatpush2.bf16.msra.mxu0 0
        %888 = vmatprep.subr.bf16.mxu0 0
        %889 = vmatpush2.bf16.msra.mxu0 0
        %890 = vmatprep.subr.bf16.mxu0 0
        %891 = vmatpush2.bf16.msra.mxu0 0
        %892 = vmatprep.subr.bf16.mxu0 0
        %893 = vmatpush2.bf16.msra.mxu0 0
        %894 = vmatprep.subr.bf16.mxu0 0
        %895 = vmatpush2.bf16.msra.mxu0 0
        %896 = vmatprep.subr.bf16.mxu0 0
        %897 = vmatpush2.bf16.msra.mxu0 0
        %898 = vmatprep.subr.bf16.mxu0 0
        %899 = vmatpush2.bf16.msra.mxu0 0
        %900 = vmatprep.mubr.bf16.mxu0 0
        %901 = vmatmul.mubr.bf16.gmra.mxu0 %v767
        %v902 = vpop.f32.mrf.mxu0
        %v903 = vadd.f32 %v819, %v902
        %v904 = vpop.f32.mrf.mxu0
        %v905 = vpop.f32.mrf.mxu0
        %v906 = vadd.f32 %v819, %v905
        %v907 = vpop.f32.mrf.mxu0
        %908 = vmatprep.mubr.bf16.mxu0 0
        %909 = vmatmul.mubr.bf16.gmra.mxu0 %v768
        %v910 = vpop.f32.mrf.mxu0
        %v911 = vadd.f32 %v819, %v910
        %v912 = vpop.f32.mrf.mxu0
        %v913 = vpop.f32.mrf.mxu0
        %v914 = vadd.f32 %v819, %v913
        %v915 = vpop.f32.mrf.mxu0
        %916 = vmatprep.mubr.bf16.mxu0 0
        %917 = vmatmul.mubr.bf16.gmra.mxu0 %v769
        %v918 = vpop.f32.mrf.mxu0
        %v919 = vadd.f32 %v819, %v918
        %v920 = vpop.f32.mrf.mxu0
        %v921 = vpop.f32.mrf.mxu0
        %v922 = vadd.f32 %v819, %v921
        %v923 = vpop.f32.mrf.mxu0
        %924 = vmatprep.mubr.bf16.mxu0 0
        %925 = vmatmul.mubr.bf16.gmra.mxu0 %v770
        %v926 = vpop.f32.mrf.mxu0
        %v927 = vadd.f32 %v819, %v926
        %v928 = vpop.f32.mrf.mxu0
        %v929 = vpop.f32.mrf.mxu0
        %v930 = vadd.f32 %v819, %v929
        %v931 = vpop.f32.mrf.mxu0
        %932 = vmatprep.mubr.bf16.mxu0 0
        %933 = vmatmul.mubr.bf16.gmra.mxu0 %v771
        %v934 = vpop.f32.mrf.mxu0
        %v935 = vadd.f32 %v819, %v934
        %v936 = vpop.f32.mrf.mxu0
        %v937 = vpop.f32.mrf.mxu0
        %v938 = vadd.f32 %v819, %v937
        %v939 = vpop.f32.mrf.mxu0
        %940 = vmatprep.mubr.bf16.mxu0 0
        %941 = vmatmul.mubr.bf16.gmra.mxu0 %v772
        %v942 = vpop.f32.mrf.mxu0
        %v943 = vadd.f32 %v819, %v942
        %v944 = vpop.f32.mrf.mxu0
        %v945 = vpop.f32.mrf.mxu0
        %v946 = vadd.f32 %v819, %v945
        %v947 = vpop.f32.mrf.mxu0
        %948 = vmatprep.mubr.bf16.mxu0 0
        %949 = vmatmul.mubr.bf16.gmra.mxu0 %v773
        %v950 = vpop.f32.mrf.mxu0
        %v951 = vadd.f32 %v819, %v950
        %v952 = vpop.f32.mrf.mxu0
        %v953 = vpop.f32.mrf.mxu0
        %v954 = vadd.f32 %v819, %v953
        %v955 = vpop.f32.mrf.mxu0
        %956 = vmatprep.mubr.bf16.mxu0 0
        %957 = vmatmul.mubr.bf16.gmra.mxu0 %v774
        %v958 = vpop.f32.mrf.mxu0
        %v959 = vadd.f32 %v819, %v958
        %v960 = vpop.f32.mrf.mxu0
        %v961 = vpop.f32.mrf.mxu0
        %v962 = vadd.f32 %v819, %v961
        %v963 = vpop.f32.mrf.mxu0
        %964 = vmatprep.mubr.bf16.mxu0 0
        %965 = vmatmul.mubr.bf16.gmra.mxu0 %v775
        %v966 = vpop.f32.mrf.mxu0
        %v967 = vadd.f32 %v819, %v966
        %v968 = vpop.f32.mrf.mxu0
        %v969 = vpop.f32.mrf.mxu0
        %v970 = vadd.f32 %v819, %v969
        %v971 = vpop.f32.mrf.mxu0
        %972 = vmatprep.mubr.bf16.mxu0 0
        %973 = vmatmul.mubr.bf16.gmra.mxu0 %v776
        %v974 = vpop.f32.mrf.mxu0
        %v975 = vadd.f32 %v819, %v974
        %v976 = vpop.f32.mrf.mxu0
        %v977 = vpop.f32.mrf.mxu0
        %v978 = vadd.f32 %v819, %v977
        %v979 = vpop.f32.mrf.mxu0
        %980 = vmatprep.mubr.bf16.mxu0 0
        %981 = vmatmul.mubr.bf16.gmra.mxu0 %v777
        %v982 = vpop.f32.mrf.mxu0
        %v983 = vadd.f32 %v819, %v982
        %v984 = vpop.f32.mrf.mxu0
        %v985 = vpop.f32.mrf.mxu0
        %v986 = vadd.f32 %v819, %v985
        %v987 = vpop.f32.mrf.mxu0
        %988 = vmatprep.mubr.bf16.mxu0 0
        %989 = vmatmul.mubr.bf16.gmra.mxu0 %v778
        %v990 = vpop.f32.mrf.mxu0
        %v991 = vadd.f32 %v819, %v990
        %v992 = vpop.f32.mrf.mxu0
        %v993 = vpop.f32.mrf.mxu0
        %v994 = vadd.f32 %v819, %v993
        %v995 = vpop.f32.mrf.mxu0
        %996 = vmatprep.mubr.bf16.mxu0 0
        %997 = vmatmul.mubr.bf16.gmra.mxu0 %v779
        %v998 = vpop.f32.mrf.mxu0
        %v999 = vadd.f32 %v819, %v998
        %v1000 = vpop.f32.mrf.mxu0
        %v1001 = vpop.f32.mrf.mxu0
        %v1002 = vadd.f32 %v819, %v1001
        %v1003 = vpop.f32.mrf.mxu0
        %1004 = vmatprep.mubr.bf16.mxu0 0
        %1005 = vmatmul.mubr.bf16.gmra.mxu0 %v780
        %v1006 = vpop.f32.mrf.mxu0
        %v1007 = vadd.f32 %v819, %v1006
        %v1008 = vpop.f32.mrf.mxu0
        %v1009 = vpop.f32.mrf.mxu0
        %v1010 = vadd.f32 %v819, %v1009
        %v1011 = vpop.f32.mrf.mxu0
        %1012 = vmatprep.mubr.bf16.mxu0 0
        %1013 = vmatmul.mubr.bf16.gmra.mxu0 %v781
        %v1014 = vpop.f32.mrf.mxu0
        %v1015 = vadd.f32 %v819, %v1014
        %v1016 = vpop.f32.mrf.mxu0
        %v1017 = vpop.f32.mrf.mxu0
        %v1018 = vadd.f32 %v819, %v1017
        %v1019 = vpop.f32.mrf.mxu0
        %1020 = vmatprep.mubr.bf16.mxu0 0
        %1021 = vmatmul.mubr.bf16.gmra.mxu0 %v782
        %v1022 = vpop.f32.mrf.mxu0
        %v1023 = vadd.f32 %v819, %v1022
        %v1024 = vpop.f32.mrf.mxu0
        %v1025 = vpop.f32.mrf.mxu0
        %v1026 = vadd.f32 %v819, %v1025
        %v1027 = vpop.f32.mrf.mxu0
        %1028 = vmatprep.mubr.bf16.mxu0 0
        %1029 = vmatmul.mubr.bf16.gmra.mxu0 %v783
        %v1030 = vpop.f32.mrf.mxu0
        %v1031 = vadd.f32 %v819, %v1030
        %v1032 = vpop.f32.mrf.mxu0
        %v1033 = vpop.f32.mrf.mxu0
        %v1034 = vadd.f32 %v819, %v1033
        %v1035 = vpop.f32.mrf.mxu0
        %1036 = vmatprep.mubr.bf16.mxu0 0
        %1037 = vmatmul.mubr.bf16.gmra.mxu0 %v784
        %v1038 = vpop.f32.mrf.mxu0
        %v1039 = vadd.f32 %v819, %v1038
        %v1040 = vpop.f32.mrf.mxu0
        %v1041 = vpop.f32.mrf.mxu0
        %v1042 = vadd.f32 %v819, %v1041
        %v1043 = vpop.f32.mrf.mxu0
        %1044 = vmatprep.mubr.bf16.mxu0 0
        %1045 = vmatmul.mubr.bf16.gmra.mxu0 %v785
        %v1046 = vpop.f32.mrf.mxu0
        %v1047 = vadd.f32 %v819, %v1046
        %v1048 = vpop.f32.mrf.mxu0
        %v1049 = vpop.f32.mrf.mxu0
        %v1050 = vadd.f32 %v819, %v1049
        %v1051 = vpop.f32.mrf.mxu0
        %1052 = vmatprep.mubr.bf16.mxu0 0
        %1053 = vmatmul.mubr.bf16.gmra.mxu0 %v786
        %v1054 = vpop.f32.mrf.mxu0
        %v1055 = vadd.f32 %v819, %v1054
        %v1056 = vpop.f32.mrf.mxu0
        %v1057 = vpop.f32.mrf.mxu0
        %v1058 = vadd.f32 %v819, %v1057
        %v1059 = vpop.f32.mrf.mxu0
        %1060 = vmatprep.mubr.bf16.mxu0 0
        %1061 = vmatmul.mubr.bf16.gmra.mxu0 %v787
        %v1062 = vpop.f32.mrf.mxu0
        %v1063 = vadd.f32 %v819, %v1062
        %v1064 = vpop.f32.mrf.mxu0
        %v1065 = vpop.f32.mrf.mxu0
        %v1066 = vadd.f32 %v819, %v1065
        %v1067 = vpop.f32.mrf.mxu0
        %1068 = vmatprep.mubr.bf16.mxu0 0
        %1069 = vmatmul.mubr.bf16.gmra.mxu0 %v788
        %v1070 = vpop.f32.mrf.mxu0
        %v1071 = vadd.f32 %v819, %v1070
        %v1072 = vpop.f32.mrf.mxu0
        %v1073 = vpop.f32.mrf.mxu0
        %v1074 = vadd.f32 %v819, %v1073
        %v1075 = vpop.f32.mrf.mxu0
        %1076 = vmatprep.mubr.bf16.mxu0 0
        %1077 = vmatmul.mubr.bf16.gmra.mxu0 %v789
        %v1078 = vpop.f32.mrf.mxu0
        %v1079 = vadd.f32 %v819, %v1078
        %v1080 = vpop.f32.mrf.mxu0
        %v1081 = vpop.f32.mrf.mxu0
        %v1082 = vadd.f32 %v819, %v1081
        %v1083 = vpop.f32.mrf.mxu0
        %1084 = vmatprep.mubr.bf16.mxu0 0
        %1085 = vmatmul.mubr.bf16.gmra.mxu0 %v790
        %v1086 = vpop.f32.mrf.mxu0
        %v1087 = vadd.f32 %v819, %v1086
        %v1088 = vpop.f32.mrf.mxu0
        %v1089 = vpop.f32.mrf.mxu0
        %v1090 = vadd.f32 %v819, %v1089
        %v1091 = vpop.f32.mrf.mxu0
        %1092 = vmatprep.mubr.bf16.mxu0 0
        %1093 = vmatmul.mubr.bf16.gmra.mxu0 %v791
        %v1094 = vpop.f32.mrf.mxu0
        %v1095 = vadd.f32 %v819, %v1094
        %v1096 = vpop.f32.mrf.mxu0
        %v1097 = vpop.f32.mrf.mxu0
        %v1098 = vadd.f32 %v819, %v1097
        %v1099 = vpop.f32.mrf.mxu0
        %1100 = vmatprep.mubr.bf16.mxu0 0
        %1101 = vmatmul.mubr.bf16.gmra.mxu0 %v792
        %v1102 = vpop.f32.mrf.mxu0
        %v1103 = vadd.f32 %v819, %v1102
        %v1104 = vpop.f32.mrf.mxu0
        %v1105 = vpop.f32.mrf.mxu0
        %v1106 = vadd.f32 %v819, %v1105
        %v1107 = vpop.f32.mrf.mxu0
        %1108 = vmatprep.mubr.bf16.mxu0 0
        %1109 = vmatmul.mubr.bf16.gmra.mxu0 %v793
        %v1110 = vpop.f32.mrf.mxu0
        %v1111 = vadd.f32 %v819, %v1110
        %v1112 = vpop.f32.mrf.mxu0
        %v1113 = vpop.f32.mrf.mxu0
        %v1114 = vadd.f32 %v819, %v1113
        %v1115 = vpop.f32.mrf.mxu0
        %1116 = vmatprep.mubr.bf16.mxu0 0
        %1117 = vmatmul.mubr.bf16.gmra.mxu0 %v794
        %v1118 = vpop.f32.mrf.mxu0
        %v1119 = vadd.f32 %v819, %v1118
        %v1120 = vpop.f32.mrf.mxu0
        %v1121 = vpop.f32.mrf.mxu0
        %v1122 = vadd.f32 %v819, %v1121
        %v1123 = vpop.f32.mrf.mxu0
        %1124 = vmatprep.mubr.bf16.mxu0 0
        %1125 = vmatmul.mubr.bf16.gmra.mxu0 %v795
        %v1126 = vpop.f32.mrf.mxu0
        %v1127 = vadd.f32 %v819, %v1126
        %v1128 = vpop.f32.mrf.mxu0
        %v1129 = vpop.f32.mrf.mxu0
        %v1130 = vadd.f32 %v819, %v1129
        %v1131 = vpop.f32.mrf.mxu0
        %1132 = vmatprep.mubr.bf16.mxu0 0
        %1133 = vmatmul.mubr.bf16.gmra.mxu0 %v796
        %v1134 = vpop.f32.mrf.mxu0
        %v1135 = vadd.f32 %v819, %v1134
        %v1136 = vpop.f32.mrf.mxu0
        %v1137 = vpop.f32.mrf.mxu0
        %v1138 = vadd.f32 %v819, %v1137
        %v1139 = vpop.f32.mrf.mxu0
        %1140 = vmatprep.mubr.bf16.mxu0 0
        %1141 = vmatmul.mubr.bf16.gmra.mxu0 %v797
        %v1142 = vpop.f32.mrf.mxu0
        %v1143 = vadd.f32 %v819, %v1142
        %v1144 = vpop.f32.mrf.mxu0
        %v1145 = vpop.f32.mrf.mxu0
        %v1146 = vadd.f32 %v819, %v1145
        %v1147 = vpop.f32.mrf.mxu0
        %1148 = vmatprep.mubr.bf16.mxu0 0
        %1149 = vmatmul.mubr.bf16.gmra.mxu0 %v798
        %v1150 = vpop.f32.mrf.mxu0
        %v1151 = vadd.f32 %v819, %v1150
        %v1152 = vpop.f32.mrf.mxu0
        %v1153 = vpop.f32.mrf.mxu0
        %v1154 = vadd.f32 %v819, %v1153
        %v1155 = vpop.f32.mrf.mxu0
        %1156 = vdwg.mxu0
        %v1157 = vmax.f32 %v903, 0.0
        %v1158 = vmax.f32 %v906, 0.0
        %v1159 = vmax.f32 %v911, 0.0
        %v1160 = vmax.f32 %v914, 0.0
        %v1161 = vmax.f32 %v919, 0.0
        %v1162 = vmax.f32 %v922, 0.0
        %v1163 = vmax.f32 %v927, 0.0
        %v1164 = vmax.f32 %v930, 0.0
        %v1165 = vmax.f32 %v935, 0.0
        %v1166 = vmax.f32 %v938, 0.0
        %v1167 = vmax.f32 %v943, 0.0
        %v1168 = vmax.f32 %v946, 0.0
        %v1169 = vmax.f32 %v951, 0.0
        %v1170 = vmax.f32 %v954, 0.0
        %v1171 = vmax.f32 %v959, 0.0
        %v1172 = vmax.f32 %v962, 0.0
        %v1173 = vmax.f32 %v967, 0.0
        %v1174 = vmax.f32 %v970, 0.0
        %v1175 = vmax.f32 %v975, 0.0
        %v1176 = vmax.f32 %v978, 0.0
        %v1177 = vmax.f32 %v983, 0.0
        %v1178 = vmax.f32 %v986, 0.0
        %v1179 = vmax.f32 %v991, 0.0
        %v1180 = vmax.f32 %v994, 0.0
        %v1181 = vmax.f32 %v999, 0.0
        %v1182 = vmax.f32 %v1002, 0.0
        %v1183 = vmax.f32 %v1007, 0.0
        %v1184 = vmax.f32 %v1010, 0.0
        %v1185 = vmax.f32 %v1015, 0.0
        %v1186 = vmax.f32 %v1018, 0.0
        %v1187 = vmax.f32 %v1023, 0.0
        %v1188 = vmax.f32 %v1026, 0.0
        %v1189 = vmax.f32 %v1031, 0.0
        %v1190 = vmax.f32 %v1034, 0.0
        %v1191 = vmax.f32 %v1039, 0.0
        %v1192 = vmax.f32 %v1042, 0.0
        %v1193 = vmax.f32 %v1047, 0.0
        %v1194 = vmax.f32 %v1050, 0.0
        %v1195 = vmax.f32 %v1055, 0.0
        %v1196 = vmax.f32 %v1058, 0.0
        %v1197 = vmax.f32 %v1063, 0.0
        %v1198 = vmax.f32 %v1066, 0.0
        %v1199 = vmax.f32 %v1071, 0.0
        %v1200 = vmax.f32 %v1074, 0.0
        %v1201 = vmax.f32 %v1079, 0.0
        %v1202 = vmax.f32 %v1082, 0.0
        %v1203 = vmax.f32 %v1087, 0.0
        %v1204 = vmax.f32 %v1090, 0.0
        %v1205 = vmax.f32 %v1095, 0.0
        %v1206 = vmax.f32 %v1098, 0.0
        %v1207 = vmax.f32 %v1103, 0.0
        %v1208 = vmax.f32 %v1106, 0.0
        %v1209 = vmax.f32 %v1111, 0.0
        %v1210 = vmax.f32 %v1114, 0.0
        %v1211 = vmax.f32 %v1119, 0.0
        %v1212 = vmax.f32 %v1122, 0.0
        %v1213 = vmax.f32 %v1127, 0.0
        %v1214 = vmax.f32 %v1130, 0.0
        %v1215 = vmax.f32 %v1135, 0.0
        %v1216 = vmax.f32 %v1138, 0.0
        %v1217 = vmax.f32 %v1143, 0.0
        %v1218 = vmax.f32 %v1146, 0.0
        %v1219 = vmax.f32 %v1151, 0.0
        %v1220 = vmax.f32 %v1154, 0.0
        %v1221 = vpack.c.bf16 %v1158, %v1157
        %v1222 = vpack.c.bf16 %v1160, %v1159
        %v1223 = vpack.c.bf16 %v1162, %v1161
        %v1224 = vpack.c.bf16 %v1164, %v1163
        %v1225 = vpack.c.bf16 %v1166, %v1165
        %v1226 = vpack.c.bf16 %v1168, %v1167
        %v1227 = vpack.c.bf16 %v1170, %v1169
        %v1228 = vpack.c.bf16 %v1172, %v1171
        %v1229 = vpack.c.bf16 %v1174, %v1173
        %v1230 = vpack.c.bf16 %v1176, %v1175
        %v1231 = vpack.c.bf16 %v1178, %v1177
        %v1232 = vpack.c.bf16 %v1180, %v1179
        %v1233 = vpack.c.bf16 %v1182, %v1181
        %v1234 = vpack.c.bf16 %v1184, %v1183
        %v1235 = vpack.c.bf16 %v1186, %v1185
        %v1236 = vpack.c.bf16 %v1188, %v1187
        %v1237 = vpack.c.bf16 %v1190, %v1189
        %v1238 = vpack.c.bf16 %v1192, %v1191
        %v1239 = vpack.c.bf16 %v1194, %v1193
        %v1240 = vpack.c.bf16 %v1196, %v1195
        %v1241 = vpack.c.bf16 %v1198, %v1197
        %v1242 = vpack.c.bf16 %v1200, %v1199
        %v1243 = vpack.c.bf16 %v1202, %v1201
        %v1244 = vpack.c.bf16 %v1204, %v1203
        %v1245 = vpack.c.bf16 %v1206, %v1205
        %v1246 = vpack.c.bf16 %v1208, %v1207
        %v1247 = vpack.c.bf16 %v1210, %v1209
        %v1248 = vpack.c.bf16 %v1212, %v1211
        %v1249 = vpack.c.bf16 %v1214, %v1213
        %v1250 = vpack.c.bf16 %v1216, %v1215
        %v1251 = vpack.c.bf16 %v1218, %v1217
        %v1252 = vpack.c.bf16 %v1220, %v1219
        %s1253 = scalar_lea.vmem %s2, 64
        %v1254 = vld [vmem:[%s1253] sm:$0xf]
        %v1255 = vld [vmem:[%s1253 + $0x4] sm:$0xf]
        %v1256 = vld [vmem:[%s1253 + $0x8] sm:$0xf]
        %v1257 = vld [vmem:[%s1253 + $0xc] sm:$0xf]
        %v1258 = vld [vmem:[%s1253 + $0x10] sm:$0xf]
        %v1259 = vld [vmem:[%s1253 + $0x14] sm:$0xf]
        %v1260 = vld [vmem:[%s1253 + $0x18] sm:$0xf]
        %v1261 = vld [vmem:[%s1253 + $0x1c] sm:$0xf]
        %v1262 = vld [vmem:[%s1253 + $0x20] sm:$0xf]
        %v1263 = vld [vmem:[%s1253 + $0x24] sm:$0xf]
        %v1264 = vld [vmem:[%s1253 + $0x28] sm:$0xf]
        %v1265 = vld [vmem:[%s1253 + $0x2c] sm:$0xf]
        %v1266 = vld [vmem:[%s1253 + $0x30] sm:$0xf]
        %v1267 = vld [vmem:[%s1253 + $0x34] sm:$0xf]
        %v1268 = vld [vmem:[%s1253 + $0x38] sm:$0xf]
        %v1269 = vld [vmem:[%s1253 + $0x3c] sm:$0xf]
        %v1270 = vld [vmem:[%s3 + $0x2] sm:$0x1]
        %v1271 = vlaneseq
        %v1272 = vshrl.u32 %v1271, 7
        %v1273 = vsub.s32 0, %v1272
        %v1274 = vrot.slane %v1270, %v1273
        %v1291 = vunpack.c.l.b16 %v1254
        %v1292 = vunpack.c.l.b16 %v1255
        %v1293 = vunpack.c.l.b16 %v1256
        %v1294 = vunpack.c.l.b16 %v1257
        %v1295 = vunpack.c.l.b16 %v1258
        %v1296 = vunpack.c.l.b16 %v1259
        %v1297 = vunpack.c.l.b16 %v1260
        %v1298 = vunpack.c.l.b16 %v1261
        %v1299 = vunpack.c.l.b16 %v1262
        %v1300 = vunpack.c.l.b16 %v1263
        %v1301 = vunpack.c.l.b16 %v1264
        %v1302 = vunpack.c.l.b16 %v1265
        %v1303 = vunpack.c.l.b16 %v1266
        %v1304 = vunpack.c.l.b16 %v1267
        %v1305 = vunpack.c.l.b16 %v1268
        %v1306 = vunpack.c.l.b16 %v1269
        %v1307 = vpack.c.b16 %v1292, %v1291
        %v1308 = vpack.c.b16 %v1294, %v1293
        %v1309 = vpack.c.b16 %v1296, %v1295
        %v1310 = vpack.c.b16 %v1298, %v1297
        %v1311 = vpack.c.b16 %v1300, %v1299
        %v1312 = vpack.c.b16 %v1302, %v1301
        %v1313 = vpack.c.b16 %v1304, %v1303
        %v1314 = vpack.c.b16 %v1306, %v1305
        %1323 = vmatprep.subr.bf16.mxu0 0
        %1324 = vmatpush1.bf16.msra.mxu0 %v1314
        %1325 = vmatprep.subr.bf16.mxu0 0
        %1326 = vmatpush1.bf16.msra.mxu0 %v1313
        %1327 = vmatprep.subr.bf16.mxu0 0
        %1328 = vmatpush1.bf16.msra.mxu0 %v1312
        %1329 = vmatprep.subr.bf16.mxu0 0
        %1330 = vmatpush1.bf16.msra.mxu0 %v1311
        %1331 = vmatprep.subr.bf16.mxu0 0
        %1332 = vmatpush1.bf16.msra.mxu0 %v1310
        %1333 = vmatprep.subr.bf16.mxu0 0
        %1334 = vmatpush1.bf16.msra.mxu0 %v1309
        %1335 = vmatprep.subr.bf16.mxu0 0
        %1336 = vmatpush1.bf16.msra.mxu0 %v1308
        %1337 = vmatprep.subr.bf16.mxu0 0
        %1338 = vmatpush1.bf16.msra.mxu0 %v1307
        %1339 = vmatprep.subr.bf16.mxu0 0
        %1340 = vmatpush2.bf16.msra.mxu0 0
        %1341 = vmatprep.subr.bf16.mxu0 0
        %1342 = vmatpush2.bf16.msra.mxu0 0
        %1343 = vmatprep.subr.bf16.mxu0 0
        %1344 = vmatpush2.bf16.msra.mxu0 0
        %1345 = vmatprep.subr.bf16.mxu0 0
        %1346 = vmatpush2.bf16.msra.mxu0 0
        %1347 = vmatprep.subr.bf16.mxu0 0
        %1348 = vmatpush2.bf16.msra.mxu0 0
        %1349 = vmatprep.subr.bf16.mxu0 0
        %1350 = vmatpush2.bf16.msra.mxu0 0
        %1351 = vmatprep.subr.bf16.mxu0 0
        %1352 = vmatpush2.bf16.msra.mxu0 0
        %1353 = vmatprep.subr.bf16.mxu0 0
        %1354 = vmatpush2.bf16.msra.mxu0 0
        %1355 = vmatprep.mubr.bf16.mxu0 0
        %1356 = vmatmul.mubr.bf16.gmra.mxu0 %v1221
        %v1357 = vpop.f32.mrf.mxu0
        %v1358 = vadd.f32 %v1274, %v1357
        %v1359 = vpop.f32.mrf.mxu0
        %v1360 = vpop.f32.mrf.mxu0
        %v1361 = vadd.f32 %v1274, %v1360
        %v1362 = vpop.f32.mrf.mxu0
        %1363 = vmatprep.mubr.bf16.mxu0 0
        %1364 = vmatmul.mubr.bf16.gmra.mxu0 %v1222
        %v1365 = vpop.f32.mrf.mxu0
        %v1366 = vadd.f32 %v1274, %v1365
        %v1367 = vpop.f32.mrf.mxu0
        %v1368 = vpop.f32.mrf.mxu0
        %v1369 = vadd.f32 %v1274, %v1368
        %v1370 = vpop.f32.mrf.mxu0
        %1371 = vmatprep.mubr.bf16.mxu0 0
        %1372 = vmatmul.mubr.bf16.gmra.mxu0 %v1223
        %v1373 = vpop.f32.mrf.mxu0
        %v1374 = vadd.f32 %v1274, %v1373
        %v1375 = vpop.f32.mrf.mxu0
        %v1376 = vpop.f32.mrf.mxu0
        %v1377 = vadd.f32 %v1274, %v1376
        %v1378 = vpop.f32.mrf.mxu0
        %1379 = vmatprep.mubr.bf16.mxu0 0
        %1380 = vmatmul.mubr.bf16.gmra.mxu0 %v1224
        %v1381 = vpop.f32.mrf.mxu0
        %v1382 = vadd.f32 %v1274, %v1381
        %v1383 = vpop.f32.mrf.mxu0
        %v1384 = vpop.f32.mrf.mxu0
        %v1385 = vadd.f32 %v1274, %v1384
        %v1386 = vpop.f32.mrf.mxu0
        %1387 = vmatprep.mubr.bf16.mxu0 0
        %1388 = vmatmul.mubr.bf16.gmra.mxu0 %v1225
        %v1389 = vpop.f32.mrf.mxu0
        %v1390 = vadd.f32 %v1274, %v1389
        %v1391 = vpop.f32.mrf.mxu0
        %v1392 = vpop.f32.mrf.mxu0
        %v1393 = vadd.f32 %v1274, %v1392
        %v1394 = vpop.f32.mrf.mxu0
        %1395 = vmatprep.mubr.bf16.mxu0 0
        %1396 = vmatmul.mubr.bf16.gmra.mxu0 %v1226
        %v1397 = vpop.f32.mrf.mxu0
        %v1398 = vadd.f32 %v1274, %v1397
        %v1399 = vpop.f32.mrf.mxu0
        %v1400 = vpop.f32.mrf.mxu0
        %v1401 = vadd.f32 %v1274, %v1400
        %v1402 = vpop.f32.mrf.mxu0
        %1403 = vmatprep.mubr.bf16.mxu0 0
        %1404 = vmatmul.mubr.bf16.gmra.mxu0 %v1227
        %v1405 = vpop.f32.mrf.mxu0
        %v1406 = vadd.f32 %v1274, %v1405
        %v1407 = vpop.f32.mrf.mxu0
        %v1408 = vpop.f32.mrf.mxu0
        %v1409 = vadd.f32 %v1274, %v1408
        %v1410 = vpop.f32.mrf.mxu0
        %1411 = vmatprep.mubr.bf16.mxu0 0
        %1412 = vmatmul.mubr.bf16.gmra.mxu0 %v1228
        %v1413 = vpop.f32.mrf.mxu0
        %v1414 = vadd.f32 %v1274, %v1413
        %v1415 = vpop.f32.mrf.mxu0
        %v1416 = vpop.f32.mrf.mxu0
        %v1417 = vadd.f32 %v1274, %v1416
        %v1418 = vpop.f32.mrf.mxu0
        %1419 = vmatprep.mubr.bf16.mxu0 0
        %1420 = vmatmul.mubr.bf16.gmra.mxu0 %v1229
        %v1421 = vpop.f32.mrf.mxu0
        %v1422 = vadd.f32 %v1274, %v1421
        %v1423 = vpop.f32.mrf.mxu0
        %v1424 = vpop.f32.mrf.mxu0
        %v1425 = vadd.f32 %v1274, %v1424
        %v1426 = vpop.f32.mrf.mxu0
        %1427 = vmatprep.mubr.bf16.mxu0 0
        %1428 = vmatmul.mubr.bf16.gmra.mxu0 %v1230
        %v1429 = vpop.f32.mrf.mxu0
        %v1430 = vadd.f32 %v1274, %v1429
        %v1431 = vpop.f32.mrf.mxu0
        %v1432 = vpop.f32.mrf.mxu0
        %v1433 = vadd.f32 %v1274, %v1432
        %v1434 = vpop.f32.mrf.mxu0
        %1435 = vmatprep.mubr.bf16.mxu0 0
        %1436 = vmatmul.mubr.bf16.gmra.mxu0 %v1231
        %v1437 = vpop.f32.mrf.mxu0
        %v1438 = vadd.f32 %v1274, %v1437
        %v1439 = vpop.f32.mrf.mxu0
        %v1440 = vpop.f32.mrf.mxu0
        %v1441 = vadd.f32 %v1274, %v1440
        %v1442 = vpop.f32.mrf.mxu0
        %1443 = vmatprep.mubr.bf16.mxu0 0
        %1444 = vmatmul.mubr.bf16.gmra.mxu0 %v1232
        %v1445 = vpop.f32.mrf.mxu0
        %v1446 = vadd.f32 %v1274, %v1445
        %v1447 = vpop.f32.mrf.mxu0
        %v1448 = vpop.f32.mrf.mxu0
        %v1449 = vadd.f32 %v1274, %v1448
        %v1450 = vpop.f32.mrf.mxu0
        %1451 = vmatprep.mubr.bf16.mxu0 0
        %1452 = vmatmul.mubr.bf16.gmra.mxu0 %v1233
        %v1453 = vpop.f32.mrf.mxu0
        %v1454 = vadd.f32 %v1274, %v1453
        %v1455 = vpop.f32.mrf.mxu0
        %v1456 = vpop.f32.mrf.mxu0
        %v1457 = vadd.f32 %v1274, %v1456
        %v1458 = vpop.f32.mrf.mxu0
        %1459 = vmatprep.mubr.bf16.mxu0 0
        %1460 = vmatmul.mubr.bf16.gmra.mxu0 %v1234
        %v1461 = vpop.f32.mrf.mxu0
        %v1462 = vadd.f32 %v1274, %v1461
        %v1463 = vpop.f32.mrf.mxu0
        %v1464 = vpop.f32.mrf.mxu0
        %v1465 = vadd.f32 %v1274, %v1464
        %v1466 = vpop.f32.mrf.mxu0
        %1467 = vmatprep.mubr.bf16.mxu0 0
        %1468 = vmatmul.mubr.bf16.gmra.mxu0 %v1235
        %v1469 = vpop.f32.mrf.mxu0
        %v1470 = vadd.f32 %v1274, %v1469
        %v1471 = vpop.f32.mrf.mxu0
        %v1472 = vpop.f32.mrf.mxu0
        %v1473 = vadd.f32 %v1274, %v1472
        %v1474 = vpop.f32.mrf.mxu0
        %1475 = vmatprep.mubr.bf16.mxu0 0
        %1476 = vmatmul.mubr.bf16.gmra.mxu0 %v1236
        %v1477 = vpop.f32.mrf.mxu0
        %v1478 = vadd.f32 %v1274, %v1477
        %v1479 = vpop.f32.mrf.mxu0
        %v1480 = vpop.f32.mrf.mxu0
        %v1481 = vadd.f32 %v1274, %v1480
        %v1482 = vpop.f32.mrf.mxu0
        %1483 = vmatprep.mubr.bf16.mxu0 0
        %1484 = vmatmul.mubr.bf16.gmra.mxu0 %v1237
        %v1485 = vpop.f32.mrf.mxu0
        %v1486 = vadd.f32 %v1274, %v1485
        %v1487 = vpop.f32.mrf.mxu0
        %v1488 = vpop.f32.mrf.mxu0
        %v1489 = vadd.f32 %v1274, %v1488
        %v1490 = vpop.f32.mrf.mxu0
        %1491 = vmatprep.mubr.bf16.mxu0 0
        %1492 = vmatmul.mubr.bf16.gmra.mxu0 %v1238
        %v1493 = vpop.f32.mrf.mxu0
        %v1494 = vadd.f32 %v1274, %v1493
        %v1495 = vpop.f32.mrf.mxu0
        %v1496 = vpop.f32.mrf.mxu0
        %v1497 = vadd.f32 %v1274, %v1496
        %v1498 = vpop.f32.mrf.mxu0
        %1499 = vmatprep.mubr.bf16.mxu0 0
        %1500 = vmatmul.mubr.bf16.gmra.mxu0 %v1239
        %v1501 = vpop.f32.mrf.mxu0
        %v1502 = vadd.f32 %v1274, %v1501
        %v1503 = vpop.f32.mrf.mxu0
        %v1504 = vpop.f32.mrf.mxu0
        %v1505 = vadd.f32 %v1274, %v1504
        %v1506 = vpop.f32.mrf.mxu0
        %1507 = vmatprep.mubr.bf16.mxu0 0
        %1508 = vmatmul.mubr.bf16.gmra.mxu0 %v1240
        %v1509 = vpop.f32.mrf.mxu0
        %v1510 = vadd.f32 %v1274, %v1509
        %v1511 = vpop.f32.mrf.mxu0
        %v1512 = vpop.f32.mrf.mxu0
        %v1513 = vadd.f32 %v1274, %v1512
        %v1514 = vpop.f32.mrf.mxu0
        %1515 = vmatprep.mubr.bf16.mxu0 0
        %1516 = vmatmul.mubr.bf16.gmra.mxu0 %v1241
        %v1517 = vpop.f32.mrf.mxu0
        %v1518 = vadd.f32 %v1274, %v1517
        %v1519 = vpop.f32.mrf.mxu0
        %v1520 = vpop.f32.mrf.mxu0
        %v1521 = vadd.f32 %v1274, %v1520
        %v1522 = vpop.f32.mrf.mxu0
        %1523 = vmatprep.mubr.bf16.mxu0 0
        %1524 = vmatmul.mubr.bf16.gmra.mxu0 %v1242
        %v1525 = vpop.f32.mrf.mxu0
        %v1526 = vadd.f32 %v1274, %v1525
        %v1527 = vpop.f32.mrf.mxu0
        %v1528 = vpop.f32.mrf.mxu0
        %v1529 = vadd.f32 %v1274, %v1528
        %v1530 = vpop.f32.mrf.mxu0
        %1531 = vmatprep.mubr.bf16.mxu0 0
        %1532 = vmatmul.mubr.bf16.gmra.mxu0 %v1243
        %v1533 = vpop.f32.mrf.mxu0
        %v1534 = vadd.f32 %v1274, %v1533
        %v1535 = vpop.f32.mrf.mxu0
        %v1536 = vpop.f32.mrf.mxu0
        %v1537 = vadd.f32 %v1274, %v1536
        %v1538 = vpop.f32.mrf.mxu0
        %1539 = vmatprep.mubr.bf16.mxu0 0
        %1540 = vmatmul.mubr.bf16.gmra.mxu0 %v1244
        %v1541 = vpop.f32.mrf.mxu0
        %v1542 = vadd.f32 %v1274, %v1541
        %v1543 = vpop.f32.mrf.mxu0
        %v1544 = vpop.f32.mrf.mxu0
        %v1545 = vadd.f32 %v1274, %v1544
        %v1546 = vpop.f32.mrf.mxu0
        %1547 = vmatprep.mubr.bf16.mxu0 0
        %1548 = vmatmul.mubr.bf16.gmra.mxu0 %v1245
        %v1549 = vpop.f32.mrf.mxu0
        %v1550 = vadd.f32 %v1274, %v1549
        %v1551 = vpop.f32.mrf.mxu0
        %v1552 = vpop.f32.mrf.mxu0
        %v1553 = vadd.f32 %v1274, %v1552
        %v1554 = vpop.f32.mrf.mxu0
        %1555 = vmatprep.mubr.bf16.mxu0 0
        %1556 = vmatmul.mubr.bf16.gmra.mxu0 %v1246
        %v1557 = vpop.f32.mrf.mxu0
        %v1558 = vadd.f32 %v1274, %v1557
        %v1559 = vpop.f32.mrf.mxu0
        %v1560 = vpop.f32.mrf.mxu0
        %v1561 = vadd.f32 %v1274, %v1560
        %v1562 = vpop.f32.mrf.mxu0
        %1563 = vmatprep.mubr.bf16.mxu0 0
        %1564 = vmatmul.mubr.bf16.gmra.mxu0 %v1247
        %v1565 = vpop.f32.mrf.mxu0
        %v1566 = vadd.f32 %v1274, %v1565
        %v1567 = vpop.f32.mrf.mxu0
        %v1568 = vpop.f32.mrf.mxu0
        %v1569 = vadd.f32 %v1274, %v1568
        %v1570 = vpop.f32.mrf.mxu0
        %1571 = vmatprep.mubr.bf16.mxu0 0
        %1572 = vmatmul.mubr.bf16.gmra.mxu0 %v1248
        %v1573 = vpop.f32.mrf.mxu0
        %v1574 = vadd.f32 %v1274, %v1573
        %v1575 = vpop.f32.mrf.mxu0
        %v1576 = vpop.f32.mrf.mxu0
        %v1577 = vadd.f32 %v1274, %v1576
        %v1578 = vpop.f32.mrf.mxu0
        %1579 = vmatprep.mubr.bf16.mxu0 0
        %1580 = vmatmul.mubr.bf16.gmra.mxu0 %v1249
        %v1581 = vpop.f32.mrf.mxu0
        %v1582 = vadd.f32 %v1274, %v1581
        %v1583 = vpop.f32.mrf.mxu0
        %v1584 = vpop.f32.mrf.mxu0
        %v1585 = vadd.f32 %v1274, %v1584
        %v1586 = vpop.f32.mrf.mxu0
        %1587 = vmatprep.mubr.bf16.mxu0 0
        %1588 = vmatmul.mubr.bf16.gmra.mxu0 %v1250
        %v1589 = vpop.f32.mrf.mxu0
        %v1590 = vadd.f32 %v1274, %v1589
        %v1591 = vpop.f32.mrf.mxu0
        %v1592 = vpop.f32.mrf.mxu0
        %v1593 = vadd.f32 %v1274, %v1592
        %v1594 = vpop.f32.mrf.mxu0
        %1595 = vmatprep.mubr.bf16.mxu0 0
        %1596 = vmatmul.mubr.bf16.gmra.mxu0 %v1251
        %v1597 = vpop.f32.mrf.mxu0
        %v1598 = vadd.f32 %v1274, %v1597
        %v1599 = vpop.f32.mrf.mxu0
        %v1600 = vpop.f32.mrf.mxu0
        %v1601 = vadd.f32 %v1274, %v1600
        %v1602 = vpop.f32.mrf.mxu0
        %1603 = vmatprep.mubr.bf16.mxu0 0
        %1604 = vmatmul.mubr.bf16.gmra.mxu0 %v1252
        %v1605 = vpop.f32.mrf.mxu0
        %v1606 = vadd.f32 %v1274, %v1605
        %v1607 = vpop.f32.mrf.mxu0
        %v1608 = vpop.f32.mrf.mxu0
        %v1609 = vadd.f32 %v1274, %v1608
        %v1610 = vpop.f32.mrf.mxu0
        %1611 = vdwg.mxu0
        %v1612 = vmax.f32 %v1358, 0.0
        %v1613 = vmax.f32 %v1361, 0.0
        %v1614 = vmax.f32 %v1366, 0.0
        %v1615 = vmax.f32 %v1369, 0.0
        %v1616 = vmax.f32 %v1374, 0.0
        %v1617 = vmax.f32 %v1377, 0.0
        %v1618 = vmax.f32 %v1382, 0.0
        %v1619 = vmax.f32 %v1385, 0.0
        %v1620 = vmax.f32 %v1390, 0.0
        %v1621 = vmax.f32 %v1393, 0.0
        %v1622 = vmax.f32 %v1398, 0.0
        %v1623 = vmax.f32 %v1401, 0.0
        %v1624 = vmax.f32 %v1406, 0.0
        %v1625 = vmax.f32 %v1409, 0.0
        %v1626 = vmax.f32 %v1414, 0.0
        %v1627 = vmax.f32 %v1417, 0.0
        %v1628 = vmax.f32 %v1422, 0.0
        %v1629 = vmax.f32 %v1425, 0.0
        %v1630 = vmax.f32 %v1430, 0.0
        %v1631 = vmax.f32 %v1433, 0.0
        %v1632 = vmax.f32 %v1438, 0.0
        %v1633 = vmax.f32 %v1441, 0.0
        %v1634 = vmax.f32 %v1446, 0.0
        %v1635 = vmax.f32 %v1449, 0.0
        %v1636 = vmax.f32 %v1454, 0.0
        %v1637 = vmax.f32 %v1457, 0.0
        %v1638 = vmax.f32 %v1462, 0.0
        %v1639 = vmax.f32 %v1465, 0.0
        %v1640 = vmax.f32 %v1470, 0.0
        %v1641 = vmax.f32 %v1473, 0.0
        %v1642 = vmax.f32 %v1478, 0.0
        %v1643 = vmax.f32 %v1481, 0.0
        %v1644 = vmax.f32 %v1486, 0.0
        %v1645 = vmax.f32 %v1489, 0.0
        %v1646 = vmax.f32 %v1494, 0.0
        %v1647 = vmax.f32 %v1497, 0.0
        %v1648 = vmax.f32 %v1502, 0.0
        %v1649 = vmax.f32 %v1505, 0.0
        %v1650 = vmax.f32 %v1510, 0.0
        %v1651 = vmax.f32 %v1513, 0.0
        %v1652 = vmax.f32 %v1518, 0.0
        %v1653 = vmax.f32 %v1521, 0.0
        %v1654 = vmax.f32 %v1526, 0.0
        %v1655 = vmax.f32 %v1529, 0.0
        %v1656 = vmax.f32 %v1534, 0.0
        %v1657 = vmax.f32 %v1537, 0.0
        %v1658 = vmax.f32 %v1542, 0.0
        %v1659 = vmax.f32 %v1545, 0.0
        %v1660 = vmax.f32 %v1550, 0.0
        %v1661 = vmax.f32 %v1553, 0.0
        %v1662 = vmax.f32 %v1558, 0.0
        %v1663 = vmax.f32 %v1561, 0.0
        %v1664 = vmax.f32 %v1566, 0.0
        %v1665 = vmax.f32 %v1569, 0.0
        %v1666 = vmax.f32 %v1574, 0.0
        %v1667 = vmax.f32 %v1577, 0.0
        %v1668 = vmax.f32 %v1582, 0.0
        %v1669 = vmax.f32 %v1585, 0.0
        %v1670 = vmax.f32 %v1590, 0.0
        %v1671 = vmax.f32 %v1593, 0.0
        %v1672 = vmax.f32 %v1598, 0.0
        %v1673 = vmax.f32 %v1601, 0.0
        %v1674 = vmax.f32 %v1606, 0.0
        %v1675 = vmax.f32 %v1609, 0.0
        %v1676 = vpack.c.bf16 %v1613, %v1612
        %v1677 = vpack.c.bf16 %v1615, %v1614
        %v1678 = vpack.c.bf16 %v1617, %v1616
        %v1679 = vpack.c.bf16 %v1619, %v1618
        %v1680 = vpack.c.bf16 %v1621, %v1620
        %v1681 = vpack.c.bf16 %v1623, %v1622
        %v1682 = vpack.c.bf16 %v1625, %v1624
        %v1683 = vpack.c.bf16 %v1627, %v1626
        %v1684 = vpack.c.bf16 %v1629, %v1628
        %v1685 = vpack.c.bf16 %v1631, %v1630
        %v1686 = vpack.c.bf16 %v1633, %v1632
        %v1687 = vpack.c.bf16 %v1635, %v1634
        %v1688 = vpack.c.bf16 %v1637, %v1636
        %v1689 = vpack.c.bf16 %v1639, %v1638
        %v1690 = vpack.c.bf16 %v1641, %v1640
        %v1691 = vpack.c.bf16 %v1643, %v1642
        %v1692 = vpack.c.bf16 %v1645, %v1644
        %v1693 = vpack.c.bf16 %v1647, %v1646
        %v1694 = vpack.c.bf16 %v1649, %v1648
        %v1695 = vpack.c.bf16 %v1651, %v1650
        %v1696 = vpack.c.bf16 %v1653, %v1652
        %v1697 = vpack.c.bf16 %v1655, %v1654
        %v1698 = vpack.c.bf16 %v1657, %v1656
        %v1699 = vpack.c.bf16 %v1659, %v1658
        %v1700 = vpack.c.bf16 %v1661, %v1660
        %v1701 = vpack.c.bf16 %v1663, %v1662
        %v1702 = vpack.c.bf16 %v1665, %v1664
        %v1703 = vpack.c.bf16 %v1667, %v1666
        %v1704 = vpack.c.bf16 %v1669, %v1668
        %v1705 = vpack.c.bf16 %v1671, %v1670
        %v1706 = vpack.c.bf16 %v1673, %v1672
        %v1707 = vpack.c.bf16 %v1675, %v1674
        %s1708 = scalar_lea.vmem %s2, 128
        %v1709 = vld [vmem:[%s1708] sm:$0xf]
        %v1710 = vld [vmem:[%s1708 + $0x4] sm:$0xf]
        %v1711 = vld [vmem:[%s1708 + $0x8] sm:$0xf]
        %v1712 = vld [vmem:[%s1708 + $0xc] sm:$0xf]
        %v1713 = vld [vmem:[%s1708 + $0x10] sm:$0xf]
        %v1714 = vld [vmem:[%s1708 + $0x14] sm:$0xf]
        %v1715 = vld [vmem:[%s1708 + $0x18] sm:$0xf]
        %v1716 = vld [vmem:[%s1708 + $0x1c] sm:$0xf]
        %v1717 = vld [vmem:[%s1708 + $0x20] sm:$0xf]
        %v1718 = vld [vmem:[%s1708 + $0x24] sm:$0xf]
        %v1719 = vld [vmem:[%s1708 + $0x28] sm:$0xf]
        %v1720 = vld [vmem:[%s1708 + $0x2c] sm:$0xf]
        %v1721 = vld [vmem:[%s1708 + $0x30] sm:$0xf]
        %v1722 = vld [vmem:[%s1708 + $0x34] sm:$0xf]
        %v1723 = vld [vmem:[%s1708 + $0x38] sm:$0xf]
        %v1724 = vld [vmem:[%s1708 + $0x3c] sm:$0xf]
        %v1725 = vld [vmem:[%s3 + $0x3] sm:$0x1]
        %v1726 = vlaneseq
        %v1727 = vshrl.u32 %v1726, 7
        %v1728 = vsub.s32 0, %v1727
        %v1729 = vrot.slane %v1725, %v1728
        %v1746 = vunpack.c.l.b16 %v1709
        %v1747 = vunpack.c.l.b16 %v1710
        %v1748 = vunpack.c.l.b16 %v1711
        %v1749 = vunpack.c.l.b16 %v1712
        %v1750 = vunpack.c.l.b16 %v1713
        %v1751 = vunpack.c.l.b16 %v1714
        %v1752 = vunpack.c.l.b16 %v1715
        %v1753 = vunpack.c.l.b16 %v1716
        %v1754 = vunpack.c.l.b16 %v1717
        %v1755 = vunpack.c.l.b16 %v1718
        %v1756 = vunpack.c.l.b16 %v1719
        %v1757 = vunpack.c.l.b16 %v1720
        %v1758 = vunpack.c.l.b16 %v1721
        %v1759 = vunpack.c.l.b16 %v1722
        %v1760 = vunpack.c.l.b16 %v1723
        %v1761 = vunpack.c.l.b16 %v1724
        %v1762 = vpack.c.b16 %v1747, %v1746
        %v1763 = vpack.c.b16 %v1749, %v1748
        %v1764 = vpack.c.b16 %v1751, %v1750
        %v1765 = vpack.c.b16 %v1753, %v1752
        %v1766 = vpack.c.b16 %v1755, %v1754
        %v1767 = vpack.c.b16 %v1757, %v1756
        %v1768 = vpack.c.b16 %v1759, %v1758
        %v1769 = vpack.c.b16 %v1761, %v1760
        %1778 = vmatprep.subr.bf16.mxu0 0
        %1779 = vmatpush1.bf16.msra.mxu0 %v1769
        %1780 = vmatprep.subr.bf16.mxu0 0
        %1781 = vmatpush1.bf16.msra.mxu0 %v1768
        %1782 = vmatprep.subr.bf16.mxu0 0
        %1783 = vmatpush1.bf16.msra.mxu0 %v1767
        %1784 = vmatprep.subr.bf16.mxu0 0
        %1785 = vmatpush1.bf16.msra.mxu0 %v1766
        %1786 = vmatprep.subr.bf16.mxu0 0
        %1787 = vmatpush1.bf16.msra.mxu0 %v1765
        %1788 = vmatprep.subr.bf16.mxu0 0
        %1789 = vmatpush1.bf16.msra.mxu0 %v1764
        %1790 = vmatprep.subr.bf16.mxu0 0
        %1791 = vmatpush1.bf16.msra.mxu0 %v1763
        %1792 = vmatprep.subr.bf16.mxu0 0
        %1793 = vmatpush1.bf16.msra.mxu0 %v1762
        %1794 = vmatprep.subr.bf16.mxu0 0
        %1795 = vmatpush2.bf16.msra.mxu0 0
        %1796 = vmatprep.subr.bf16.mxu0 0
        %1797 = vmatpush2.bf16.msra.mxu0 0
        %1798 = vmatprep.subr.bf16.mxu0 0
        %1799 = vmatpush2.bf16.msra.mxu0 0
        %1800 = vmatprep.subr.bf16.mxu0 0
        %1801 = vmatpush2.bf16.msra.mxu0 0
        %1802 = vmatprep.subr.bf16.mxu0 0
        %1803 = vmatpush2.bf16.msra.mxu0 0
        %1804 = vmatprep.subr.bf16.mxu0 0
        %1805 = vmatpush2.bf16.msra.mxu0 0
        %1806 = vmatprep.subr.bf16.mxu0 0
        %1807 = vmatpush2.bf16.msra.mxu0 0
        %1808 = vmatprep.subr.bf16.mxu0 0
        %1809 = vmatpush2.bf16.msra.mxu0 0
        %1810 = vmatprep.mubr.bf16.mxu0 0
        %1811 = vmatmul.mubr.bf16.gmra.mxu0 %v1676
        %v1812 = vpop.f32.mrf.mxu0
        %v1813 = vadd.f32 %v1729, %v1812
        %v1814 = vpop.f32.mrf.mxu0
        %v1815 = vpop.f32.mrf.mxu0
        %v1816 = vadd.f32 %v1729, %v1815
        %v1817 = vpop.f32.mrf.mxu0
        %1818 = vmatprep.mubr.bf16.mxu0 0
        %1819 = vmatmul.mubr.bf16.gmra.mxu0 %v1677
        %v1820 = vpop.f32.mrf.mxu0
        %v1821 = vadd.f32 %v1729, %v1820
        %v1822 = vpop.f32.mrf.mxu0
        %v1823 = vpop.f32.mrf.mxu0
        %v1824 = vadd.f32 %v1729, %v1823
        %v1825 = vpop.f32.mrf.mxu0
        %1826 = vmatprep.mubr.bf16.mxu0 0
        %1827 = vmatmul.mubr.bf16.gmra.mxu0 %v1678
        %v1828 = vpop.f32.mrf.mxu0
        %v1829 = vadd.f32 %v1729, %v1828
        %v1830 = vpop.f32.mrf.mxu0
        %v1831 = vpop.f32.mrf.mxu0
        %v1832 = vadd.f32 %v1729, %v1831
        %v1833 = vpop.f32.mrf.mxu0
        %1834 = vmatprep.mubr.bf16.mxu0 0
        %1835 = vmatmul.mubr.bf16.gmra.mxu0 %v1679
        %v1836 = vpop.f32.mrf.mxu0
        %v1837 = vadd.f32 %v1729, %v1836
        %v1838 = vpop.f32.mrf.mxu0
        %v1839 = vpop.f32.mrf.mxu0
        %v1840 = vadd.f32 %v1729, %v1839
        %v1841 = vpop.f32.mrf.mxu0
        %1842 = vmatprep.mubr.bf16.mxu0 0
        %1843 = vmatmul.mubr.bf16.gmra.mxu0 %v1680
        %v1844 = vpop.f32.mrf.mxu0
        %v1845 = vadd.f32 %v1729, %v1844
        %v1846 = vpop.f32.mrf.mxu0
        %v1847 = vpop.f32.mrf.mxu0
        %v1848 = vadd.f32 %v1729, %v1847
        %v1849 = vpop.f32.mrf.mxu0
        %1850 = vmatprep.mubr.bf16.mxu0 0
        %1851 = vmatmul.mubr.bf16.gmra.mxu0 %v1681
        %v1852 = vpop.f32.mrf.mxu0
        %v1853 = vadd.f32 %v1729, %v1852
        %v1854 = vpop.f32.mrf.mxu0
        %v1855 = vpop.f32.mrf.mxu0
        %v1856 = vadd.f32 %v1729, %v1855
        %v1857 = vpop.f32.mrf.mxu0
        %1858 = vmatprep.mubr.bf16.mxu0 0
        %1859 = vmatmul.mubr.bf16.gmra.mxu0 %v1682
        %v1860 = vpop.f32.mrf.mxu0
        %v1861 = vadd.f32 %v1729, %v1860
        %v1862 = vpop.f32.mrf.mxu0
        %v1863 = vpop.f32.mrf.mxu0
        %v1864 = vadd.f32 %v1729, %v1863
        %v1865 = vpop.f32.mrf.mxu0
        %1866 = vmatprep.mubr.bf16.mxu0 0
        %1867 = vmatmul.mubr.bf16.gmra.mxu0 %v1683
        %v1868 = vpop.f32.mrf.mxu0
        %v1869 = vadd.f32 %v1729, %v1868
        %v1870 = vpop.f32.mrf.mxu0
        %v1871 = vpop.f32.mrf.mxu0
        %v1872 = vadd.f32 %v1729, %v1871
        %v1873 = vpop.f32.mrf.mxu0
        %1874 = vmatprep.mubr.bf16.mxu0 0
        %1875 = vmatmul.mubr.bf16.gmra.mxu0 %v1684
        %v1876 = vpop.f32.mrf.mxu0
        %v1877 = vadd.f32 %v1729, %v1876
        %v1878 = vpop.f32.mrf.mxu0
        %v1879 = vpop.f32.mrf.mxu0
        %v1880 = vadd.f32 %v1729, %v1879
        %v1881 = vpop.f32.mrf.mxu0
        %1882 = vmatprep.mubr.bf16.mxu0 0
        %1883 = vmatmul.mubr.bf16.gmra.mxu0 %v1685
        %v1884 = vpop.f32.mrf.mxu0
        %v1885 = vadd.f32 %v1729, %v1884
        %v1886 = vpop.f32.mrf.mxu0
        %v1887 = vpop.f32.mrf.mxu0
        %v1888 = vadd.f32 %v1729, %v1887
        %v1889 = vpop.f32.mrf.mxu0
        %1890 = vmatprep.mubr.bf16.mxu0 0
        %1891 = vmatmul.mubr.bf16.gmra.mxu0 %v1686
        %v1892 = vpop.f32.mrf.mxu0
        %v1893 = vadd.f32 %v1729, %v1892
        %v1894 = vpop.f32.mrf.mxu0
        %v1895 = vpop.f32.mrf.mxu0
        %v1896 = vadd.f32 %v1729, %v1895
        %v1897 = vpop.f32.mrf.mxu0
        %1898 = vmatprep.mubr.bf16.mxu0 0
        %1899 = vmatmul.mubr.bf16.gmra.mxu0 %v1687
        %v1900 = vpop.f32.mrf.mxu0
        %v1901 = vadd.f32 %v1729, %v1900
        %v1902 = vpop.f32.mrf.mxu0
        %v1903 = vpop.f32.mrf.mxu0
        %v1904 = vadd.f32 %v1729, %v1903
        %v1905 = vpop.f32.mrf.mxu0
        %1906 = vmatprep.mubr.bf16.mxu0 0
        %1907 = vmatmul.mubr.bf16.gmra.mxu0 %v1688
        %v1908 = vpop.f32.mrf.mxu0
        %v1909 = vadd.f32 %v1729, %v1908
        %v1910 = vpop.f32.mrf.mxu0
        %v1911 = vpop.f32.mrf.mxu0
        %v1912 = vadd.f32 %v1729, %v1911
        %v1913 = vpop.f32.mrf.mxu0
        %1914 = vmatprep.mubr.bf16.mxu0 0
        %1915 = vmatmul.mubr.bf16.gmra.mxu0 %v1689
        %v1916 = vpop.f32.mrf.mxu0
        %v1917 = vadd.f32 %v1729, %v1916
        %v1918 = vpop.f32.mrf.mxu0
        %v1919 = vpop.f32.mrf.mxu0
        %v1920 = vadd.f32 %v1729, %v1919
        %v1921 = vpop.f32.mrf.mxu0
        %1922 = vmatprep.mubr.bf16.mxu0 0
        %1923 = vmatmul.mubr.bf16.gmra.mxu0 %v1690
        %v1924 = vpop.f32.mrf.mxu0
        %v1925 = vadd.f32 %v1729, %v1924
        %v1926 = vpop.f32.mrf.mxu0
        %v1927 = vpop.f32.mrf.mxu0
        %v1928 = vadd.f32 %v1729, %v1927
        %v1929 = vpop.f32.mrf.mxu0
        %1930 = vmatprep.mubr.bf16.mxu0 0
        %1931 = vmatmul.mubr.bf16.gmra.mxu0 %v1691
        %v1932 = vpop.f32.mrf.mxu0
        %v1933 = vadd.f32 %v1729, %v1932
        %v1934 = vpop.f32.mrf.mxu0
        %v1935 = vpop.f32.mrf.mxu0
        %v1936 = vadd.f32 %v1729, %v1935
        %v1937 = vpop.f32.mrf.mxu0
        %1938 = vmatprep.mubr.bf16.mxu0 0
        %1939 = vmatmul.mubr.bf16.gmra.mxu0 %v1692
        %v1940 = vpop.f32.mrf.mxu0
        %v1941 = vadd.f32 %v1729, %v1940
        %v1942 = vpop.f32.mrf.mxu0
        %v1943 = vpop.f32.mrf.mxu0
        %v1944 = vadd.f32 %v1729, %v1943
        %v1945 = vpop.f32.mrf.mxu0
        %1946 = vmatprep.mubr.bf16.mxu0 0
        %1947 = vmatmul.mubr.bf16.gmra.mxu0 %v1693
        %v1948 = vpop.f32.mrf.mxu0
        %v1949 = vadd.f32 %v1729, %v1948
        %v1950 = vpop.f32.mrf.mxu0
        %v1951 = vpop.f32.mrf.mxu0
        %v1952 = vadd.f32 %v1729, %v1951
        %v1953 = vpop.f32.mrf.mxu0
        %1954 = vmatprep.mubr.bf16.mxu0 0
        %1955 = vmatmul.mubr.bf16.gmra.mxu0 %v1694
        %v1956 = vpop.f32.mrf.mxu0
        %v1957 = vadd.f32 %v1729, %v1956
        %v1958 = vpop.f32.mrf.mxu0
        %v1959 = vpop.f32.mrf.mxu0
        %v1960 = vadd.f32 %v1729, %v1959
        %v1961 = vpop.f32.mrf.mxu0
        %1962 = vmatprep.mubr.bf16.mxu0 0
        %1963 = vmatmul.mubr.bf16.gmra.mxu0 %v1695
        %v1964 = vpop.f32.mrf.mxu0
        %v1965 = vadd.f32 %v1729, %v1964
        %v1966 = vpop.f32.mrf.mxu0
        %v1967 = vpop.f32.mrf.mxu0
        %v1968 = vadd.f32 %v1729, %v1967
        %v1969 = vpop.f32.mrf.mxu0
        %1970 = vmatprep.mubr.bf16.mxu0 0
        %1971 = vmatmul.mubr.bf16.gmra.mxu0 %v1696
        %v1972 = vpop.f32.mrf.mxu0
        %v1973 = vadd.f32 %v1729, %v1972
        %v1974 = vpop.f32.mrf.mxu0
        %v1975 = vpop.f32.mrf.mxu0
        %v1976 = vadd.f32 %v1729, %v1975
        %v1977 = vpop.f32.mrf.mxu0
        %1978 = vmatprep.mubr.bf16.mxu0 0
        %1979 = vmatmul.mubr.bf16.gmra.mxu0 %v1697
        %v1980 = vpop.f32.mrf.mxu0
        %v1981 = vadd.f32 %v1729, %v1980
        %v1982 = vpop.f32.mrf.mxu0
        %v1983 = vpop.f32.mrf.mxu0
        %v1984 = vadd.f32 %v1729, %v1983
        %v1985 = vpop.f32.mrf.mxu0
        %1986 = vmatprep.mubr.bf16.mxu0 0
        %1987 = vmatmul.mubr.bf16.gmra.mxu0 %v1698
        %v1988 = vpop.f32.mrf.mxu0
        %v1989 = vadd.f32 %v1729, %v1988
        %v1990 = vpop.f32.mrf.mxu0
        %v1991 = vpop.f32.mrf.mxu0
        %v1992 = vadd.f32 %v1729, %v1991
        %v1993 = vpop.f32.mrf.mxu0
        %1994 = vmatprep.mubr.bf16.mxu0 0
        %1995 = vmatmul.mubr.bf16.gmra.mxu0 %v1699
        %v1996 = vpop.f32.mrf.mxu0
        %v1997 = vadd.f32 %v1729, %v1996
        %v1998 = vpop.f32.mrf.mxu0
        %v1999 = vpop.f32.mrf.mxu0
        %v2000 = vadd.f32 %v1729, %v1999
        %v2001 = vpop.f32.mrf.mxu0
        %2002 = vmatprep.mubr.bf16.mxu0 0
        %2003 = vmatmul.mubr.bf16.gmra.mxu0 %v1700
        %v2004 = vpop.f32.mrf.mxu0
        %v2005 = vadd.f32 %v1729, %v2004
        %v2006 = vpop.f32.mrf.mxu0
        %v2007 = vpop.f32.mrf.mxu0
        %v2008 = vadd.f32 %v1729, %v2007
        %v2009 = vpop.f32.mrf.mxu0
        %2010 = vmatprep.mubr.bf16.mxu0 0
        %2011 = vmatmul.mubr.bf16.gmra.mxu0 %v1701
        %v2012 = vpop.f32.mrf.mxu0
        %v2013 = vadd.f32 %v1729, %v2012
        %v2014 = vpop.f32.mrf.mxu0
        %v2015 = vpop.f32.mrf.mxu0
        %v2016 = vadd.f32 %v1729, %v2015
        %v2017 = vpop.f32.mrf.mxu0
        %2018 = vmatprep.mubr.bf16.mxu0 0
        %2019 = vmatmul.mubr.bf16.gmra.mxu0 %v1702
        %v2020 = vpop.f32.mrf.mxu0
        %v2021 = vadd.f32 %v1729, %v2020
        %v2022 = vpop.f32.mrf.mxu0
        %v2023 = vpop.f32.mrf.mxu0
        %v2024 = vadd.f32 %v1729, %v2023
        %v2025 = vpop.f32.mrf.mxu0
        %2026 = vmatprep.mubr.bf16.mxu0 0
        %2027 = vmatmul.mubr.bf16.gmra.mxu0 %v1703
        %v2028 = vpop.f32.mrf.mxu0
        %v2029 = vadd.f32 %v1729, %v2028
        %v2030 = vpop.f32.mrf.mxu0
        %v2031 = vpop.f32.mrf.mxu0
        %v2032 = vadd.f32 %v1729, %v2031
        %v2033 = vpop.f32.mrf.mxu0
        %2034 = vmatprep.mubr.bf16.mxu0 0
        %2035 = vmatmul.mubr.bf16.gmra.mxu0 %v1704
        %v2036 = vpop.f32.mrf.mxu0
        %v2037 = vadd.f32 %v1729, %v2036
        %v2038 = vpop.f32.mrf.mxu0
        %v2039 = vpop.f32.mrf.mxu0
        %v2040 = vadd.f32 %v1729, %v2039
        %v2041 = vpop.f32.mrf.mxu0
        %2042 = vmatprep.mubr.bf16.mxu0 0
        %2043 = vmatmul.mubr.bf16.gmra.mxu0 %v1705
        %v2044 = vpop.f32.mrf.mxu0
        %v2045 = vadd.f32 %v1729, %v2044
        %v2046 = vpop.f32.mrf.mxu0
        %v2047 = vpop.f32.mrf.mxu0
        %v2048 = vadd.f32 %v1729, %v2047
        %v2049 = vpop.f32.mrf.mxu0
        %2050 = vmatprep.mubr.bf16.mxu0 0
        %2051 = vmatmul.mubr.bf16.gmra.mxu0 %v1706
        %v2052 = vpop.f32.mrf.mxu0
        %v2053 = vadd.f32 %v1729, %v2052
        %v2054 = vpop.f32.mrf.mxu0
        %v2055 = vpop.f32.mrf.mxu0
        %v2056 = vadd.f32 %v1729, %v2055
        %v2057 = vpop.f32.mrf.mxu0
        %2058 = vmatprep.mubr.bf16.mxu0 0
        %2059 = vmatmul.mubr.bf16.gmra.mxu0 %v1707
        %v2060 = vpop.f32.mrf.mxu0
        %v2061 = vadd.f32 %v1729, %v2060
        %v2062 = vpop.f32.mrf.mxu0
        %v2063 = vpop.f32.mrf.mxu0
        %v2064 = vadd.f32 %v1729, %v2063
        %v2065 = vpop.f32.mrf.mxu0
        %2066 = vdwg.mxu0
        %v2067 = vmax.f32 %v1813, 0.0
        %v2068 = vmax.f32 %v1816, 0.0
        %v2069 = vmax.f32 %v1821, 0.0
        %v2070 = vmax.f32 %v1824, 0.0
        %v2071 = vmax.f32 %v1829, 0.0
        %v2072 = vmax.f32 %v1832, 0.0
        %v2073 = vmax.f32 %v1837, 0.0
        %v2074 = vmax.f32 %v1840, 0.0
        %v2075 = vmax.f32 %v1845, 0.0
        %v2076 = vmax.f32 %v1848, 0.0
        %v2077 = vmax.f32 %v1853, 0.0
        %v2078 = vmax.f32 %v1856, 0.0
        %v2079 = vmax.f32 %v1861, 0.0
        %v2080 = vmax.f32 %v1864, 0.0
        %v2081 = vmax.f32 %v1869, 0.0
        %v2082 = vmax.f32 %v1872, 0.0
        %v2083 = vmax.f32 %v1877, 0.0
        %v2084 = vmax.f32 %v1880, 0.0
        %v2085 = vmax.f32 %v1885, 0.0
        %v2086 = vmax.f32 %v1888, 0.0
        %v2087 = vmax.f32 %v1893, 0.0
        %v2088 = vmax.f32 %v1896, 0.0
        %v2089 = vmax.f32 %v1901, 0.0
        %v2090 = vmax.f32 %v1904, 0.0
        %v2091 = vmax.f32 %v1909, 0.0
        %v2092 = vmax.f32 %v1912, 0.0
        %v2093 = vmax.f32 %v1917, 0.0
        %v2094 = vmax.f32 %v1920, 0.0
        %v2095 = vmax.f32 %v1925, 0.0
        %v2096 = vmax.f32 %v1928, 0.0
        %v2097 = vmax.f32 %v1933, 0.0
        %v2098 = vmax.f32 %v1936, 0.0
        %v2099 = vmax.f32 %v1941, 0.0
        %v2100 = vmax.f32 %v1944, 0.0
        %v2101 = vmax.f32 %v1949, 0.0
        %v2102 = vmax.f32 %v1952, 0.0
        %v2103 = vmax.f32 %v1957, 0.0
        %v2104 = vmax.f32 %v1960, 0.0
        %v2105 = vmax.f32 %v1965, 0.0
        %v2106 = vmax.f32 %v1968, 0.0
        %v2107 = vmax.f32 %v1973, 0.0
        %v2108 = vmax.f32 %v1976, 0.0
        %v2109 = vmax.f32 %v1981, 0.0
        %v2110 = vmax.f32 %v1984, 0.0
        %v2111 = vmax.f32 %v1989, 0.0
        %v2112 = vmax.f32 %v1992, 0.0
        %v2113 = vmax.f32 %v1997, 0.0
        %v2114 = vmax.f32 %v2000, 0.0
        %v2115 = vmax.f32 %v2005, 0.0
        %v2116 = vmax.f32 %v2008, 0.0
        %v2117 = vmax.f32 %v2013, 0.0
        %v2118 = vmax.f32 %v2016, 0.0
        %v2119 = vmax.f32 %v2021, 0.0
        %v2120 = vmax.f32 %v2024, 0.0
        %v2121 = vmax.f32 %v2029, 0.0
        %v2122 = vmax.f32 %v2032, 0.0
        %v2123 = vmax.f32 %v2037, 0.0
        %v2124 = vmax.f32 %v2040, 0.0
        %v2125 = vmax.f32 %v2045, 0.0
        %v2126 = vmax.f32 %v2048, 0.0
        %v2127 = vmax.f32 %v2053, 0.0
        %v2128 = vmax.f32 %v2056, 0.0
        %v2129 = vmax.f32 %v2061, 0.0
        %v2130 = vmax.f32 %v2064, 0.0
        %v2131 = vpack.c.bf16 %v2068, %v2067
        %v2132 = vpack.c.bf16 %v2070, %v2069
        %v2133 = vpack.c.bf16 %v2072, %v2071
        %v2134 = vpack.c.bf16 %v2074, %v2073
        %v2135 = vpack.c.bf16 %v2076, %v2075
        %v2136 = vpack.c.bf16 %v2078, %v2077
        %v2137 = vpack.c.bf16 %v2080, %v2079
        %v2138 = vpack.c.bf16 %v2082, %v2081
        %v2139 = vpack.c.bf16 %v2084, %v2083
        %v2140 = vpack.c.bf16 %v2086, %v2085
        %v2141 = vpack.c.bf16 %v2088, %v2087
        %v2142 = vpack.c.bf16 %v2090, %v2089
        %v2143 = vpack.c.bf16 %v2092, %v2091
        %v2144 = vpack.c.bf16 %v2094, %v2093
        %v2145 = vpack.c.bf16 %v2096, %v2095
        %v2146 = vpack.c.bf16 %v2098, %v2097
        %v2147 = vpack.c.bf16 %v2100, %v2099
        %v2148 = vpack.c.bf16 %v2102, %v2101
        %v2149 = vpack.c.bf16 %v2104, %v2103
        %v2150 = vpack.c.bf16 %v2106, %v2105
        %v2151 = vpack.c.bf16 %v2108, %v2107
        %v2152 = vpack.c.bf16 %v2110, %v2109
        %v2153 = vpack.c.bf16 %v2112, %v2111
        %v2154 = vpack.c.bf16 %v2114, %v2113
        %v2155 = vpack.c.bf16 %v2116, %v2115
        %v2156 = vpack.c.bf16 %v2118, %v2117
        %v2157 = vpack.c.bf16 %v2120, %v2119
        %v2158 = vpack.c.bf16 %v2122, %v2121
        %v2159 = vpack.c.bf16 %v2124, %v2123
        %v2160 = vpack.c.bf16 %v2126, %v2125
        %v2161 = vpack.c.bf16 %v2128, %v2127
        %v2162 = vpack.c.bf16 %v2130, %v2129
        %s2163 = scalar_lea.vmem %s2, 192
        %v2164 = vld [vmem:[%s2163] sm:$0xf]
        %v2165 = vld [vmem:[%s2163 + $0x4] sm:$0xf]
        %v2166 = vld [vmem:[%s2163 + $0x8] sm:$0xf]
        %v2167 = vld [vmem:[%s2163 + $0xc] sm:$0xf]
        %v2168 = vld [vmem:[%s2163 + $0x10] sm:$0xf]
        %v2169 = vld [vmem:[%s2163 + $0x14] sm:$0xf]
        %v2170 = vld [vmem:[%s2163 + $0x18] sm:$0xf]
        %v2171 = vld [vmem:[%s2163 + $0x1c] sm:$0xf]
        %v2172 = vld [vmem:[%s2163 + $0x20] sm:$0xf]
        %v2173 = vld [vmem:[%s2163 + $0x24] sm:$0xf]
        %v2174 = vld [vmem:[%s2163 + $0x28] sm:$0xf]
        %v2175 = vld [vmem:[%s2163 + $0x2c] sm:$0xf]
        %v2176 = vld [vmem:[%s2163 + $0x30] sm:$0xf]
        %v2177 = vld [vmem:[%s2163 + $0x34] sm:$0xf]
        %v2178 = vld [vmem:[%s2163 + $0x38] sm:$0xf]
        %v2179 = vld [vmem:[%s2163 + $0x3c] sm:$0xf]
        %v2180 = vld [vmem:[%s3 + $0x4] sm:$0x1]
        %v2181 = vlaneseq
        %v2182 = vshrl.u32 %v2181, 7
        %v2183 = vsub.s32 0, %v2182
        %v2184 = vrot.slane %v2180, %v2183
        %v2201 = vunpack.c.l.b16 %v2164
        %v2202 = vunpack.c.l.b16 %v2165
        %v2203 = vunpack.c.l.b16 %v2166
        %v2204 = vunpack.c.l.b16 %v2167
        %v2205 = vunpack.c.l.b16 %v2168
        %v2206 = vunpack.c.l.b16 %v2169
        %v2207 = vunpack.c.l.b16 %v2170
        %v2208 = vunpack.c.l.b16 %v2171
        %v2209 = vunpack.c.l.b16 %v2172
        %v2210 = vunpack.c.l.b16 %v2173
        %v2211 = vunpack.c.l.b16 %v2174
        %v2212 = vunpack.c.l.b16 %v2175
        %v2213 = vunpack.c.l.b16 %v2176
        %v2214 = vunpack.c.l.b16 %v2177
        %v2215 = vunpack.c.l.b16 %v2178
        %v2216 = vunpack.c.l.b16 %v2179
        %v2217 = vpack.c.b16 %v2202, %v2201
        %v2218 = vpack.c.b16 %v2204, %v2203
        %v2219 = vpack.c.b16 %v2206, %v2205
        %v2220 = vpack.c.b16 %v2208, %v2207
        %v2221 = vpack.c.b16 %v2210, %v2209
        %v2222 = vpack.c.b16 %v2212, %v2211
        %v2223 = vpack.c.b16 %v2214, %v2213
        %v2224 = vpack.c.b16 %v2216, %v2215
        %2233 = vmatprep.subr.bf16.mxu0 0
        %2234 = vmatpush1.bf16.msra.mxu0 %v2224
        %2235 = vmatprep.subr.bf16.mxu0 0
        %2236 = vmatpush1.bf16.msra.mxu0 %v2223
        %2237 = vmatprep.subr.bf16.mxu0 0
        %2238 = vmatpush1.bf16.msra.mxu0 %v2222
        %2239 = vmatprep.subr.bf16.mxu0 0
        %2240 = vmatpush1.bf16.msra.mxu0 %v2221
        %2241 = vmatprep.subr.bf16.mxu0 0
        %2242 = vmatpush1.bf16.msra.mxu0 %v2220
        %2243 = vmatprep.subr.bf16.mxu0 0
        %2244 = vmatpush1.bf16.msra.mxu0 %v2219
        %2245 = vmatprep.subr.bf16.mxu0 0
        %2246 = vmatpush1.bf16.msra.mxu0 %v2218
        %2247 = vmatprep.subr.bf16.mxu0 0
        %2248 = vmatpush1.bf16.msra.mxu0 %v2217
        %2249 = vmatprep.subr.bf16.mxu0 0
        %2250 = vmatpush2.bf16.msra.mxu0 0
        %2251 = vmatprep.subr.bf16.mxu0 0
        %2252 = vmatpush2.bf16.msra.mxu0 0
        %2253 = vmatprep.subr.bf16.mxu0 0
        %2254 = vmatpush2.bf16.msra.mxu0 0
        %2255 = vmatprep.subr.bf16.mxu0 0
        %2256 = vmatpush2.bf16.msra.mxu0 0
        %2257 = vmatprep.subr.bf16.mxu0 0
        %2258 = vmatpush2.bf16.msra.mxu0 0
        %2259 = vmatprep.subr.bf16.mxu0 0
        %2260 = vmatpush2.bf16.msra.mxu0 0
        %2261 = vmatprep.subr.bf16.mxu0 0
        %2262 = vmatpush2.bf16.msra.mxu0 0
        %2263 = vmatprep.subr.bf16.mxu0 0
        %2264 = vmatpush2.bf16.msra.mxu0 0
        %2265 = vmatprep.mubr.bf16.mxu0 0
        %2266 = vmatmul.mubr.bf16.gmra.mxu0 %v2131
        %v2267 = vpop.f32.mrf.mxu0
        %v2268 = vadd.f32 %v2184, %v2267
        %v2269 = vpop.f32.mrf.mxu0
        %v2270 = vpop.f32.mrf.mxu0
        %v2271 = vadd.f32 %v2184, %v2270
        %v2272 = vpop.f32.mrf.mxu0
        %2273 = vmatprep.mubr.bf16.mxu0 0
        %2274 = vmatmul.mubr.bf16.gmra.mxu0 %v2132
        %v2275 = vpop.f32.mrf.mxu0
        %v2276 = vadd.f32 %v2184, %v2275
        %v2277 = vpop.f32.mrf.mxu0
        %v2278 = vpop.f32.mrf.mxu0
        %v2279 = vadd.f32 %v2184, %v2278
        %v2280 = vpop.f32.mrf.mxu0
        %2281 = vmatprep.mubr.bf16.mxu0 0
        %2282 = vmatmul.mubr.bf16.gmra.mxu0 %v2133
        %v2283 = vpop.f32.mrf.mxu0
        %v2284 = vadd.f32 %v2184, %v2283
        %v2285 = vpop.f32.mrf.mxu0
        %v2286 = vpop.f32.mrf.mxu0
        %v2287 = vadd.f32 %v2184, %v2286
        %v2288 = vpop.f32.mrf.mxu0
        %2289 = vmatprep.mubr.bf16.mxu0 0
        %2290 = vmatmul.mubr.bf16.gmra.mxu0 %v2134
        %v2291 = vpop.f32.mrf.mxu0
        %v2292 = vadd.f32 %v2184, %v2291
        %v2293 = vpop.f32.mrf.mxu0
        %v2294 = vpop.f32.mrf.mxu0
        %v2295 = vadd.f32 %v2184, %v2294
        %v2296 = vpop.f32.mrf.mxu0
        %2297 = vmatprep.mubr.bf16.mxu0 0
        %2298 = vmatmul.mubr.bf16.gmra.mxu0 %v2135
        %v2299 = vpop.f32.mrf.mxu0
        %v2300 = vadd.f32 %v2184, %v2299
        %v2301 = vpop.f32.mrf.mxu0
        %v2302 = vpop.f32.mrf.mxu0
        %v2303 = vadd.f32 %v2184, %v2302
        %v2304 = vpop.f32.mrf.mxu0
        %2305 = vmatprep.mubr.bf16.mxu0 0
        %2306 = vmatmul.mubr.bf16.gmra.mxu0 %v2136
        %v2307 = vpop.f32.mrf.mxu0
        %v2308 = vadd.f32 %v2184, %v2307
        %v2309 = vpop.f32.mrf.mxu0
        %v2310 = vpop.f32.mrf.mxu0
        %v2311 = vadd.f32 %v2184, %v2310
        %v2312 = vpop.f32.mrf.mxu0
        %2313 = vmatprep.mubr.bf16.mxu0 0
        %2314 = vmatmul.mubr.bf16.gmra.mxu0 %v2137
        %v2315 = vpop.f32.mrf.mxu0
        %v2316 = vadd.f32 %v2184, %v2315
        %v2317 = vpop.f32.mrf.mxu0
        %v2318 = vpop.f32.mrf.mxu0
        %v2319 = vadd.f32 %v2184, %v2318
        %v2320 = vpop.f32.mrf.mxu0
        %2321 = vmatprep.mubr.bf16.mxu0 0
        %2322 = vmatmul.mubr.bf16.gmra.mxu0 %v2138
        %v2323 = vpop.f32.mrf.mxu0
        %v2324 = vadd.f32 %v2184, %v2323
        %v2325 = vpop.f32.mrf.mxu0
        %v2326 = vpop.f32.mrf.mxu0
        %v2327 = vadd.f32 %v2184, %v2326
        %v2328 = vpop.f32.mrf.mxu0
        %2329 = vmatprep.mubr.bf16.mxu0 0
        %2330 = vmatmul.mubr.bf16.gmra.mxu0 %v2139
        %v2331 = vpop.f32.mrf.mxu0
        %v2332 = vadd.f32 %v2184, %v2331
        %v2333 = vpop.f32.mrf.mxu0
        %v2334 = vpop.f32.mrf.mxu0
        %v2335 = vadd.f32 %v2184, %v2334
        %v2336 = vpop.f32.mrf.mxu0
        %2337 = vmatprep.mubr.bf16.mxu0 0
        %2338 = vmatmul.mubr.bf16.gmra.mxu0 %v2140
        %v2339 = vpop.f32.mrf.mxu0
        %v2340 = vadd.f32 %v2184, %v2339
        %v2341 = vpop.f32.mrf.mxu0
        %v2342 = vpop.f32.mrf.mxu0
        %v2343 = vadd.f32 %v2184, %v2342
        %v2344 = vpop.f32.mrf.mxu0
        %2345 = vmatprep.mubr.bf16.mxu0 0
        %2346 = vmatmul.mubr.bf16.gmra.mxu0 %v2141
        %v2347 = vpop.f32.mrf.mxu0
        %v2348 = vadd.f32 %v2184, %v2347
        %v2349 = vpop.f32.mrf.mxu0
        %v2350 = vpop.f32.mrf.mxu0
        %v2351 = vadd.f32 %v2184, %v2350
        %v2352 = vpop.f32.mrf.mxu0
        %2353 = vmatprep.mubr.bf16.mxu0 0
        %2354 = vmatmul.mubr.bf16.gmra.mxu0 %v2142
        %v2355 = vpop.f32.mrf.mxu0
        %v2356 = vadd.f32 %v2184, %v2355
        %v2357 = vpop.f32.mrf.mxu0
        %v2358 = vpop.f32.mrf.mxu0
        %v2359 = vadd.f32 %v2184, %v2358
        %v2360 = vpop.f32.mrf.mxu0
        %2361 = vmatprep.mubr.bf16.mxu0 0
        %2362 = vmatmul.mubr.bf16.gmra.mxu0 %v2143
        %v2363 = vpop.f32.mrf.mxu0
        %v2364 = vadd.f32 %v2184, %v2363
        %v2365 = vpop.f32.mrf.mxu0
        %v2366 = vpop.f32.mrf.mxu0
        %v2367 = vadd.f32 %v2184, %v2366
        %v2368 = vpop.f32.mrf.mxu0
        %2369 = vmatprep.mubr.bf16.mxu0 0
        %2370 = vmatmul.mubr.bf16.gmra.mxu0 %v2144
        %v2371 = vpop.f32.mrf.mxu0
        %v2372 = vadd.f32 %v2184, %v2371
        %v2373 = vpop.f32.mrf.mxu0
        %v2374 = vpop.f32.mrf.mxu0
        %v2375 = vadd.f32 %v2184, %v2374
        %v2376 = vpop.f32.mrf.mxu0
        %2377 = vmatprep.mubr.bf16.mxu0 0
        %2378 = vmatmul.mubr.bf16.gmra.mxu0 %v2145
        %v2379 = vpop.f32.mrf.mxu0
        %v2380 = vadd.f32 %v2184, %v2379
        %v2381 = vpop.f32.mrf.mxu0
        %v2382 = vpop.f32.mrf.mxu0
        %v2383 = vadd.f32 %v2184, %v2382
        %v2384 = vpop.f32.mrf.mxu0
        %2385 = vmatprep.mubr.bf16.mxu0 0
        %2386 = vmatmul.mubr.bf16.gmra.mxu0 %v2146
        %v2387 = vpop.f32.mrf.mxu0
        %v2388 = vadd.f32 %v2184, %v2387
        %v2389 = vpop.f32.mrf.mxu0
        %v2390 = vpop.f32.mrf.mxu0
        %v2391 = vadd.f32 %v2184, %v2390
        %v2392 = vpop.f32.mrf.mxu0
        %2393 = vmatprep.mubr.bf16.mxu0 0
        %2394 = vmatmul.mubr.bf16.gmra.mxu0 %v2147
        %v2395 = vpop.f32.mrf.mxu0
        %v2396 = vadd.f32 %v2184, %v2395
        %v2397 = vpop.f32.mrf.mxu0
        %v2398 = vpop.f32.mrf.mxu0
        %v2399 = vadd.f32 %v2184, %v2398
        %v2400 = vpop.f32.mrf.mxu0
        %2401 = vmatprep.mubr.bf16.mxu0 0
        %2402 = vmatmul.mubr.bf16.gmra.mxu0 %v2148
        %v2403 = vpop.f32.mrf.mxu0
        %v2404 = vadd.f32 %v2184, %v2403
        %v2405 = vpop.f32.mrf.mxu0
        %v2406 = vpop.f32.mrf.mxu0
        %v2407 = vadd.f32 %v2184, %v2406
        %v2408 = vpop.f32.mrf.mxu0
        %2409 = vmatprep.mubr.bf16.mxu0 0
        %2410 = vmatmul.mubr.bf16.gmra.mxu0 %v2149
        %v2411 = vpop.f32.mrf.mxu0
        %v2412 = vadd.f32 %v2184, %v2411
        %v2413 = vpop.f32.mrf.mxu0
        %v2414 = vpop.f32.mrf.mxu0
        %v2415 = vadd.f32 %v2184, %v2414
        %v2416 = vpop.f32.mrf.mxu0
        %2417 = vmatprep.mubr.bf16.mxu0 0
        %2418 = vmatmul.mubr.bf16.gmra.mxu0 %v2150
        %v2419 = vpop.f32.mrf.mxu0
        %v2420 = vadd.f32 %v2184, %v2419
        %v2421 = vpop.f32.mrf.mxu0
        %v2422 = vpop.f32.mrf.mxu0
        %v2423 = vadd.f32 %v2184, %v2422
        %v2424 = vpop.f32.mrf.mxu0
        %2425 = vmatprep.mubr.bf16.mxu0 0
        %2426 = vmatmul.mubr.bf16.gmra.mxu0 %v2151
        %v2427 = vpop.f32.mrf.mxu0
        %v2428 = vadd.f32 %v2184, %v2427
        %v2429 = vpop.f32.mrf.mxu0
        %v2430 = vpop.f32.mrf.mxu0
        %v2431 = vadd.f32 %v2184, %v2430
        %v2432 = vpop.f32.mrf.mxu0
        %2433 = vmatprep.mubr.bf16.mxu0 0
        %2434 = vmatmul.mubr.bf16.gmra.mxu0 %v2152
        %v2435 = vpop.f32.mrf.mxu0
        %v2436 = vadd.f32 %v2184, %v2435
        %v2437 = vpop.f32.mrf.mxu0
        %v2438 = vpop.f32.mrf.mxu0
        %v2439 = vadd.f32 %v2184, %v2438
        %v2440 = vpop.f32.mrf.mxu0
        %2441 = vmatprep.mubr.bf16.mxu0 0
        %2442 = vmatmul.mubr.bf16.gmra.mxu0 %v2153
        %v2443 = vpop.f32.mrf.mxu0
        %v2444 = vadd.f32 %v2184, %v2443
        %v2445 = vpop.f32.mrf.mxu0
        %v2446 = vpop.f32.mrf.mxu0
        %v2447 = vadd.f32 %v2184, %v2446
        %v2448 = vpop.f32.mrf.mxu0
        %2449 = vmatprep.mubr.bf16.mxu0 0
        %2450 = vmatmul.mubr.bf16.gmra.mxu0 %v2154
        %v2451 = vpop.f32.mrf.mxu0
        %v2452 = vadd.f32 %v2184, %v2451
        %v2453 = vpop.f32.mrf.mxu0
        %v2454 = vpop.f32.mrf.mxu0
        %v2455 = vadd.f32 %v2184, %v2454
        %v2456 = vpop.f32.mrf.mxu0
        %2457 = vmatprep.mubr.bf16.mxu0 0
        %2458 = vmatmul.mubr.bf16.gmra.mxu0 %v2155
        %v2459 = vpop.f32.mrf.mxu0
        %v2460 = vadd.f32 %v2184, %v2459
        %v2461 = vpop.f32.mrf.mxu0
        %v2462 = vpop.f32.mrf.mxu0
        %v2463 = vadd.f32 %v2184, %v2462
        %v2464 = vpop.f32.mrf.mxu0
        %2465 = vmatprep.mubr.bf16.mxu0 0
        %2466 = vmatmul.mubr.bf16.gmra.mxu0 %v2156
        %v2467 = vpop.f32.mrf.mxu0
        %v2468 = vadd.f32 %v2184, %v2467
        %v2469 = vpop.f32.mrf.mxu0
        %v2470 = vpop.f32.mrf.mxu0
        %v2471 = vadd.f32 %v2184, %v2470
        %v2472 = vpop.f32.mrf.mxu0
        %2473 = vmatprep.mubr.bf16.mxu0 0
        %2474 = vmatmul.mubr.bf16.gmra.mxu0 %v2157
        %v2475 = vpop.f32.mrf.mxu0
        %v2476 = vadd.f32 %v2184, %v2475
        %v2477 = vpop.f32.mrf.mxu0
        %v2478 = vpop.f32.mrf.mxu0
        %v2479 = vadd.f32 %v2184, %v2478
        %v2480 = vpop.f32.mrf.mxu0
        %2481 = vmatprep.mubr.bf16.mxu0 0
        %2482 = vmatmul.mubr.bf16.gmra.mxu0 %v2158
        %v2483 = vpop.f32.mrf.mxu0
        %v2484 = vadd.f32 %v2184, %v2483
        %v2485 = vpop.f32.mrf.mxu0
        %v2486 = vpop.f32.mrf.mxu0
        %v2487 = vadd.f32 %v2184, %v2486
        %v2488 = vpop.f32.mrf.mxu0
        %2489 = vmatprep.mubr.bf16.mxu0 0
        %2490 = vmatmul.mubr.bf16.gmra.mxu0 %v2159
        %v2491 = vpop.f32.mrf.mxu0
        %v2492 = vadd.f32 %v2184, %v2491
        %v2493 = vpop.f32.mrf.mxu0
        %v2494 = vpop.f32.mrf.mxu0
        %v2495 = vadd.f32 %v2184, %v2494
        %v2496 = vpop.f32.mrf.mxu0
        %2497 = vmatprep.mubr.bf16.mxu0 0
        %2498 = vmatmul.mubr.bf16.gmra.mxu0 %v2160
        %v2499 = vpop.f32.mrf.mxu0
        %v2500 = vadd.f32 %v2184, %v2499
        %v2501 = vpop.f32.mrf.mxu0
        %v2502 = vpop.f32.mrf.mxu0
        %v2503 = vadd.f32 %v2184, %v2502
        %v2504 = vpop.f32.mrf.mxu0
        %2505 = vmatprep.mubr.bf16.mxu0 0
        %2506 = vmatmul.mubr.bf16.gmra.mxu0 %v2161
        %v2507 = vpop.f32.mrf.mxu0
        %v2508 = vadd.f32 %v2184, %v2507
        %v2509 = vpop.f32.mrf.mxu0
        %v2510 = vpop.f32.mrf.mxu0
        %v2511 = vadd.f32 %v2184, %v2510
        %v2512 = vpop.f32.mrf.mxu0
        %2513 = vmatprep.mubr.bf16.mxu0 0
        %2514 = vmatmul.mubr.bf16.gmra.mxu0 %v2162
        %v2515 = vpop.f32.mrf.mxu0
        %v2516 = vadd.f32 %v2184, %v2515
        %v2517 = vpop.f32.mrf.mxu0
        %v2518 = vpop.f32.mrf.mxu0
        %v2519 = vadd.f32 %v2184, %v2518
        %v2520 = vpop.f32.mrf.mxu0
        %2521 = vdwg.mxu0
        %v2522 = vmax.f32 %v2268, 0.0
        %v2523 = vmax.f32 %v2271, 0.0
        %v2524 = vmax.f32 %v2276, 0.0
        %v2525 = vmax.f32 %v2279, 0.0
        %v2526 = vmax.f32 %v2284, 0.0
        %v2527 = vmax.f32 %v2287, 0.0
        %v2528 = vmax.f32 %v2292, 0.0
        %v2529 = vmax.f32 %v2295, 0.0
        %v2530 = vmax.f32 %v2300, 0.0
        %v2531 = vmax.f32 %v2303, 0.0
        %v2532 = vmax.f32 %v2308, 0.0
        %v2533 = vmax.f32 %v2311, 0.0
        %v2534 = vmax.f32 %v2316, 0.0
        %v2535 = vmax.f32 %v2319, 0.0
        %v2536 = vmax.f32 %v2324, 0.0
        %v2537 = vmax.f32 %v2327, 0.0
        %v2538 = vmax.f32 %v2332, 0.0
        %v2539 = vmax.f32 %v2335, 0.0
        %v2540 = vmax.f32 %v2340, 0.0
        %v2541 = vmax.f32 %v2343, 0.0
        %v2542 = vmax.f32 %v2348, 0.0
        %v2543 = vmax.f32 %v2351, 0.0
        %v2544 = vmax.f32 %v2356, 0.0
        %v2545 = vmax.f32 %v2359, 0.0
        %v2546 = vmax.f32 %v2364, 0.0
        %v2547 = vmax.f32 %v2367, 0.0
        %v2548 = vmax.f32 %v2372, 0.0
        %v2549 = vmax.f32 %v2375, 0.0
        %v2550 = vmax.f32 %v2380, 0.0
        %v2551 = vmax.f32 %v2383, 0.0
        %v2552 = vmax.f32 %v2388, 0.0
        %v2553 = vmax.f32 %v2391, 0.0
        %v2554 = vmax.f32 %v2396, 0.0
        %v2555 = vmax.f32 %v2399, 0.0
        %v2556 = vmax.f32 %v2404, 0.0
        %v2557 = vmax.f32 %v2407, 0.0
        %v2558 = vmax.f32 %v2412, 0.0
        %v2559 = vmax.f32 %v2415, 0.0
        %v2560 = vmax.f32 %v2420, 0.0
        %v2561 = vmax.f32 %v2423, 0.0
        %v2562 = vmax.f32 %v2428, 0.0
        %v2563 = vmax.f32 %v2431, 0.0
        %v2564 = vmax.f32 %v2436, 0.0
        %v2565 = vmax.f32 %v2439, 0.0
        %v2566 = vmax.f32 %v2444, 0.0
        %v2567 = vmax.f32 %v2447, 0.0
        %v2568 = vmax.f32 %v2452, 0.0
        %v2569 = vmax.f32 %v2455, 0.0
        %v2570 = vmax.f32 %v2460, 0.0
        %v2571 = vmax.f32 %v2463, 0.0
        %v2572 = vmax.f32 %v2468, 0.0
        %v2573 = vmax.f32 %v2471, 0.0
        %v2574 = vmax.f32 %v2476, 0.0
        %v2575 = vmax.f32 %v2479, 0.0
        %v2576 = vmax.f32 %v2484, 0.0
        %v2577 = vmax.f32 %v2487, 0.0
        %v2578 = vmax.f32 %v2492, 0.0
        %v2579 = vmax.f32 %v2495, 0.0
        %v2580 = vmax.f32 %v2500, 0.0
        %v2581 = vmax.f32 %v2503, 0.0
        %v2582 = vmax.f32 %v2508, 0.0
        %v2583 = vmax.f32 %v2511, 0.0
        %v2584 = vmax.f32 %v2516, 0.0
        %v2585 = vmax.f32 %v2519, 0.0
        %v2586 = vpack.c.bf16 %v2523, %v2522
        %v2587 = vpack.c.bf16 %v2525, %v2524
        %v2588 = vpack.c.bf16 %v2527, %v2526
        %v2589 = vpack.c.bf16 %v2529, %v2528
        %v2590 = vpack.c.bf16 %v2531, %v2530
        %v2591 = vpack.c.bf16 %v2533, %v2532
        %v2592 = vpack.c.bf16 %v2535, %v2534
        %v2593 = vpack.c.bf16 %v2537, %v2536
        %v2594 = vpack.c.bf16 %v2539, %v2538
        %v2595 = vpack.c.bf16 %v2541, %v2540
        %v2596 = vpack.c.bf16 %v2543, %v2542
        %v2597 = vpack.c.bf16 %v2545, %v2544
        %v2598 = vpack.c.bf16 %v2547, %v2546
        %v2599 = vpack.c.bf16 %v2549, %v2548
        %v2600 = vpack.c.bf16 %v2551, %v2550
        %v2601 = vpack.c.bf16 %v2553, %v2552
        %v2602 = vpack.c.bf16 %v2555, %v2554
        %v2603 = vpack.c.bf16 %v2557, %v2556
        %v2604 = vpack.c.bf16 %v2559, %v2558
        %v2605 = vpack.c.bf16 %v2561, %v2560
        %v2606 = vpack.c.bf16 %v2563, %v2562
        %v2607 = vpack.c.bf16 %v2565, %v2564
        %v2608 = vpack.c.bf16 %v2567, %v2566
        %v2609 = vpack.c.bf16 %v2569, %v2568
        %v2610 = vpack.c.bf16 %v2571, %v2570
        %v2611 = vpack.c.bf16 %v2573, %v2572
        %v2612 = vpack.c.bf16 %v2575, %v2574
        %v2613 = vpack.c.bf16 %v2577, %v2576
        %v2614 = vpack.c.bf16 %v2579, %v2578
        %v2615 = vpack.c.bf16 %v2581, %v2580
        %v2616 = vpack.c.bf16 %v2583, %v2582
        %v2617 = vpack.c.bf16 %v2585, %v2584
        %s2618 = scalar_lea.vmem %s2, 256
        %v2619 = vld [vmem:[%s2618] sm:$0xf]
        %v2620 = vld [vmem:[%s2618 + $0x4] sm:$0xf]
        %v2621 = vld [vmem:[%s2618 + $0x8] sm:$0xf]
        %v2622 = vld [vmem:[%s2618 + $0xc] sm:$0xf]
        %v2623 = vld [vmem:[%s2618 + $0x10] sm:$0xf]
        %v2624 = vld [vmem:[%s2618 + $0x14] sm:$0xf]
        %v2625 = vld [vmem:[%s2618 + $0x18] sm:$0xf]
        %v2626 = vld [vmem:[%s2618 + $0x1c] sm:$0xf]
        %v2627 = vld [vmem:[%s2618 + $0x20] sm:$0xf]
        %v2628 = vld [vmem:[%s2618 + $0x24] sm:$0xf]
        %v2629 = vld [vmem:[%s2618 + $0x28] sm:$0xf]
        %v2630 = vld [vmem:[%s2618 + $0x2c] sm:$0xf]
        %v2631 = vld [vmem:[%s2618 + $0x30] sm:$0xf]
        %v2632 = vld [vmem:[%s2618 + $0x34] sm:$0xf]
        %v2633 = vld [vmem:[%s2618 + $0x38] sm:$0xf]
        %v2634 = vld [vmem:[%s2618 + $0x3c] sm:$0xf]
        %v2635 = vld [vmem:[%s3 + $0x5] sm:$0x1]
        %v2636 = vlaneseq
        %v2637 = vshrl.u32 %v2636, 7
        %v2638 = vsub.s32 0, %v2637
        %v2639 = vrot.slane %v2635, %v2638
        %v2656 = vunpack.c.l.b16 %v2619
        %v2657 = vunpack.c.l.b16 %v2620
        %v2658 = vunpack.c.l.b16 %v2621
        %v2659 = vunpack.c.l.b16 %v2622
        %v2660 = vunpack.c.l.b16 %v2623
        %v2661 = vunpack.c.l.b16 %v2624
        %v2662 = vunpack.c.l.b16 %v2625
        %v2663 = vunpack.c.l.b16 %v2626
        %v2664 = vunpack.c.l.b16 %v2627
        %v2665 = vunpack.c.l.b16 %v2628
        %v2666 = vunpack.c.l.b16 %v2629
        %v2667 = vunpack.c.l.b16 %v2630
        %v2668 = vunpack.c.l.b16 %v2631
        %v2669 = vunpack.c.l.b16 %v2632
        %v2670 = vunpack.c.l.b16 %v2633
        %v2671 = vunpack.c.l.b16 %v2634
        %v2672 = vpack.c.b16 %v2657, %v2656
        %v2673 = vpack.c.b16 %v2659, %v2658
        %v2674 = vpack.c.b16 %v2661, %v2660
        %v2675 = vpack.c.b16 %v2663, %v2662
        %v2676 = vpack.c.b16 %v2665, %v2664
        %v2677 = vpack.c.b16 %v2667, %v2666
        %v2678 = vpack.c.b16 %v2669, %v2668
        %v2679 = vpack.c.b16 %v2671, %v2670
        %2688 = vmatprep.subr.bf16.mxu0 0
        %2689 = vmatpush1.bf16.msra.mxu0 %v2679
        %2690 = vmatprep.subr.bf16.mxu0 0
        %2691 = vmatpush1.bf16.msra.mxu0 %v2678
        %2692 = vmatprep.subr.bf16.mxu0 0
        %2693 = vmatpush1.bf16.msra.mxu0 %v2677
        %2694 = vmatprep.subr.bf16.mxu0 0
        %2695 = vmatpush1.bf16.msra.mxu0 %v2676
        %2696 = vmatprep.subr.bf16.mxu0 0
        %2697 = vmatpush1.bf16.msra.mxu0 %v2675
        %2698 = vmatprep.subr.bf16.mxu0 0
        %2699 = vmatpush1.bf16.msra.mxu0 %v2674
        %2700 = vmatprep.subr.bf16.mxu0 0
        %2701 = vmatpush1.bf16.msra.mxu0 %v2673
        %2702 = vmatprep.subr.bf16.mxu0 0
        %2703 = vmatpush1.bf16.msra.mxu0 %v2672
        %2704 = vmatprep.subr.bf16.mxu0 0
        %2705 = vmatpush2.bf16.msra.mxu0 0
        %2706 = vmatprep.subr.bf16.mxu0 0
        %2707 = vmatpush2.bf16.msra.mxu0 0
        %2708 = vmatprep.subr.bf16.mxu0 0
        %2709 = vmatpush2.bf16.msra.mxu0 0
        %2710 = vmatprep.subr.bf16.mxu0 0
        %2711 = vmatpush2.bf16.msra.mxu0 0
        %2712 = vmatprep.subr.bf16.mxu0 0
        %2713 = vmatpush2.bf16.msra.mxu0 0
        %2714 = vmatprep.subr.bf16.mxu0 0
        %2715 = vmatpush2.bf16.msra.mxu0 0
        %2716 = vmatprep.subr.bf16.mxu0 0
        %2717 = vmatpush2.bf16.msra.mxu0 0
        %2718 = vmatprep.subr.bf16.mxu0 0
        %2719 = vmatpush2.bf16.msra.mxu0 0
        %2720 = vmatprep.mubr.bf16.mxu0 0
        %2721 = vmatmul.mubr.bf16.gmra.mxu0 %v2586
        %v2722 = vpop.f32.mrf.mxu0
        %v2723 = vadd.f32 %v2639, %v2722
        %v2724 = vpop.f32.mrf.mxu0
        %v2725 = vpop.f32.mrf.mxu0
        %v2726 = vadd.f32 %v2639, %v2725
        %v2727 = vpop.f32.mrf.mxu0
        %2728 = vmatprep.mubr.bf16.mxu0 0
        %2729 = vmatmul.mubr.bf16.gmra.mxu0 %v2587
        %v2730 = vpop.f32.mrf.mxu0
        %v2731 = vadd.f32 %v2639, %v2730
        %v2732 = vpop.f32.mrf.mxu0
        %v2733 = vpop.f32.mrf.mxu0
        %v2734 = vadd.f32 %v2639, %v2733
        %v2735 = vpop.f32.mrf.mxu0
        %2736 = vmatprep.mubr.bf16.mxu0 0
        %2737 = vmatmul.mubr.bf16.gmra.mxu0 %v2588
        %v2738 = vpop.f32.mrf.mxu0
        %v2739 = vadd.f32 %v2639, %v2738
        %v2740 = vpop.f32.mrf.mxu0
        %v2741 = vpop.f32.mrf.mxu0
        %v2742 = vadd.f32 %v2639, %v2741
        %v2743 = vpop.f32.mrf.mxu0
        %2744 = vmatprep.mubr.bf16.mxu0 0
        %2745 = vmatmul.mubr.bf16.gmra.mxu0 %v2589
        %v2746 = vpop.f32.mrf.mxu0
        %v2747 = vadd.f32 %v2639, %v2746
        %v2748 = vpop.f32.mrf.mxu0
        %v2749 = vpop.f32.mrf.mxu0
        %v2750 = vadd.f32 %v2639, %v2749
        %v2751 = vpop.f32.mrf.mxu0
        %2752 = vmatprep.mubr.bf16.mxu0 0
        %2753 = vmatmul.mubr.bf16.gmra.mxu0 %v2590
        %v2754 = vpop.f32.mrf.mxu0
        %v2755 = vadd.f32 %v2639, %v2754
        %v2756 = vpop.f32.mrf.mxu0
        %v2757 = vpop.f32.mrf.mxu0
        %v2758 = vadd.f32 %v2639, %v2757
        %v2759 = vpop.f32.mrf.mxu0
        %2760 = vmatprep.mubr.bf16.mxu0 0
        %2761 = vmatmul.mubr.bf16.gmra.mxu0 %v2591
        %v2762 = vpop.f32.mrf.mxu0
        %v2763 = vadd.f32 %v2639, %v2762
        %v2764 = vpop.f32.mrf.mxu0
        %v2765 = vpop.f32.mrf.mxu0
        %v2766 = vadd.f32 %v2639, %v2765
        %v2767 = vpop.f32.mrf.mxu0
        %2768 = vmatprep.mubr.bf16.mxu0 0
        %2769 = vmatmul.mubr.bf16.gmra.mxu0 %v2592
        %v2770 = vpop.f32.mrf.mxu0
        %v2771 = vadd.f32 %v2639, %v2770
        %v2772 = vpop.f32.mrf.mxu0
        %v2773 = vpop.f32.mrf.mxu0
        %v2774 = vadd.f32 %v2639, %v2773
        %v2775 = vpop.f32.mrf.mxu0
        %2776 = vmatprep.mubr.bf16.mxu0 0
        %2777 = vmatmul.mubr.bf16.gmra.mxu0 %v2593
        %v2778 = vpop.f32.mrf.mxu0
        %v2779 = vadd.f32 %v2639, %v2778
        %v2780 = vpop.f32.mrf.mxu0
        %v2781 = vpop.f32.mrf.mxu0
        %v2782 = vadd.f32 %v2639, %v2781
        %v2783 = vpop.f32.mrf.mxu0
        %2784 = vmatprep.mubr.bf16.mxu0 0
        %2785 = vmatmul.mubr.bf16.gmra.mxu0 %v2594
        %v2786 = vpop.f32.mrf.mxu0
        %v2787 = vadd.f32 %v2639, %v2786
        %v2788 = vpop.f32.mrf.mxu0
        %v2789 = vpop.f32.mrf.mxu0
        %v2790 = vadd.f32 %v2639, %v2789
        %v2791 = vpop.f32.mrf.mxu0
        %2792 = vmatprep.mubr.bf16.mxu0 0
        %2793 = vmatmul.mubr.bf16.gmra.mxu0 %v2595
        %v2794 = vpop.f32.mrf.mxu0
        %v2795 = vadd.f32 %v2639, %v2794
        %v2796 = vpop.f32.mrf.mxu0
        %v2797 = vpop.f32.mrf.mxu0
        %v2798 = vadd.f32 %v2639, %v2797
        %v2799 = vpop.f32.mrf.mxu0
        %2800 = vmatprep.mubr.bf16.mxu0 0
        %2801 = vmatmul.mubr.bf16.gmra.mxu0 %v2596
        %v2802 = vpop.f32.mrf.mxu0
        %v2803 = vadd.f32 %v2639, %v2802
        %v2804 = vpop.f32.mrf.mxu0
        %v2805 = vpop.f32.mrf.mxu0
        %v2806 = vadd.f32 %v2639, %v2805
        %v2807 = vpop.f32.mrf.mxu0
        %2808 = vmatprep.mubr.bf16.mxu0 0
        %2809 = vmatmul.mubr.bf16.gmra.mxu0 %v2597
        %v2810 = vpop.f32.mrf.mxu0
        %v2811 = vadd.f32 %v2639, %v2810
        %v2812 = vpop.f32.mrf.mxu0
        %v2813 = vpop.f32.mrf.mxu0
        %v2814 = vadd.f32 %v2639, %v2813
        %v2815 = vpop.f32.mrf.mxu0
        %2816 = vmatprep.mubr.bf16.mxu0 0
        %2817 = vmatmul.mubr.bf16.gmra.mxu0 %v2598
        %v2818 = vpop.f32.mrf.mxu0
        %v2819 = vadd.f32 %v2639, %v2818
        %v2820 = vpop.f32.mrf.mxu0
        %v2821 = vpop.f32.mrf.mxu0
        %v2822 = vadd.f32 %v2639, %v2821
        %v2823 = vpop.f32.mrf.mxu0
        %2824 = vmatprep.mubr.bf16.mxu0 0
        %2825 = vmatmul.mubr.bf16.gmra.mxu0 %v2599
        %v2826 = vpop.f32.mrf.mxu0
        %v2827 = vadd.f32 %v2639, %v2826
        %v2828 = vpop.f32.mrf.mxu0
        %v2829 = vpop.f32.mrf.mxu0
        %v2830 = vadd.f32 %v2639, %v2829
        %v2831 = vpop.f32.mrf.mxu0
        %2832 = vmatprep.mubr.bf16.mxu0 0
        %2833 = vmatmul.mubr.bf16.gmra.mxu0 %v2600
        %v2834 = vpop.f32.mrf.mxu0
        %v2835 = vadd.f32 %v2639, %v2834
        %v2836 = vpop.f32.mrf.mxu0
        %v2837 = vpop.f32.mrf.mxu0
        %v2838 = vadd.f32 %v2639, %v2837
        %v2839 = vpop.f32.mrf.mxu0
        %2840 = vmatprep.mubr.bf16.mxu0 0
        %2841 = vmatmul.mubr.bf16.gmra.mxu0 %v2601
        %v2842 = vpop.f32.mrf.mxu0
        %v2843 = vadd.f32 %v2639, %v2842
        %v2844 = vpop.f32.mrf.mxu0
        %v2845 = vpop.f32.mrf.mxu0
        %v2846 = vadd.f32 %v2639, %v2845
        %v2847 = vpop.f32.mrf.mxu0
        %2848 = vmatprep.mubr.bf16.mxu0 0
        %2849 = vmatmul.mubr.bf16.gmra.mxu0 %v2602
        %v2850 = vpop.f32.mrf.mxu0
        %v2851 = vadd.f32 %v2639, %v2850
        %v2852 = vpop.f32.mrf.mxu0
        %v2853 = vpop.f32.mrf.mxu0
        %v2854 = vadd.f32 %v2639, %v2853
        %v2855 = vpop.f32.mrf.mxu0
        %2856 = vmatprep.mubr.bf16.mxu0 0
        %2857 = vmatmul.mubr.bf16.gmra.mxu0 %v2603
        %v2858 = vpop.f32.mrf.mxu0
        %v2859 = vadd.f32 %v2639, %v2858
        %v2860 = vpop.f32.mrf.mxu0
        %v2861 = vpop.f32.mrf.mxu0
        %v2862 = vadd.f32 %v2639, %v2861
        %v2863 = vpop.f32.mrf.mxu0
        %2864 = vmatprep.mubr.bf16.mxu0 0
        %2865 = vmatmul.mubr.bf16.gmra.mxu0 %v2604
        %v2866 = vpop.f32.mrf.mxu0
        %v2867 = vadd.f32 %v2639, %v2866
        %v2868 = vpop.f32.mrf.mxu0
        %v2869 = vpop.f32.mrf.mxu0
        %v2870 = vadd.f32 %v2639, %v2869
        %v2871 = vpop.f32.mrf.mxu0
        %2872 = vmatprep.mubr.bf16.mxu0 0
        %2873 = vmatmul.mubr.bf16.gmra.mxu0 %v2605
        %v2874 = vpop.f32.mrf.mxu0
        %v2875 = vadd.f32 %v2639, %v2874
        %v2876 = vpop.f32.mrf.mxu0
        %v2877 = vpop.f32.mrf.mxu0
        %v2878 = vadd.f32 %v2639, %v2877
        %v2879 = vpop.f32.mrf.mxu0
        %2880 = vmatprep.mubr.bf16.mxu0 0
        %2881 = vmatmul.mubr.bf16.gmra.mxu0 %v2606
        %v2882 = vpop.f32.mrf.mxu0
        %v2883 = vadd.f32 %v2639, %v2882
        %v2884 = vpop.f32.mrf.mxu0
        %v2885 = vpop.f32.mrf.mxu0
        %v2886 = vadd.f32 %v2639, %v2885
        %v2887 = vpop.f32.mrf.mxu0
        %2888 = vmatprep.mubr.bf16.mxu0 0
        %2889 = vmatmul.mubr.bf16.gmra.mxu0 %v2607
        %v2890 = vpop.f32.mrf.mxu0
        %v2891 = vadd.f32 %v2639, %v2890
        %v2892 = vpop.f32.mrf.mxu0
        %v2893 = vpop.f32.mrf.mxu0
        %v2894 = vadd.f32 %v2639, %v2893
        %v2895 = vpop.f32.mrf.mxu0
        %2896 = vmatprep.mubr.bf16.mxu0 0
        %2897 = vmatmul.mubr.bf16.gmra.mxu0 %v2608
        %v2898 = vpop.f32.mrf.mxu0
        %v2899 = vadd.f32 %v2639, %v2898
        %v2900 = vpop.f32.mrf.mxu0
        %v2901 = vpop.f32.mrf.mxu0
        %v2902 = vadd.f32 %v2639, %v2901
        %v2903 = vpop.f32.mrf.mxu0
        %2904 = vmatprep.mubr.bf16.mxu0 0
        %2905 = vmatmul.mubr.bf16.gmra.mxu0 %v2609
        %v2906 = vpop.f32.mrf.mxu0
        %v2907 = vadd.f32 %v2639, %v2906
        %v2908 = vpop.f32.mrf.mxu0
        %v2909 = vpop.f32.mrf.mxu0
        %v2910 = vadd.f32 %v2639, %v2909
        %v2911 = vpop.f32.mrf.mxu0
        %2912 = vmatprep.mubr.bf16.mxu0 0
        %2913 = vmatmul.mubr.bf16.gmra.mxu0 %v2610
        %v2914 = vpop.f32.mrf.mxu0
        %v2915 = vadd.f32 %v2639, %v2914
        %v2916 = vpop.f32.mrf.mxu0
        %v2917 = vpop.f32.mrf.mxu0
        %v2918 = vadd.f32 %v2639, %v2917
        %v2919 = vpop.f32.mrf.mxu0
        %2920 = vmatprep.mubr.bf16.mxu0 0
        %2921 = vmatmul.mubr.bf16.gmra.mxu0 %v2611
        %v2922 = vpop.f32.mrf.mxu0
        %v2923 = vadd.f32 %v2639, %v2922
        %v2924 = vpop.f32.mrf.mxu0
        %v2925 = vpop.f32.mrf.mxu0
        %v2926 = vadd.f32 %v2639, %v2925
        %v2927 = vpop.f32.mrf.mxu0
        %2928 = vmatprep.mubr.bf16.mxu0 0
        %2929 = vmatmul.mubr.bf16.gmra.mxu0 %v2612
        %v2930 = vpop.f32.mrf.mxu0
        %v2931 = vadd.f32 %v2639, %v2930
        %v2932 = vpop.f32.mrf.mxu0
        %v2933 = vpop.f32.mrf.mxu0
        %v2934 = vadd.f32 %v2639, %v2933
        %v2935 = vpop.f32.mrf.mxu0
        %2936 = vmatprep.mubr.bf16.mxu0 0
        %2937 = vmatmul.mubr.bf16.gmra.mxu0 %v2613
        %v2938 = vpop.f32.mrf.mxu0
        %v2939 = vadd.f32 %v2639, %v2938
        %v2940 = vpop.f32.mrf.mxu0
        %v2941 = vpop.f32.mrf.mxu0
        %v2942 = vadd.f32 %v2639, %v2941
        %v2943 = vpop.f32.mrf.mxu0
        %2944 = vmatprep.mubr.bf16.mxu0 0
        %2945 = vmatmul.mubr.bf16.gmra.mxu0 %v2614
        %v2946 = vpop.f32.mrf.mxu0
        %v2947 = vadd.f32 %v2639, %v2946
        %v2948 = vpop.f32.mrf.mxu0
        %v2949 = vpop.f32.mrf.mxu0
        %v2950 = vadd.f32 %v2639, %v2949
        %v2951 = vpop.f32.mrf.mxu0
        %2952 = vmatprep.mubr.bf16.mxu0 0
        %2953 = vmatmul.mubr.bf16.gmra.mxu0 %v2615
        %v2954 = vpop.f32.mrf.mxu0
        %v2955 = vadd.f32 %v2639, %v2954
        %v2956 = vpop.f32.mrf.mxu0
        %v2957 = vpop.f32.mrf.mxu0
        %v2958 = vadd.f32 %v2639, %v2957
        %v2959 = vpop.f32.mrf.mxu0
        %2960 = vmatprep.mubr.bf16.mxu0 0
        %2961 = vmatmul.mubr.bf16.gmra.mxu0 %v2616
        %v2962 = vpop.f32.mrf.mxu0
        %v2963 = vadd.f32 %v2639, %v2962
        %v2964 = vpop.f32.mrf.mxu0
        %v2965 = vpop.f32.mrf.mxu0
        %v2966 = vadd.f32 %v2639, %v2965
        %v2967 = vpop.f32.mrf.mxu0
        %2968 = vmatprep.mubr.bf16.mxu0 0
        %2969 = vmatmul.mubr.bf16.gmra.mxu0 %v2617
        %v2970 = vpop.f32.mrf.mxu0
        %v2971 = vadd.f32 %v2639, %v2970
        %v2972 = vpop.f32.mrf.mxu0
        %v2973 = vpop.f32.mrf.mxu0
        %v2974 = vadd.f32 %v2639, %v2973
        %v2975 = vpop.f32.mrf.mxu0
        %2976 = vdwg.mxu0
        %v2977 = vmax.f32 %v2723, 0.0
        %v2978 = vmax.f32 %v2726, 0.0
        %v2979 = vmax.f32 %v2731, 0.0
        %v2980 = vmax.f32 %v2734, 0.0
        %v2981 = vmax.f32 %v2739, 0.0
        %v2982 = vmax.f32 %v2742, 0.0
        %v2983 = vmax.f32 %v2747, 0.0
        %v2984 = vmax.f32 %v2750, 0.0
        %v2985 = vmax.f32 %v2755, 0.0
        %v2986 = vmax.f32 %v2758, 0.0
        %v2987 = vmax.f32 %v2763, 0.0
        %v2988 = vmax.f32 %v2766, 0.0
        %v2989 = vmax.f32 %v2771, 0.0
        %v2990 = vmax.f32 %v2774, 0.0
        %v2991 = vmax.f32 %v2779, 0.0
        %v2992 = vmax.f32 %v2782, 0.0
        %v2993 = vmax.f32 %v2787, 0.0
        %v2994 = vmax.f32 %v2790, 0.0
        %v2995 = vmax.f32 %v2795, 0.0
        %v2996 = vmax.f32 %v2798, 0.0
        %v2997 = vmax.f32 %v2803, 0.0
        %v2998 = vmax.f32 %v2806, 0.0
        %v2999 = vmax.f32 %v2811, 0.0
        %v3000 = vmax.f32 %v2814, 0.0
        %v3001 = vmax.f32 %v2819, 0.0
        %v3002 = vmax.f32 %v2822, 0.0
        %v3003 = vmax.f32 %v2827, 0.0
        %v3004 = vmax.f32 %v2830, 0.0
        %v3005 = vmax.f32 %v2835, 0.0
        %v3006 = vmax.f32 %v2838, 0.0
        %v3007 = vmax.f32 %v2843, 0.0
        %v3008 = vmax.f32 %v2846, 0.0
        %v3009 = vmax.f32 %v2851, 0.0
        %v3010 = vmax.f32 %v2854, 0.0
        %v3011 = vmax.f32 %v2859, 0.0
        %v3012 = vmax.f32 %v2862, 0.0
        %v3013 = vmax.f32 %v2867, 0.0
        %v3014 = vmax.f32 %v2870, 0.0
        %v3015 = vmax.f32 %v2875, 0.0
        %v3016 = vmax.f32 %v2878, 0.0
        %v3017 = vmax.f32 %v2883, 0.0
        %v3018 = vmax.f32 %v2886, 0.0
        %v3019 = vmax.f32 %v2891, 0.0
        %v3020 = vmax.f32 %v2894, 0.0
        %v3021 = vmax.f32 %v2899, 0.0
        %v3022 = vmax.f32 %v2902, 0.0
        %v3023 = vmax.f32 %v2907, 0.0
        %v3024 = vmax.f32 %v2910, 0.0
        %v3025 = vmax.f32 %v2915, 0.0
        %v3026 = vmax.f32 %v2918, 0.0
        %v3027 = vmax.f32 %v2923, 0.0
        %v3028 = vmax.f32 %v2926, 0.0
        %v3029 = vmax.f32 %v2931, 0.0
        %v3030 = vmax.f32 %v2934, 0.0
        %v3031 = vmax.f32 %v2939, 0.0
        %v3032 = vmax.f32 %v2942, 0.0
        %v3033 = vmax.f32 %v2947, 0.0
        %v3034 = vmax.f32 %v2950, 0.0
        %v3035 = vmax.f32 %v2955, 0.0
        %v3036 = vmax.f32 %v2958, 0.0
        %v3037 = vmax.f32 %v2963, 0.0
        %v3038 = vmax.f32 %v2966, 0.0
        %v3039 = vmax.f32 %v2971, 0.0
        %v3040 = vmax.f32 %v2974, 0.0
        %v3041 = vpack.c.bf16 %v2978, %v2977
        %v3042 = vpack.c.bf16 %v2980, %v2979
        %v3043 = vpack.c.bf16 %v2982, %v2981
        %v3044 = vpack.c.bf16 %v2984, %v2983
        %v3045 = vpack.c.bf16 %v2986, %v2985
        %v3046 = vpack.c.bf16 %v2988, %v2987
        %v3047 = vpack.c.bf16 %v2990, %v2989
        %v3048 = vpack.c.bf16 %v2992, %v2991
        %v3049 = vpack.c.bf16 %v2994, %v2993
        %v3050 = vpack.c.bf16 %v2996, %v2995
        %v3051 = vpack.c.bf16 %v2998, %v2997
        %v3052 = vpack.c.bf16 %v3000, %v2999
        %v3053 = vpack.c.bf16 %v3002, %v3001
        %v3054 = vpack.c.bf16 %v3004, %v3003
        %v3055 = vpack.c.bf16 %v3006, %v3005
        %v3056 = vpack.c.bf16 %v3008, %v3007
        %v3057 = vpack.c.bf16 %v3010, %v3009
        %v3058 = vpack.c.bf16 %v3012, %v3011
        %v3059 = vpack.c.bf16 %v3014, %v3013
        %v3060 = vpack.c.bf16 %v3016, %v3015
        %v3061 = vpack.c.bf16 %v3018, %v3017
        %v3062 = vpack.c.bf16 %v3020, %v3019
        %v3063 = vpack.c.bf16 %v3022, %v3021
        %v3064 = vpack.c.bf16 %v3024, %v3023
        %v3065 = vpack.c.bf16 %v3026, %v3025
        %v3066 = vpack.c.bf16 %v3028, %v3027
        %v3067 = vpack.c.bf16 %v3030, %v3029
        %v3068 = vpack.c.bf16 %v3032, %v3031
        %v3069 = vpack.c.bf16 %v3034, %v3033
        %v3070 = vpack.c.bf16 %v3036, %v3035
        %v3071 = vpack.c.bf16 %v3038, %v3037
        %v3072 = vpack.c.bf16 %v3040, %v3039
        %s3073 = scalar_lea.vmem %s2, 320
        %v3074 = vld [vmem:[%s3073] sm:$0xf]
        %v3075 = vld [vmem:[%s3073 + $0x4] sm:$0xf]
        %v3076 = vld [vmem:[%s3073 + $0x8] sm:$0xf]
        %v3077 = vld [vmem:[%s3073 + $0xc] sm:$0xf]
        %v3078 = vld [vmem:[%s3073 + $0x10] sm:$0xf]
        %v3079 = vld [vmem:[%s3073 + $0x14] sm:$0xf]
        %v3080 = vld [vmem:[%s3073 + $0x18] sm:$0xf]
        %v3081 = vld [vmem:[%s3073 + $0x1c] sm:$0xf]
        %v3082 = vld [vmem:[%s3073 + $0x20] sm:$0xf]
        %v3083 = vld [vmem:[%s3073 + $0x24] sm:$0xf]
        %v3084 = vld [vmem:[%s3073 + $0x28] sm:$0xf]
        %v3085 = vld [vmem:[%s3073 + $0x2c] sm:$0xf]
        %v3086 = vld [vmem:[%s3073 + $0x30] sm:$0xf]
        %v3087 = vld [vmem:[%s3073 + $0x34] sm:$0xf]
        %v3088 = vld [vmem:[%s3073 + $0x38] sm:$0xf]
        %v3089 = vld [vmem:[%s3073 + $0x3c] sm:$0xf]
        %v3090 = vld [vmem:[%s3 + $0x6] sm:$0x1]
        %v3091 = vlaneseq
        %v3092 = vshrl.u32 %v3091, 7
        %v3093 = vsub.s32 0, %v3092
        %v3094 = vrot.slane %v3090, %v3093
        %v3111 = vunpack.c.l.b16 %v3074
        %v3112 = vunpack.c.l.b16 %v3075
        %v3113 = vunpack.c.l.b16 %v3076
        %v3114 = vunpack.c.l.b16 %v3077
        %v3115 = vunpack.c.l.b16 %v3078
        %v3116 = vunpack.c.l.b16 %v3079
        %v3117 = vunpack.c.l.b16 %v3080
        %v3118 = vunpack.c.l.b16 %v3081
        %v3119 = vunpack.c.l.b16 %v3082
        %v3120 = vunpack.c.l.b16 %v3083
        %v3121 = vunpack.c.l.b16 %v3084
        %v3122 = vunpack.c.l.b16 %v3085
        %v3123 = vunpack.c.l.b16 %v3086
        %v3124 = vunpack.c.l.b16 %v3087
        %v3125 = vunpack.c.l.b16 %v3088
        %v3126 = vunpack.c.l.b16 %v3089
        %v3127 = vpack.c.b16 %v3112, %v3111
        %v3128 = vpack.c.b16 %v3114, %v3113
        %v3129 = vpack.c.b16 %v3116, %v3115
        %v3130 = vpack.c.b16 %v3118, %v3117
        %v3131 = vpack.c.b16 %v3120, %v3119
        %v3132 = vpack.c.b16 %v3122, %v3121
        %v3133 = vpack.c.b16 %v3124, %v3123
        %v3134 = vpack.c.b16 %v3126, %v3125
        %3143 = vmatprep.subr.bf16.mxu0 0
        %3144 = vmatpush1.bf16.msra.mxu0 %v3134
        %3145 = vmatprep.subr.bf16.mxu0 0
        %3146 = vmatpush1.bf16.msra.mxu0 %v3133
        %3147 = vmatprep.subr.bf16.mxu0 0
        %3148 = vmatpush1.bf16.msra.mxu0 %v3132
        %3149 = vmatprep.subr.bf16.mxu0 0
        %3150 = vmatpush1.bf16.msra.mxu0 %v3131
        %3151 = vmatprep.subr.bf16.mxu0 0
        %3152 = vmatpush1.bf16.msra.mxu0 %v3130
        %3153 = vmatprep.subr.bf16.mxu0 0
        %3154 = vmatpush1.bf16.msra.mxu0 %v3129
        %3155 = vmatprep.subr.bf16.mxu0 0
        %3156 = vmatpush1.bf16.msra.mxu0 %v3128
        %3157 = vmatprep.subr.bf16.mxu0 0
        %3158 = vmatpush1.bf16.msra.mxu0 %v3127
        %3159 = vmatprep.subr.bf16.mxu0 0
        %3160 = vmatpush2.bf16.msra.mxu0 0
        %3161 = vmatprep.subr.bf16.mxu0 0
        %3162 = vmatpush2.bf16.msra.mxu0 0
        %3163 = vmatprep.subr.bf16.mxu0 0
        %3164 = vmatpush2.bf16.msra.mxu0 0
        %3165 = vmatprep.subr.bf16.mxu0 0
        %3166 = vmatpush2.bf16.msra.mxu0 0
        %3167 = vmatprep.subr.bf16.mxu0 0
        %3168 = vmatpush2.bf16.msra.mxu0 0
        %3169 = vmatprep.subr.bf16.mxu0 0
        %3170 = vmatpush2.bf16.msra.mxu0 0
        %3171 = vmatprep.subr.bf16.mxu0 0
        %3172 = vmatpush2.bf16.msra.mxu0 0
        %3173 = vmatprep.subr.bf16.mxu0 0
        %3174 = vmatpush2.bf16.msra.mxu0 0
        %3175 = vmatprep.mubr.bf16.mxu0 0
        %3176 = vmatmul.mubr.bf16.gmra.mxu0 %v3041
        %v3177 = vpop.f32.mrf.mxu0
        %v3178 = vadd.f32 %v3094, %v3177
        %v3179 = vpop.f32.mrf.mxu0
        %v3180 = vpop.f32.mrf.mxu0
        %v3181 = vadd.f32 %v3094, %v3180
        %v3182 = vpop.f32.mrf.mxu0
        %3183 = vmatprep.mubr.bf16.mxu0 0
        %3184 = vmatmul.mubr.bf16.gmra.mxu0 %v3042
        %v3185 = vpop.f32.mrf.mxu0
        %v3186 = vadd.f32 %v3094, %v3185
        %v3187 = vpop.f32.mrf.mxu0
        %v3188 = vpop.f32.mrf.mxu0
        %v3189 = vadd.f32 %v3094, %v3188
        %v3190 = vpop.f32.mrf.mxu0
        %3191 = vmatprep.mubr.bf16.mxu0 0
        %3192 = vmatmul.mubr.bf16.gmra.mxu0 %v3043
        %v3193 = vpop.f32.mrf.mxu0
        %v3194 = vadd.f32 %v3094, %v3193
        %v3195 = vpop.f32.mrf.mxu0
        %v3196 = vpop.f32.mrf.mxu0
        %v3197 = vadd.f32 %v3094, %v3196
        %v3198 = vpop.f32.mrf.mxu0
        %3199 = vmatprep.mubr.bf16.mxu0 0
        %3200 = vmatmul.mubr.bf16.gmra.mxu0 %v3044
        %v3201 = vpop.f32.mrf.mxu0
        %v3202 = vadd.f32 %v3094, %v3201
        %v3203 = vpop.f32.mrf.mxu0
        %v3204 = vpop.f32.mrf.mxu0
        %v3205 = vadd.f32 %v3094, %v3204
        %v3206 = vpop.f32.mrf.mxu0
        %3207 = vmatprep.mubr.bf16.mxu0 0
        %3208 = vmatmul.mubr.bf16.gmra.mxu0 %v3045
        %v3209 = vpop.f32.mrf.mxu0
        %v3210 = vadd.f32 %v3094, %v3209
        %v3211 = vpop.f32.mrf.mxu0
        %v3212 = vpop.f32.mrf.mxu0
        %v3213 = vadd.f32 %v3094, %v3212
        %v3214 = vpop.f32.mrf.mxu0
        %3215 = vmatprep.mubr.bf16.mxu0 0
        %3216 = vmatmul.mubr.bf16.gmra.mxu0 %v3046
        %v3217 = vpop.f32.mrf.mxu0
        %v3218 = vadd.f32 %v3094, %v3217
        %v3219 = vpop.f32.mrf.mxu0
        %v3220 = vpop.f32.mrf.mxu0
        %v3221 = vadd.f32 %v3094, %v3220
        %v3222 = vpop.f32.mrf.mxu0
        %3223 = vmatprep.mubr.bf16.mxu0 0
        %3224 = vmatmul.mubr.bf16.gmra.mxu0 %v3047
        %v3225 = vpop.f32.mrf.mxu0
        %v3226 = vadd.f32 %v3094, %v3225
        %v3227 = vpop.f32.mrf.mxu0
        %v3228 = vpop.f32.mrf.mxu0
        %v3229 = vadd.f32 %v3094, %v3228
        %v3230 = vpop.f32.mrf.mxu0
        %3231 = vmatprep.mubr.bf16.mxu0 0
        %3232 = vmatmul.mubr.bf16.gmra.mxu0 %v3048
        %v3233 = vpop.f32.mrf.mxu0
        %v3234 = vadd.f32 %v3094, %v3233
        %v3235 = vpop.f32.mrf.mxu0
        %v3236 = vpop.f32.mrf.mxu0
        %v3237 = vadd.f32 %v3094, %v3236
        %v3238 = vpop.f32.mrf.mxu0
        %3239 = vmatprep.mubr.bf16.mxu0 0
        %3240 = vmatmul.mubr.bf16.gmra.mxu0 %v3049
        %v3241 = vpop.f32.mrf.mxu0
        %v3242 = vadd.f32 %v3094, %v3241
        %v3243 = vpop.f32.mrf.mxu0
        %v3244 = vpop.f32.mrf.mxu0
        %v3245 = vadd.f32 %v3094, %v3244
        %v3246 = vpop.f32.mrf.mxu0
        %3247 = vmatprep.mubr.bf16.mxu0 0
        %3248 = vmatmul.mubr.bf16.gmra.mxu0 %v3050
        %v3249 = vpop.f32.mrf.mxu0
        %v3250 = vadd.f32 %v3094, %v3249
        %v3251 = vpop.f32.mrf.mxu0
        %v3252 = vpop.f32.mrf.mxu0
        %v3253 = vadd.f32 %v3094, %v3252
        %v3254 = vpop.f32.mrf.mxu0
        %3255 = vmatprep.mubr.bf16.mxu0 0
        %3256 = vmatmul.mubr.bf16.gmra.mxu0 %v3051
        %v3257 = vpop.f32.mrf.mxu0
        %v3258 = vadd.f32 %v3094, %v3257
        %v3259 = vpop.f32.mrf.mxu0
        %v3260 = vpop.f32.mrf.mxu0
        %v3261 = vadd.f32 %v3094, %v3260
        %v3262 = vpop.f32.mrf.mxu0
        %3263 = vmatprep.mubr.bf16.mxu0 0
        %3264 = vmatmul.mubr.bf16.gmra.mxu0 %v3052
        %v3265 = vpop.f32.mrf.mxu0
        %v3266 = vadd.f32 %v3094, %v3265
        %v3267 = vpop.f32.mrf.mxu0
        %v3268 = vpop.f32.mrf.mxu0
        %v3269 = vadd.f32 %v3094, %v3268
        %v3270 = vpop.f32.mrf.mxu0
        %3271 = vmatprep.mubr.bf16.mxu0 0
        %3272 = vmatmul.mubr.bf16.gmra.mxu0 %v3053
        %v3273 = vpop.f32.mrf.mxu0
        %v3274 = vadd.f32 %v3094, %v3273
        %v3275 = vpop.f32.mrf.mxu0
        %v3276 = vpop.f32.mrf.mxu0
        %v3277 = vadd.f32 %v3094, %v3276
        %v3278 = vpop.f32.mrf.mxu0
        %3279 = vmatprep.mubr.bf16.mxu0 0
        %3280 = vmatmul.mubr.bf16.gmra.mxu0 %v3054
        %v3281 = vpop.f32.mrf.mxu0
        %v3282 = vadd.f32 %v3094, %v3281
        %v3283 = vpop.f32.mrf.mxu0
        %v3284 = vpop.f32.mrf.mxu0
        %v3285 = vadd.f32 %v3094, %v3284
        %v3286 = vpop.f32.mrf.mxu0
        %3287 = vmatprep.mubr.bf16.mxu0 0
        %3288 = vmatmul.mubr.bf16.gmra.mxu0 %v3055
        %v3289 = vpop.f32.mrf.mxu0
        %v3290 = vadd.f32 %v3094, %v3289
        %v3291 = vpop.f32.mrf.mxu0
        %v3292 = vpop.f32.mrf.mxu0
        %v3293 = vadd.f32 %v3094, %v3292
        %v3294 = vpop.f32.mrf.mxu0
        %3295 = vmatprep.mubr.bf16.mxu0 0
        %3296 = vmatmul.mubr.bf16.gmra.mxu0 %v3056
        %v3297 = vpop.f32.mrf.mxu0
        %v3298 = vadd.f32 %v3094, %v3297
        %v3299 = vpop.f32.mrf.mxu0
        %v3300 = vpop.f32.mrf.mxu0
        %v3301 = vadd.f32 %v3094, %v3300
        %v3302 = vpop.f32.mrf.mxu0
        %3303 = vmatprep.mubr.bf16.mxu0 0
        %3304 = vmatmul.mubr.bf16.gmra.mxu0 %v3057
        %v3305 = vpop.f32.mrf.mxu0
        %v3306 = vadd.f32 %v3094, %v3305
        %v3307 = vpop.f32.mrf.mxu0
        %v3308 = vpop.f32.mrf.mxu0
        %v3309 = vadd.f32 %v3094, %v3308
        %v3310 = vpop.f32.mrf.mxu0
        %3311 = vmatprep.mubr.bf16.mxu0 0
        %3312 = vmatmul.mubr.bf16.gmra.mxu0 %v3058
        %v3313 = vpop.f32.mrf.mxu0
        %v3314 = vadd.f32 %v3094, %v3313
        %v3315 = vpop.f32.mrf.mxu0
        %v3316 = vpop.f32.mrf.mxu0
        %v3317 = vadd.f32 %v3094, %v3316
        %v3318 = vpop.f32.mrf.mxu0
        %3319 = vmatprep.mubr.bf16.mxu0 0
        %3320 = vmatmul.mubr.bf16.gmra.mxu0 %v3059
        %v3321 = vpop.f32.mrf.mxu0
        %v3322 = vadd.f32 %v3094, %v3321
        %v3323 = vpop.f32.mrf.mxu0
        %v3324 = vpop.f32.mrf.mxu0
        %v3325 = vadd.f32 %v3094, %v3324
        %v3326 = vpop.f32.mrf.mxu0
        %3327 = vmatprep.mubr.bf16.mxu0 0
        %3328 = vmatmul.mubr.bf16.gmra.mxu0 %v3060
        %v3329 = vpop.f32.mrf.mxu0
        %v3330 = vadd.f32 %v3094, %v3329
        %v3331 = vpop.f32.mrf.mxu0
        %v3332 = vpop.f32.mrf.mxu0
        %v3333 = vadd.f32 %v3094, %v3332
        %v3334 = vpop.f32.mrf.mxu0
        %3335 = vmatprep.mubr.bf16.mxu0 0
        %3336 = vmatmul.mubr.bf16.gmra.mxu0 %v3061
        %v3337 = vpop.f32.mrf.mxu0
        %v3338 = vadd.f32 %v3094, %v3337
        %v3339 = vpop.f32.mrf.mxu0
        %v3340 = vpop.f32.mrf.mxu0
        %v3341 = vadd.f32 %v3094, %v3340
        %v3342 = vpop.f32.mrf.mxu0
        %3343 = vmatprep.mubr.bf16.mxu0 0
        %3344 = vmatmul.mubr.bf16.gmra.mxu0 %v3062
        %v3345 = vpop.f32.mrf.mxu0
        %v3346 = vadd.f32 %v3094, %v3345
        %v3347 = vpop.f32.mrf.mxu0
        %v3348 = vpop.f32.mrf.mxu0
        %v3349 = vadd.f32 %v3094, %v3348
        %v3350 = vpop.f32.mrf.mxu0
        %3351 = vmatprep.mubr.bf16.mxu0 0
        %3352 = vmatmul.mubr.bf16.gmra.mxu0 %v3063
        %v3353 = vpop.f32.mrf.mxu0
        %v3354 = vadd.f32 %v3094, %v3353
        %v3355 = vpop.f32.mrf.mxu0
        %v3356 = vpop.f32.mrf.mxu0
        %v3357 = vadd.f32 %v3094, %v3356
        %v3358 = vpop.f32.mrf.mxu0
        %3359 = vmatprep.mubr.bf16.mxu0 0
        %3360 = vmatmul.mubr.bf16.gmra.mxu0 %v3064
        %v3361 = vpop.f32.mrf.mxu0
        %v3362 = vadd.f32 %v3094, %v3361
        %v3363 = vpop.f32.mrf.mxu0
        %v3364 = vpop.f32.mrf.mxu0
        %v3365 = vadd.f32 %v3094, %v3364
        %v3366 = vpop.f32.mrf.mxu0
        %3367 = vmatprep.mubr.bf16.mxu0 0
        %3368 = vmatmul.mubr.bf16.gmra.mxu0 %v3065
        %v3369 = vpop.f32.mrf.mxu0
        %v3370 = vadd.f32 %v3094, %v3369
        %v3371 = vpop.f32.mrf.mxu0
        %v3372 = vpop.f32.mrf.mxu0
        %v3373 = vadd.f32 %v3094, %v3372
        %v3374 = vpop.f32.mrf.mxu0
        %3375 = vmatprep.mubr.bf16.mxu0 0
        %3376 = vmatmul.mubr.bf16.gmra.mxu0 %v3066
        %v3377 = vpop.f32.mrf.mxu0
        %v3378 = vadd.f32 %v3094, %v3377
        %v3379 = vpop.f32.mrf.mxu0
        %v3380 = vpop.f32.mrf.mxu0
        %v3381 = vadd.f32 %v3094, %v3380
        %v3382 = vpop.f32.mrf.mxu0
        %3383 = vmatprep.mubr.bf16.mxu0 0
        %3384 = vmatmul.mubr.bf16.gmra.mxu0 %v3067
        %v3385 = vpop.f32.mrf.mxu0
        %v3386 = vadd.f32 %v3094, %v3385
        %v3387 = vpop.f32.mrf.mxu0
        %v3388 = vpop.f32.mrf.mxu0
        %v3389 = vadd.f32 %v3094, %v3388
        %v3390 = vpop.f32.mrf.mxu0
        %3391 = vmatprep.mubr.bf16.mxu0 0
        %3392 = vmatmul.mubr.bf16.gmra.mxu0 %v3068
        %v3393 = vpop.f32.mrf.mxu0
        %v3394 = vadd.f32 %v3094, %v3393
        %v3395 = vpop.f32.mrf.mxu0
        %v3396 = vpop.f32.mrf.mxu0
        %v3397 = vadd.f32 %v3094, %v3396
        %v3398 = vpop.f32.mrf.mxu0
        %3399 = vmatprep.mubr.bf16.mxu0 0
        %3400 = vmatmul.mubr.bf16.gmra.mxu0 %v3069
        %v3401 = vpop.f32.mrf.mxu0
        %v3402 = vadd.f32 %v3094, %v3401
        %v3403 = vpop.f32.mrf.mxu0
        %v3404 = vpop.f32.mrf.mxu0
        %v3405 = vadd.f32 %v3094, %v3404
        %v3406 = vpop.f32.mrf.mxu0
        %3407 = vmatprep.mubr.bf16.mxu0 0
        %3408 = vmatmul.mubr.bf16.gmra.mxu0 %v3070
        %v3409 = vpop.f32.mrf.mxu0
        %v3410 = vadd.f32 %v3094, %v3409
        %v3411 = vpop.f32.mrf.mxu0
        %v3412 = vpop.f32.mrf.mxu0
        %v3413 = vadd.f32 %v3094, %v3412
        %v3414 = vpop.f32.mrf.mxu0
        %3415 = vmatprep.mubr.bf16.mxu0 0
        %3416 = vmatmul.mubr.bf16.gmra.mxu0 %v3071
        %v3417 = vpop.f32.mrf.mxu0
        %v3418 = vadd.f32 %v3094, %v3417
        %v3419 = vpop.f32.mrf.mxu0
        %v3420 = vpop.f32.mrf.mxu0
        %v3421 = vadd.f32 %v3094, %v3420
        %v3422 = vpop.f32.mrf.mxu0
        %3423 = vmatprep.mubr.bf16.mxu0 0
        %3424 = vmatmul.mubr.bf16.gmra.mxu0 %v3072
        %v3425 = vpop.f32.mrf.mxu0
        %v3426 = vadd.f32 %v3094, %v3425
        %v3427 = vpop.f32.mrf.mxu0
        %v3428 = vpop.f32.mrf.mxu0
        %v3429 = vadd.f32 %v3094, %v3428
        %v3430 = vpop.f32.mrf.mxu0
        %3431 = vdwg.mxu0
        %v3432 = vmax.f32 %v3178, 0.0
        %v3433 = vmax.f32 %v3181, 0.0
        %v3434 = vmax.f32 %v3186, 0.0
        %v3435 = vmax.f32 %v3189, 0.0
        %v3436 = vmax.f32 %v3194, 0.0
        %v3437 = vmax.f32 %v3197, 0.0
        %v3438 = vmax.f32 %v3202, 0.0
        %v3439 = vmax.f32 %v3205, 0.0
        %v3440 = vmax.f32 %v3210, 0.0
        %v3441 = vmax.f32 %v3213, 0.0
        %v3442 = vmax.f32 %v3218, 0.0
        %v3443 = vmax.f32 %v3221, 0.0
        %v3444 = vmax.f32 %v3226, 0.0
        %v3445 = vmax.f32 %v3229, 0.0
        %v3446 = vmax.f32 %v3234, 0.0
        %v3447 = vmax.f32 %v3237, 0.0
        %v3448 = vmax.f32 %v3242, 0.0
        %v3449 = vmax.f32 %v3245, 0.0
        %v3450 = vmax.f32 %v3250, 0.0
        %v3451 = vmax.f32 %v3253, 0.0
        %v3452 = vmax.f32 %v3258, 0.0
        %v3453 = vmax.f32 %v3261, 0.0
        %v3454 = vmax.f32 %v3266, 0.0
        %v3455 = vmax.f32 %v3269, 0.0
        %v3456 = vmax.f32 %v3274, 0.0
        %v3457 = vmax.f32 %v3277, 0.0
        %v3458 = vmax.f32 %v3282, 0.0
        %v3459 = vmax.f32 %v3285, 0.0
        %v3460 = vmax.f32 %v3290, 0.0
        %v3461 = vmax.f32 %v3293, 0.0
        %v3462 = vmax.f32 %v3298, 0.0
        %v3463 = vmax.f32 %v3301, 0.0
        %v3464 = vmax.f32 %v3306, 0.0
        %v3465 = vmax.f32 %v3309, 0.0
        %v3466 = vmax.f32 %v3314, 0.0
        %v3467 = vmax.f32 %v3317, 0.0
        %v3468 = vmax.f32 %v3322, 0.0
        %v3469 = vmax.f32 %v3325, 0.0
        %v3470 = vmax.f32 %v3330, 0.0
        %v3471 = vmax.f32 %v3333, 0.0
        %v3472 = vmax.f32 %v3338, 0.0
        %v3473 = vmax.f32 %v3341, 0.0
        %v3474 = vmax.f32 %v3346, 0.0
        %v3475 = vmax.f32 %v3349, 0.0
        %v3476 = vmax.f32 %v3354, 0.0
        %v3477 = vmax.f32 %v3357, 0.0
        %v3478 = vmax.f32 %v3362, 0.0
        %v3479 = vmax.f32 %v3365, 0.0
        %v3480 = vmax.f32 %v3370, 0.0
        %v3481 = vmax.f32 %v3373, 0.0
        %v3482 = vmax.f32 %v3378, 0.0
        %v3483 = vmax.f32 %v3381, 0.0
        %v3484 = vmax.f32 %v3386, 0.0
        %v3485 = vmax.f32 %v3389, 0.0
        %v3486 = vmax.f32 %v3394, 0.0
        %v3487 = vmax.f32 %v3397, 0.0
        %v3488 = vmax.f32 %v3402, 0.0
        %v3489 = vmax.f32 %v3405, 0.0
        %v3490 = vmax.f32 %v3410, 0.0
        %v3491 = vmax.f32 %v3413, 0.0
        %v3492 = vmax.f32 %v3418, 0.0
        %v3493 = vmax.f32 %v3421, 0.0
        %v3494 = vmax.f32 %v3426, 0.0
        %v3495 = vmax.f32 %v3429, 0.0
        %v3496 = vpack.c.bf16 %v3433, %v3432
        %v3497 = vpack.c.bf16 %v3435, %v3434
        %v3498 = vpack.c.bf16 %v3437, %v3436
        %v3499 = vpack.c.bf16 %v3439, %v3438
        %v3500 = vpack.c.bf16 %v3441, %v3440
        %v3501 = vpack.c.bf16 %v3443, %v3442
        %v3502 = vpack.c.bf16 %v3445, %v3444
        %v3503 = vpack.c.bf16 %v3447, %v3446
        %v3504 = vpack.c.bf16 %v3449, %v3448
        %v3505 = vpack.c.bf16 %v3451, %v3450
        %v3506 = vpack.c.bf16 %v3453, %v3452
        %v3507 = vpack.c.bf16 %v3455, %v3454
        %v3508 = vpack.c.bf16 %v3457, %v3456
        %v3509 = vpack.c.bf16 %v3459, %v3458
        %v3510 = vpack.c.bf16 %v3461, %v3460
        %v3511 = vpack.c.bf16 %v3463, %v3462
        %v3512 = vpack.c.bf16 %v3465, %v3464
        %v3513 = vpack.c.bf16 %v3467, %v3466
        %v3514 = vpack.c.bf16 %v3469, %v3468
        %v3515 = vpack.c.bf16 %v3471, %v3470
        %v3516 = vpack.c.bf16 %v3473, %v3472
        %v3517 = vpack.c.bf16 %v3475, %v3474
        %v3518 = vpack.c.bf16 %v3477, %v3476
        %v3519 = vpack.c.bf16 %v3479, %v3478
        %v3520 = vpack.c.bf16 %v3481, %v3480
        %v3521 = vpack.c.bf16 %v3483, %v3482
        %v3522 = vpack.c.bf16 %v3485, %v3484
        %v3523 = vpack.c.bf16 %v3487, %v3486
        %v3524 = vpack.c.bf16 %v3489, %v3488
        %v3525 = vpack.c.bf16 %v3491, %v3490
        %v3526 = vpack.c.bf16 %v3493, %v3492
        %v3527 = vpack.c.bf16 %v3495, %v3494
        %s3528 = scalar_lea.vmem %s2, 384
        %v3529 = vld [vmem:[%s3528] sm:$0xf]
        %v3530 = vld [vmem:[%s3528 + $0x4] sm:$0xf]
        %v3531 = vld [vmem:[%s3528 + $0x8] sm:$0xf]
        %v3532 = vld [vmem:[%s3528 + $0xc] sm:$0xf]
        %v3533 = vld [vmem:[%s3528 + $0x10] sm:$0xf]
        %v3534 = vld [vmem:[%s3528 + $0x14] sm:$0xf]
        %v3535 = vld [vmem:[%s3528 + $0x18] sm:$0xf]
        %v3536 = vld [vmem:[%s3528 + $0x1c] sm:$0xf]
        %v3537 = vld [vmem:[%s3528 + $0x20] sm:$0xf]
        %v3538 = vld [vmem:[%s3528 + $0x24] sm:$0xf]
        %v3539 = vld [vmem:[%s3528 + $0x28] sm:$0xf]
        %v3540 = vld [vmem:[%s3528 + $0x2c] sm:$0xf]
        %v3541 = vld [vmem:[%s3528 + $0x30] sm:$0xf]
        %v3542 = vld [vmem:[%s3528 + $0x34] sm:$0xf]
        %v3543 = vld [vmem:[%s3528 + $0x38] sm:$0xf]
        %v3544 = vld [vmem:[%s3528 + $0x3c] sm:$0xf]
        %v3545 = vld [vmem:[%s3 + $0x7] sm:$0x1]
        %v3546 = vlaneseq
        %v3547 = vshrl.u32 %v3546, 7
        %v3548 = vsub.s32 0, %v3547
        %v3549 = vrot.slane %v3545, %v3548
        %v3566 = vunpack.c.l.b16 %v3529
        %v3567 = vunpack.c.l.b16 %v3530
        %v3568 = vunpack.c.l.b16 %v3531
        %v3569 = vunpack.c.l.b16 %v3532
        %v3570 = vunpack.c.l.b16 %v3533
        %v3571 = vunpack.c.l.b16 %v3534
        %v3572 = vunpack.c.l.b16 %v3535
        %v3573 = vunpack.c.l.b16 %v3536
        %v3574 = vunpack.c.l.b16 %v3537
        %v3575 = vunpack.c.l.b16 %v3538
        %v3576 = vunpack.c.l.b16 %v3539
        %v3577 = vunpack.c.l.b16 %v3540
        %v3578 = vunpack.c.l.b16 %v3541
        %v3579 = vunpack.c.l.b16 %v3542
        %v3580 = vunpack.c.l.b16 %v3543
        %v3581 = vunpack.c.l.b16 %v3544
        %v3582 = vpack.c.b16 %v3567, %v3566
        %v3583 = vpack.c.b16 %v3569, %v3568
        %v3584 = vpack.c.b16 %v3571, %v3570
        %v3585 = vpack.c.b16 %v3573, %v3572
        %v3586 = vpack.c.b16 %v3575, %v3574
        %v3587 = vpack.c.b16 %v3577, %v3576
        %v3588 = vpack.c.b16 %v3579, %v3578
        %v3589 = vpack.c.b16 %v3581, %v3580
        %3598 = vmatprep.subr.bf16.mxu0 0
        %3599 = vmatpush1.bf16.msra.mxu0 %v3589
        %3600 = vmatprep.subr.bf16.mxu0 0
        %3601 = vmatpush1.bf16.msra.mxu0 %v3588
        %3602 = vmatprep.subr.bf16.mxu0 0
        %3603 = vmatpush1.bf16.msra.mxu0 %v3587
        %3604 = vmatprep.subr.bf16.mxu0 0
        %3605 = vmatpush1.bf16.msra.mxu0 %v3586
        %3606 = vmatprep.subr.bf16.mxu0 0
        %3607 = vmatpush1.bf16.msra.mxu0 %v3585
        %3608 = vmatprep.subr.bf16.mxu0 0
        %3609 = vmatpush1.bf16.msra.mxu0 %v3584
        %3610 = vmatprep.subr.bf16.mxu0 0
        %3611 = vmatpush1.bf16.msra.mxu0 %v3583
        %3612 = vmatprep.subr.bf16.mxu0 0
        %3613 = vmatpush1.bf16.msra.mxu0 %v3582
        %3614 = vmatprep.subr.bf16.mxu0 0
        %3615 = vmatpush2.bf16.msra.mxu0 0
        %3616 = vmatprep.subr.bf16.mxu0 0
        %3617 = vmatpush2.bf16.msra.mxu0 0
        %3618 = vmatprep.subr.bf16.mxu0 0
        %3619 = vmatpush2.bf16.msra.mxu0 0
        %3620 = vmatprep.subr.bf16.mxu0 0
        %3621 = vmatpush2.bf16.msra.mxu0 0
        %3622 = vmatprep.subr.bf16.mxu0 0
        %3623 = vmatpush2.bf16.msra.mxu0 0
        %3624 = vmatprep.subr.bf16.mxu0 0
        %3625 = vmatpush2.bf16.msra.mxu0 0
        %3626 = vmatprep.subr.bf16.mxu0 0
        %3627 = vmatpush2.bf16.msra.mxu0 0
        %3628 = vmatprep.subr.bf16.mxu0 0
        %3629 = vmatpush2.bf16.msra.mxu0 0
        %3630 = vmatprep.mubr.bf16.mxu0 0
        %3631 = vmatmul.mubr.bf16.gmra.mxu0 %v3496
        %v3632 = vpop.f32.mrf.mxu0
        %v3633 = vadd.f32 %v3549, %v3632
        %v3634 = vpop.f32.mrf.mxu0
        %v3635 = vpop.f32.mrf.mxu0
        %v3636 = vadd.f32 %v3549, %v3635
        %v3637 = vpop.f32.mrf.mxu0
        %3638 = vmatprep.mubr.bf16.mxu0 0
        %3639 = vmatmul.mubr.bf16.gmra.mxu0 %v3497
        %v3640 = vpop.f32.mrf.mxu0
        %v3641 = vadd.f32 %v3549, %v3640
        %v3642 = vpop.f32.mrf.mxu0
        %v3643 = vpop.f32.mrf.mxu0
        %v3644 = vadd.f32 %v3549, %v3643
        %v3645 = vpop.f32.mrf.mxu0
        %3646 = vmatprep.mubr.bf16.mxu0 0
        %3647 = vmatmul.mubr.bf16.gmra.mxu0 %v3498
        %v3648 = vpop.f32.mrf.mxu0
        %v3649 = vadd.f32 %v3549, %v3648
        %v3650 = vpop.f32.mrf.mxu0
        %v3651 = vpop.f32.mrf.mxu0
        %v3652 = vadd.f32 %v3549, %v3651
        %v3653 = vpop.f32.mrf.mxu0
        %3654 = vmatprep.mubr.bf16.mxu0 0
        %3655 = vmatmul.mubr.bf16.gmra.mxu0 %v3499
        %v3656 = vpop.f32.mrf.mxu0
        %v3657 = vadd.f32 %v3549, %v3656
        %v3658 = vpop.f32.mrf.mxu0
        %v3659 = vpop.f32.mrf.mxu0
        %v3660 = vadd.f32 %v3549, %v3659
        %v3661 = vpop.f32.mrf.mxu0
        %3662 = vmatprep.mubr.bf16.mxu0 0
        %3663 = vmatmul.mubr.bf16.gmra.mxu0 %v3500
        %v3664 = vpop.f32.mrf.mxu0
        %v3665 = vadd.f32 %v3549, %v3664
        %v3666 = vpop.f32.mrf.mxu0
        %v3667 = vpop.f32.mrf.mxu0
        %v3668 = vadd.f32 %v3549, %v3667
        %v3669 = vpop.f32.mrf.mxu0
        %3670 = vmatprep.mubr.bf16.mxu0 0
        %3671 = vmatmul.mubr.bf16.gmra.mxu0 %v3501
        %v3672 = vpop.f32.mrf.mxu0
        %v3673 = vadd.f32 %v3549, %v3672
        %v3674 = vpop.f32.mrf.mxu0
        %v3675 = vpop.f32.mrf.mxu0
        %v3676 = vadd.f32 %v3549, %v3675
        %v3677 = vpop.f32.mrf.mxu0
        %3678 = vmatprep.mubr.bf16.mxu0 0
        %3679 = vmatmul.mubr.bf16.gmra.mxu0 %v3502
        %v3680 = vpop.f32.mrf.mxu0
        %v3681 = vadd.f32 %v3549, %v3680
        %v3682 = vpop.f32.mrf.mxu0
        %v3683 = vpop.f32.mrf.mxu0
        %v3684 = vadd.f32 %v3549, %v3683
        %v3685 = vpop.f32.mrf.mxu0
        %3686 = vmatprep.mubr.bf16.mxu0 0
        %3687 = vmatmul.mubr.bf16.gmra.mxu0 %v3503
        %v3688 = vpop.f32.mrf.mxu0
        %v3689 = vadd.f32 %v3549, %v3688
        %v3690 = vpop.f32.mrf.mxu0
        %v3691 = vpop.f32.mrf.mxu0
        %v3692 = vadd.f32 %v3549, %v3691
        %v3693 = vpop.f32.mrf.mxu0
        %3694 = vmatprep.mubr.bf16.mxu0 0
        %3695 = vmatmul.mubr.bf16.gmra.mxu0 %v3504
        %v3696 = vpop.f32.mrf.mxu0
        %v3697 = vadd.f32 %v3549, %v3696
        %v3698 = vpop.f32.mrf.mxu0
        %v3699 = vpop.f32.mrf.mxu0
        %v3700 = vadd.f32 %v3549, %v3699
        %v3701 = vpop.f32.mrf.mxu0
        %3702 = vmatprep.mubr.bf16.mxu0 0
        %3703 = vmatmul.mubr.bf16.gmra.mxu0 %v3505
        %v3704 = vpop.f32.mrf.mxu0
        %v3705 = vadd.f32 %v3549, %v3704
        %v3706 = vpop.f32.mrf.mxu0
        %v3707 = vpop.f32.mrf.mxu0
        %v3708 = vadd.f32 %v3549, %v3707
        %v3709 = vpop.f32.mrf.mxu0
        %3710 = vmatprep.mubr.bf16.mxu0 0
        %3711 = vmatmul.mubr.bf16.gmra.mxu0 %v3506
        %v3712 = vpop.f32.mrf.mxu0
        %v3713 = vadd.f32 %v3549, %v3712
        %v3714 = vpop.f32.mrf.mxu0
        %v3715 = vpop.f32.mrf.mxu0
        %v3716 = vadd.f32 %v3549, %v3715
        %v3717 = vpop.f32.mrf.mxu0
        %3718 = vmatprep.mubr.bf16.mxu0 0
        %3719 = vmatmul.mubr.bf16.gmra.mxu0 %v3507
        %v3720 = vpop.f32.mrf.mxu0
        %v3721 = vadd.f32 %v3549, %v3720
        %v3722 = vpop.f32.mrf.mxu0
        %v3723 = vpop.f32.mrf.mxu0
        %v3724 = vadd.f32 %v3549, %v3723
        %v3725 = vpop.f32.mrf.mxu0
        %3726 = vmatprep.mubr.bf16.mxu0 0
        %3727 = vmatmul.mubr.bf16.gmra.mxu0 %v3508
        %v3728 = vpop.f32.mrf.mxu0
        %v3729 = vadd.f32 %v3549, %v3728
        %v3730 = vpop.f32.mrf.mxu0
        %v3731 = vpop.f32.mrf.mxu0
        %v3732 = vadd.f32 %v3549, %v3731
        %v3733 = vpop.f32.mrf.mxu0
        %3734 = vmatprep.mubr.bf16.mxu0 0
        %3735 = vmatmul.mubr.bf16.gmra.mxu0 %v3509
        %v3736 = vpop.f32.mrf.mxu0
        %v3737 = vadd.f32 %v3549, %v3736
        %v3738 = vpop.f32.mrf.mxu0
        %v3739 = vpop.f32.mrf.mxu0
        %v3740 = vadd.f32 %v3549, %v3739
        %v3741 = vpop.f32.mrf.mxu0
        %3742 = vmatprep.mubr.bf16.mxu0 0
        %3743 = vmatmul.mubr.bf16.gmra.mxu0 %v3510
        %v3744 = vpop.f32.mrf.mxu0
        %v3745 = vadd.f32 %v3549, %v3744
        %v3746 = vpop.f32.mrf.mxu0
        %v3747 = vpop.f32.mrf.mxu0
        %v3748 = vadd.f32 %v3549, %v3747
        %v3749 = vpop.f32.mrf.mxu0
        %3750 = vmatprep.mubr.bf16.mxu0 0
        %3751 = vmatmul.mubr.bf16.gmra.mxu0 %v3511
        %v3752 = vpop.f32.mrf.mxu0
        %v3753 = vadd.f32 %v3549, %v3752
        %v3754 = vpop.f32.mrf.mxu0
        %v3755 = vpop.f32.mrf.mxu0
        %v3756 = vadd.f32 %v3549, %v3755
        %v3757 = vpop.f32.mrf.mxu0
        %3758 = vmatprep.mubr.bf16.mxu0 0
        %3759 = vmatmul.mubr.bf16.gmra.mxu0 %v3512
        %v3760 = vpop.f32.mrf.mxu0
        %v3761 = vadd.f32 %v3549, %v3760
        %v3762 = vpop.f32.mrf.mxu0
        %v3763 = vpop.f32.mrf.mxu0
        %v3764 = vadd.f32 %v3549, %v3763
        %v3765 = vpop.f32.mrf.mxu0
        %3766 = vmatprep.mubr.bf16.mxu0 0
        %3767 = vmatmul.mubr.bf16.gmra.mxu0 %v3513
        %v3768 = vpop.f32.mrf.mxu0
        %v3769 = vadd.f32 %v3549, %v3768
        %v3770 = vpop.f32.mrf.mxu0
        %v3771 = vpop.f32.mrf.mxu0
        %v3772 = vadd.f32 %v3549, %v3771
        %v3773 = vpop.f32.mrf.mxu0
        %3774 = vmatprep.mubr.bf16.mxu0 0
        %3775 = vmatmul.mubr.bf16.gmra.mxu0 %v3514
        %v3776 = vpop.f32.mrf.mxu0
        %v3777 = vadd.f32 %v3549, %v3776
        %v3778 = vpop.f32.mrf.mxu0
        %v3779 = vpop.f32.mrf.mxu0
        %v3780 = vadd.f32 %v3549, %v3779
        %v3781 = vpop.f32.mrf.mxu0
        %3782 = vmatprep.mubr.bf16.mxu0 0
        %3783 = vmatmul.mubr.bf16.gmra.mxu0 %v3515
        %v3784 = vpop.f32.mrf.mxu0
        %v3785 = vadd.f32 %v3549, %v3784
        %v3786 = vpop.f32.mrf.mxu0
        %v3787 = vpop.f32.mrf.mxu0
        %v3788 = vadd.f32 %v3549, %v3787
        %v3789 = vpop.f32.mrf.mxu0
        %3790 = vmatprep.mubr.bf16.mxu0 0
        %3791 = vmatmul.mubr.bf16.gmra.mxu0 %v3516
        %v3792 = vpop.f32.mrf.mxu0
        %v3793 = vadd.f32 %v3549, %v3792
        %v3794 = vpop.f32.mrf.mxu0
        %v3795 = vpop.f32.mrf.mxu0
        %v3796 = vadd.f32 %v3549, %v3795
        %v3797 = vpop.f32.mrf.mxu0
        %3798 = vmatprep.mubr.bf16.mxu0 0
        %3799 = vmatmul.mubr.bf16.gmra.mxu0 %v3517
        %v3800 = vpop.f32.mrf.mxu0
        %v3801 = vadd.f32 %v3549, %v3800
        %v3802 = vpop.f32.mrf.mxu0
        %v3803 = vpop.f32.mrf.mxu0
        %v3804 = vadd.f32 %v3549, %v3803
        %v3805 = vpop.f32.mrf.mxu0
        %3806 = vmatprep.mubr.bf16.mxu0 0
        %3807 = vmatmul.mubr.bf16.gmra.mxu0 %v3518
        %v3808 = vpop.f32.mrf.mxu0
        %v3809 = vadd.f32 %v3549, %v3808
        %v3810 = vpop.f32.mrf.mxu0
        %v3811 = vpop.f32.mrf.mxu0
        %v3812 = vadd.f32 %v3549, %v3811
        %v3813 = vpop.f32.mrf.mxu0
        %3814 = vmatprep.mubr.bf16.mxu0 0
        %3815 = vmatmul.mubr.bf16.gmra.mxu0 %v3519
        %v3816 = vpop.f32.mrf.mxu0
        %v3817 = vadd.f32 %v3549, %v3816
        %v3818 = vpop.f32.mrf.mxu0
        %v3819 = vpop.f32.mrf.mxu0
        %v3820 = vadd.f32 %v3549, %v3819
        %v3821 = vpop.f32.mrf.mxu0
        %3822 = vmatprep.mubr.bf16.mxu0 0
        %3823 = vmatmul.mubr.bf16.gmra.mxu0 %v3520
        %v3824 = vpop.f32.mrf.mxu0
        %v3825 = vadd.f32 %v3549, %v3824
        %v3826 = vpop.f32.mrf.mxu0
        %v3827 = vpop.f32.mrf.mxu0
        %v3828 = vadd.f32 %v3549, %v3827
        %v3829 = vpop.f32.mrf.mxu0
        %3830 = vmatprep.mubr.bf16.mxu0 0
        %3831 = vmatmul.mubr.bf16.gmra.mxu0 %v3521
        %v3832 = vpop.f32.mrf.mxu0
        %v3833 = vadd.f32 %v3549, %v3832
        %v3834 = vpop.f32.mrf.mxu0
        %v3835 = vpop.f32.mrf.mxu0
        %v3836 = vadd.f32 %v3549, %v3835
        %v3837 = vpop.f32.mrf.mxu0
        %3838 = vmatprep.mubr.bf16.mxu0 0
        %3839 = vmatmul.mubr.bf16.gmra.mxu0 %v3522
        %v3840 = vpop.f32.mrf.mxu0
        %v3841 = vadd.f32 %v3549, %v3840
        %v3842 = vpop.f32.mrf.mxu0
        %v3843 = vpop.f32.mrf.mxu0
        %v3844 = vadd.f32 %v3549, %v3843
        %v3845 = vpop.f32.mrf.mxu0
        %3846 = vmatprep.mubr.bf16.mxu0 0
        %3847 = vmatmul.mubr.bf16.gmra.mxu0 %v3523
        %v3848 = vpop.f32.mrf.mxu0
        %v3849 = vadd.f32 %v3549, %v3848
        %v3850 = vpop.f32.mrf.mxu0
        %v3851 = vpop.f32.mrf.mxu0
        %v3852 = vadd.f32 %v3549, %v3851
        %v3853 = vpop.f32.mrf.mxu0
        %3854 = vmatprep.mubr.bf16.mxu0 0
        %3855 = vmatmul.mubr.bf16.gmra.mxu0 %v3524
        %v3856 = vpop.f32.mrf.mxu0
        %v3857 = vadd.f32 %v3549, %v3856
        %v3858 = vpop.f32.mrf.mxu0
        %v3859 = vpop.f32.mrf.mxu0
        %v3860 = vadd.f32 %v3549, %v3859
        %v3861 = vpop.f32.mrf.mxu0
        %3862 = vmatprep.mubr.bf16.mxu0 0
        %3863 = vmatmul.mubr.bf16.gmra.mxu0 %v3525
        %v3864 = vpop.f32.mrf.mxu0
        %v3865 = vadd.f32 %v3549, %v3864
        %v3866 = vpop.f32.mrf.mxu0
        %v3867 = vpop.f32.mrf.mxu0
        %v3868 = vadd.f32 %v3549, %v3867
        %v3869 = vpop.f32.mrf.mxu0
        %3870 = vmatprep.mubr.bf16.mxu0 0
        %3871 = vmatmul.mubr.bf16.gmra.mxu0 %v3526
        %v3872 = vpop.f32.mrf.mxu0
        %v3873 = vadd.f32 %v3549, %v3872
        %v3874 = vpop.f32.mrf.mxu0
        %v3875 = vpop.f32.mrf.mxu0
        %v3876 = vadd.f32 %v3549, %v3875
        %v3877 = vpop.f32.mrf.mxu0
        %3878 = vmatprep.mubr.bf16.mxu0 0
        %3879 = vmatmul.mubr.bf16.gmra.mxu0 %v3527
        %v3880 = vpop.f32.mrf.mxu0
        %v3881 = vadd.f32 %v3549, %v3880
        %v3882 = vpop.f32.mrf.mxu0
        %v3883 = vpop.f32.mrf.mxu0
        %v3884 = vadd.f32 %v3549, %v3883
        %v3885 = vpop.f32.mrf.mxu0
        %3886 = vdwg.mxu0
        %v3887 = vpack.c.bf16 %v3636, %v3633
        %v3888 = vpack.c.bf16 %v3644, %v3641
        %v3889 = vpack.c.bf16 %v3652, %v3649
        %v3890 = vpack.c.bf16 %v3660, %v3657
        %v3891 = vpack.c.bf16 %v3668, %v3665
        %v3892 = vpack.c.bf16 %v3676, %v3673
        %v3893 = vpack.c.bf16 %v3684, %v3681
        %v3894 = vpack.c.bf16 %v3692, %v3689
        %v3895 = vpack.c.bf16 %v3700, %v3697
        %v3896 = vpack.c.bf16 %v3708, %v3705
        %v3897 = vpack.c.bf16 %v3716, %v3713
        %v3898 = vpack.c.bf16 %v3724, %v3721
        %v3899 = vpack.c.bf16 %v3732, %v3729
        %v3900 = vpack.c.bf16 %v3740, %v3737
        %v3901 = vpack.c.bf16 %v3748, %v3745
        %v3902 = vpack.c.bf16 %v3756, %v3753
        %v3903 = vpack.c.bf16 %v3764, %v3761
        %v3904 = vpack.c.bf16 %v3772, %v3769
        %v3905 = vpack.c.bf16 %v3780, %v3777
        %v3906 = vpack.c.bf16 %v3788, %v3785
        %v3907 = vpack.c.bf16 %v3796, %v3793
        %v3908 = vpack.c.bf16 %v3804, %v3801
        %v3909 = vpack.c.bf16 %v3812, %v3809
        %v3910 = vpack.c.bf16 %v3820, %v3817
        %v3911 = vpack.c.bf16 %v3828, %v3825
        %v3912 = vpack.c.bf16 %v3836, %v3833
        %v3913 = vpack.c.bf16 %v3844, %v3841
        %v3914 = vpack.c.bf16 %v3852, %v3849
        %v3915 = vpack.c.bf16 %v3860, %v3857
        %v3916 = vpack.c.bf16 %v3868, %v3865
        %v3917 = vpack.c.bf16 %v3876, %v3873
        %v3918 = vpack.c.bf16 %v3884, %v3881
        %v3951 = vunpack.c.l.b16 %v3887
        %v3952 = vunpack.c.h.b16 %v3887
        %v3953 = vunpack.c.l.b16 %v3888
        %v3954 = vunpack.c.h.b16 %v3888
        %v3955 = vunpack.c.l.b16 %v3889
        %v3956 = vunpack.c.h.b16 %v3889
        %v3957 = vunpack.c.l.b16 %v3890
        %v3958 = vunpack.c.h.b16 %v3890
        %v3959 = vunpack.c.l.b16 %v3891
        %v3960 = vunpack.c.h.b16 %v3891
        %v3961 = vunpack.c.l.b16 %v3892
        %v3962 = vunpack.c.h.b16 %v3892
        %v3963 = vunpack.c.l.b16 %v3893
        %v3964 = vunpack.c.h.b16 %v3893
        %v3965 = vunpack.c.l.b16 %v3894
        %v3966 = vunpack.c.h.b16 %v3894
        %v3967 = vunpack.c.l.b16 %v3895
        %v3968 = vunpack.c.h.b16 %v3895
        %v3969 = vunpack.c.l.b16 %v3896
        %v3970 = vunpack.c.h.b16 %v3896
        %v3971 = vunpack.c.l.b16 %v3897
        %v3972 = vunpack.c.h.b16 %v3897
        %v3973 = vunpack.c.l.b16 %v3898
        %v3974 = vunpack.c.h.b16 %v3898
        %v3975 = vunpack.c.l.b16 %v3899
        %v3976 = vunpack.c.h.b16 %v3899
        %v3977 = vunpack.c.l.b16 %v3900
        %v3978 = vunpack.c.h.b16 %v3900
        %v3979 = vunpack.c.l.b16 %v3901
        %v3980 = vunpack.c.h.b16 %v3901
        %v3981 = vunpack.c.l.b16 %v3902
        %v3982 = vunpack.c.h.b16 %v3902
        %v3983 = vunpack.c.l.b16 %v3903
        %v3984 = vunpack.c.h.b16 %v3903
        %v3985 = vunpack.c.l.b16 %v3904
        %v3986 = vunpack.c.h.b16 %v3904
        %v3987 = vunpack.c.l.b16 %v3905
        %v3988 = vunpack.c.h.b16 %v3905
        %v3989 = vunpack.c.l.b16 %v3906
        %v3990 = vunpack.c.h.b16 %v3906
        %v3991 = vunpack.c.l.b16 %v3907
        %v3992 = vunpack.c.h.b16 %v3907
        %v3993 = vunpack.c.l.b16 %v3908
        %v3994 = vunpack.c.h.b16 %v3908
        %v3995 = vunpack.c.l.b16 %v3909
        %v3996 = vunpack.c.h.b16 %v3909
        %v3997 = vunpack.c.l.b16 %v3910
        %v3998 = vunpack.c.h.b16 %v3910
        %v3999 = vunpack.c.l.b16 %v3911
        %v4000 = vunpack.c.h.b16 %v3911
        %v4001 = vunpack.c.l.b16 %v3912
        %v4002 = vunpack.c.h.b16 %v3912
        %v4003 = vunpack.c.l.b16 %v3913
        %v4004 = vunpack.c.h.b16 %v3913
        %v4005 = vunpack.c.l.b16 %v3914
        %v4006 = vunpack.c.h.b16 %v3914
        %v4007 = vunpack.c.l.b16 %v3915
        %v4008 = vunpack.c.h.b16 %v3915
        %v4009 = vunpack.c.l.b16 %v3916
        %v4010 = vunpack.c.h.b16 %v3916
        %v4011 = vunpack.c.l.b16 %v3917
        %v4012 = vunpack.c.h.b16 %v3917
        %v4013 = vunpack.c.l.b16 %v3918
        %v4014 = vunpack.c.h.b16 %v3918
        %v4015 = vpack.c.b16 %v3951, %v3951
        %v4016 = vpack.c.b16 %v3952, %v3952
        %v4017 = vpack.c.b16 %v3953, %v3953
        %v4018 = vpack.c.b16 %v3954, %v3954
        %v4019 = vpack.c.b16 %v3955, %v3955
        %v4020 = vpack.c.b16 %v3956, %v3956
        %v4021 = vpack.c.b16 %v3957, %v3957
        %v4022 = vpack.c.b16 %v3958, %v3958
        %v4023 = vpack.c.b16 %v3959, %v3959
        %v4024 = vpack.c.b16 %v3960, %v3960
        %v4025 = vpack.c.b16 %v3961, %v3961
        %v4026 = vpack.c.b16 %v3962, %v3962
        %v4027 = vpack.c.b16 %v3963, %v3963
        %v4028 = vpack.c.b16 %v3964, %v3964
        %v4029 = vpack.c.b16 %v3965, %v3965
        %v4030 = vpack.c.b16 %v3966, %v3966
        %v4031 = vpack.c.b16 %v3967, %v3967
        %v4032 = vpack.c.b16 %v3968, %v3968
        %v4033 = vpack.c.b16 %v3969, %v3969
        %v4034 = vpack.c.b16 %v3970, %v3970
        %v4035 = vpack.c.b16 %v3971, %v3971
        %v4036 = vpack.c.b16 %v3972, %v3972
        %v4037 = vpack.c.b16 %v3973, %v3973
        %v4038 = vpack.c.b16 %v3974, %v3974
        %v4039 = vpack.c.b16 %v3975, %v3975
        %v4040 = vpack.c.b16 %v3976, %v3976
        %v4041 = vpack.c.b16 %v3977, %v3977
        %v4042 = vpack.c.b16 %v3978, %v3978
        %v4043 = vpack.c.b16 %v3979, %v3979
        %v4044 = vpack.c.b16 %v3980, %v3980
        %v4045 = vpack.c.b16 %v3981, %v3981
        %v4046 = vpack.c.b16 %v3982, %v3982
        %v4047 = vpack.c.b16 %v3983, %v3983
        %v4048 = vpack.c.b16 %v3984, %v3984
        %v4049 = vpack.c.b16 %v3985, %v3985
        %v4050 = vpack.c.b16 %v3986, %v3986
        %v4051 = vpack.c.b16 %v3987, %v3987
        %v4052 = vpack.c.b16 %v3988, %v3988
        %v4053 = vpack.c.b16 %v3989, %v3989
        %v4054 = vpack.c.b16 %v3990, %v3990
        %v4055 = vpack.c.b16 %v3991, %v3991
        %v4056 = vpack.c.b16 %v3992, %v3992
        %v4057 = vpack.c.b16 %v3993, %v3993
        %v4058 = vpack.c.b16 %v3994, %v3994
        %v4059 = vpack.c.b16 %v3995, %v3995
        %v4060 = vpack.c.b16 %v3996, %v3996
        %v4061 = vpack.c.b16 %v3997, %v3997
        %v4062 = vpack.c.b16 %v3998, %v3998
        %v4063 = vpack.c.b16 %v3999, %v3999
        %v4064 = vpack.c.b16 %v4000, %v4000
        %v4065 = vpack.c.b16 %v4001, %v4001
        %v4066 = vpack.c.b16 %v4002, %v4002
        %v4067 = vpack.c.b16 %v4003, %v4003
        %v4068 = vpack.c.b16 %v4004, %v4004
        %v4069 = vpack.c.b16 %v4005, %v4005
        %v4070 = vpack.c.b16 %v4006, %v4006
        %v4071 = vpack.c.b16 %v4007, %v4007
        %v4072 = vpack.c.b16 %v4008, %v4008
        %v4073 = vpack.c.b16 %v4009, %v4009
        %v4074 = vpack.c.b16 %v4010, %v4010
        %v4075 = vpack.c.b16 %v4011, %v4011
        %v4076 = vpack.c.b16 %v4012, %v4012
        %v4077 = vpack.c.b16 %v4013, %v4013
        %v4078 = vpack.c.b16 %v4014, %v4014
        %4143 = vst [vmem:[%s191] sm:$0xf] %v4015
        %4144 = vst [vmem:[%s191 + $0x4] sm:$0xf] %v4016
        %4145 = vst [vmem:[%s191 + $0x8] sm:$0xf] %v4017
        %4146 = vst [vmem:[%s191 + $0xc] sm:$0xf] %v4018
        %4147 = vst [vmem:[%s191 + $0x10] sm:$0xf] %v4019
        %4148 = vst [vmem:[%s191 + $0x14] sm:$0xf] %v4020
        %4149 = vst [vmem:[%s191 + $0x18] sm:$0xf] %v4021
        %4150 = vst [vmem:[%s191 + $0x1c] sm:$0xf] %v4022
        %4151 = vst [vmem:[%s191 + $0x20] sm:$0xf] %v4023
        %4152 = vst [vmem:[%s191 + $0x24] sm:$0xf] %v4024
        %4153 = vst [vmem:[%s191 + $0x28] sm:$0xf] %v4025
        %4154 = vst [vmem:[%s191 + $0x2c] sm:$0xf] %v4026
        %4155 = vst [vmem:[%s191 + $0x30] sm:$0xf] %v4027
        %4156 = vst [vmem:[%s191 + $0x34] sm:$0xf] %v4028
        %4157 = vst [vmem:[%s191 + $0x38] sm:$0xf] %v4029
        %4158 = vst [vmem:[%s191 + $0x3c] sm:$0xf] %v4030
        %4159 = vst [vmem:[%s191 + $0x40] sm:$0xf] %v4031
        %4160 = vst [vmem:[%s191 + $0x44] sm:$0xf] %v4032
        %4161 = vst [vmem:[%s191 + $0x48] sm:$0xf] %v4033
        %4162 = vst [vmem:[%s191 + $0x4c] sm:$0xf] %v4034
        %4163 = vst [vmem:[%s191 + $0x50] sm:$0xf] %v4035
        %4164 = vst [vmem:[%s191 + $0x54] sm:$0xf] %v4036
        %4165 = vst [vmem:[%s191 + $0x58] sm:$0xf] %v4037
        %4166 = vst [vmem:[%s191 + $0x5c] sm:$0xf] %v4038
        %4167 = vst [vmem:[%s191 + $0x60] sm:$0xf] %v4039
        %4168 = vst [vmem:[%s191 + $0x64] sm:$0xf] %v4040
        %4169 = vst [vmem:[%s191 + $0x68] sm:$0xf] %v4041
        %4170 = vst [vmem:[%s191 + $0x6c] sm:$0xf] %v4042
        %4171 = vst [vmem:[%s191 + $0x70] sm:$0xf] %v4043
        %4172 = vst [vmem:[%s191 + $0x74] sm:$0xf] %v4044
        %4173 = vst [vmem:[%s191 + $0x78] sm:$0xf] %v4045
        %4174 = vst [vmem:[%s191 + $0x7c] sm:$0xf] %v4046
        %4175 = vst [vmem:[%s191 + $0x80] sm:$0xf] %v4047
        %4176 = vst [vmem:[%s191 + $0x84] sm:$0xf] %v4048
        %4177 = vst [vmem:[%s191 + $0x88] sm:$0xf] %v4049
        %4178 = vst [vmem:[%s191 + $0x8c] sm:$0xf] %v4050
        %4179 = vst [vmem:[%s191 + $0x90] sm:$0xf] %v4051
        %4180 = vst [vmem:[%s191 + $0x94] sm:$0xf] %v4052
        %4181 = vst [vmem:[%s191 + $0x98] sm:$0xf] %v4053
        %4182 = vst [vmem:[%s191 + $0x9c] sm:$0xf] %v4054
        %4183 = vst [vmem:[%s191 + $0xa0] sm:$0xf] %v4055
        %4184 = vst [vmem:[%s191 + $0xa4] sm:$0xf] %v4056
        %4185 = vst [vmem:[%s191 + $0xa8] sm:$0xf] %v4057
        %4186 = vst [vmem:[%s191 + $0xac] sm:$0xf] %v4058
        %4187 = vst [vmem:[%s191 + $0xb0] sm:$0xf] %v4059
        %4188 = vst [vmem:[%s191 + $0xb4] sm:$0xf] %v4060
        %4189 = vst [vmem:[%s191 + $0xb8] sm:$0xf] %v4061
        %4190 = vst [vmem:[%s191 + $0xbc] sm:$0xf] %v4062
        %4191 = vst [vmem:[%s191 + $0xc0] sm:$0xf] %v4063
        %4192 = vst [vmem:[%s191 + $0xc4] sm:$0xf] %v4064
        %4193 = vst [vmem:[%s191 + $0xc8] sm:$0xf] %v4065
        %4194 = vst [vmem:[%s191 + $0xcc] sm:$0xf] %v4066
        %4195 = vst [vmem:[%s191 + $0xd0] sm:$0xf] %v4067
        %4196 = vst [vmem:[%s191 + $0xd4] sm:$0xf] %v4068
        %4197 = vst [vmem:[%s191 + $0xd8] sm:$0xf] %v4069
        %4198 = vst [vmem:[%s191 + $0xdc] sm:$0xf] %v4070
        %4199 = vst [vmem:[%s191 + $0xe0] sm:$0xf] %v4071
        %4200 = vst [vmem:[%s191 + $0xe4] sm:$0xf] %v4072
        %4201 = vst [vmem:[%s191 + $0xe8] sm:$0xf] %v4073
        %4202 = vst [vmem:[%s191 + $0xec] sm:$0xf] %v4074
        %4203 = vst [vmem:[%s191 + $0xf0] sm:$0xf] %v4075
        %4204 = vst [vmem:[%s191 + $0xf4] sm:$0xf] %v4076
        %4205 = vst [vmem:[%s191 + $0xf8] sm:$0xf] %v4077
        %4206 = vst [vmem:[%s191 + $0xfc] sm:$0xf] %v4078
        %s4207 = sand.u32 %s115, 1
        %s4208 = scalar_lea.sflag [#allocation3], %s4207
        %s4209 = sand.u32 %s115, 1
        %s4210 = smul.addr %s4209, 256
        %s4211 = scalar_lea.vmem [#allocation2], %s4210
        // Predicated region
        $region37: #{tpu_custom_call.1} parent=35 // pred_check
          %p4212 = pneg %p125
        $region38: #{tpu_custom_call.1} parent=35 // pred_check_branch
          %4214 = sbr.rel (%p4212) target = $region40
        $region39: #{tpu_custom_call.1} parent=35 // pred_region
          %s4215 = smul.u32 64, %s18
          %s4217 = ssub.s32 4096, 4096
          %4218 = vsyncadd %s4208, %s4217
          %s4219 = smul.addr %s4215, 64
          %s4220 = scalar_lea.hbm %s4, %s4219
          %s4221 = sshll.u32 %s4211, 4
          %s4222 = int_to_ptr.vmem [resolvable:$true] %s4221
          %4227 = dma.vmem_to_hbm [thread:$0]  %s4222, 4096, %s4220, %s4208, 64, 64, 4
        $region40: #{tpu_custom_call.1} parent=35 // pred_fallthru
          _
      $region36: #{tpu_custom_call.1} parent=5 // pred_fallthru
        _
      %p4228 = scmp.le.s32.totalorder 2, %s13
      // Predicated region
      $region41: #{tpu_custom_call.1} parent=5 // pred_check
        %p4229 = pneg %p4228
      $region42: #{tpu_custom_call.1} parent=5 // pred_check_branch
        %4231 = sbr.rel (%p4229) target = $region44
      $region43: #{tpu_custom_call.1} parent=5 // pred_region
        %s4232 = ssub.s32 %s13, 2
        // Predicated region
        $region45: #{tpu_custom_call.1} parent=43 // pred_check
          %p4233 = pneg %p131
        $region46: #{tpu_custom_call.1} parent=43 // pred_check_branch
          %4235 = sbr.rel (%p4233) target = $region48
        $region47: #{tpu_custom_call.1} parent=43 // pred_region
          %s4236 = sand.u32 %s116, 1
          %s4237 = scalar_lea.sflag [#allocation3], %s4236
          %s4238 = sand.u32 %s116, 1
          %s4239 = smul.addr %s4238, 256
          %s4240 = scalar_lea.vmem [#allocation2], %s4239
          %4241 = dma.done %s4237, 4096
        $region48: #{tpu_custom_call.1} parent=43 // pred_fallthru
          _
      $region44: #{tpu_custom_call.1} parent=5 // pred_fallthru
        _
    $region6: #{tpu_custom_call.1} parent=1 // loop_footer
      %s17 = sadd.s32 1, %s13
    $region7: #{tpu_custom_call.1} parent=1 // loop_footer_branch
      %12 = sbr.rel target = $region3
    $region8: #{tpu_custom_call.1} parent=1 // loop_exit
      _
    %4242 = vsyncpa [#allocation3], 1
    %s4243 = scalar_lea.sflag [#allocation3], 1
    %4244 = vsyncpa %s4243, 1

</llo_original>
